<compile_context>
chip_gen: v5e
topology: v5e:2x2
jax: 0.10.0
libtpu: 0.0.40
codegen_flags: <defaults>
</compile_context>

<pallas_src>
import functools
import math

import jax
import jax.numpy as jnp
from jax.experimental import pallas as pl
from jax.experimental.pallas import tpu as pltpu


# ----------------------------- fused whole-model kernel -----------------------------

def _model_kernel(x_ref, w_in_ref, b_in_ref, w_out_ref, b_out_ref,
                  ln1_g_ref, ln1_b_ref, w_f1_ref, b_f1_ref, w_f2_ref, b_f2_ref,
                  ln2_g_ref, ln2_b_ref, fc_w_ref, fc_b_ref, o_ref,
                  *, num_layers, num_heads, num_classes, eps):
    S = x_ref.shape[1]
    E = x_ref.shape[2]
    Dh = E // num_heads
    inv_e = 1.0 / E

    def layer_norm(y, g, b):
        # one-pass stats: sum and sum-of-squares, then rsqrt on the EUP
        s1 = jnp.sum(y, axis=-1, keepdims=True)
        s2 = jnp.sum(y * y, axis=-1, keepdims=True)
        mu = s1 * inv_e
        var = s2 * inv_e - mu * mu
        return (y - mu) * jax.lax.rsqrt(var + eps) * g + b

    h = x_ref[0]                                                   # (S, E) f32

    for l in range(num_layers):                                    # unrolled at trace time
        # --- QKV projection (Q weight/bias already pre-scaled by 1/sqrt(Dh)) ---
        qkv = jnp.dot(h.astype(jnp.bfloat16), w_in_ref[l],
                      preferred_element_type=jnp.float32) + b_in_ref[l]   # (S, 3E)
        q = qkv[:, 0:E]
        k = qkv[:, E:2 * E]
        v = qkv[:, 2 * E:3 * E]

        # --- per-head attention with out_proj fused into the head loop ---
        acc = None
        for hd in range(num_heads):                                # unrolled
            sl = slice(hd * Dh, (hd + 1) * Dh)
            qh = q[:, sl].astype(jnp.bfloat16)
            kh = k[:, sl].astype(jnp.bfloat16)
            vh = v[:, sl].astype(jnp.bfloat16)
            s = jax.lax.dot_general(qh, kh, (((1,), (1,)), ((), ())),
                                    preferred_element_type=jnp.float32)   # (S, S)
            m = jnp.max(s, axis=-1, keepdims=True)
            p = jnp.exp(s - m)
            p = p * pl.reciprocal(jnp.sum(p, axis=-1, keepdims=True), approx=True)
            ph_v = jnp.dot(p.astype(jnp.bfloat16), vh,
                           preferred_element_type=jnp.float32)            # (S, Dh)
            contrib = jnp.dot(ph_v.astype(jnp.bfloat16), w_out_ref[l, hd],
                              preferred_element_type=jnp.float32)         # (S, E)
            acc = contrib if acc is None else acc + contrib

        y = acc + b_out_ref[l] + h                                 # out_proj bias + residual
        h = layer_norm(y, ln1_g_ref[l], ln1_b_ref[l])              # post-norm LN1

        # --- feed-forward (ReLU) + residual + LN2 ---
        z = jnp.dot(h.astype(jnp.bfloat16), w_f1_ref[l],
                    preferred_element_type=jnp.float32) + b_f1_ref[l]     # (S, F)
        z = jnp.maximum(z, 0.0)
        y2 = jnp.dot(z.astype(jnp.bfloat16), w_f2_ref[l],
                     preferred_element_type=jnp.float32) + b_f2_ref[l] + h
        h = layer_norm(y2, ln2_g_ref[l], ln2_b_ref[l])

    # --- fc_out (vocab padded to a multiple of 128; slice to num_classes at the store) ---
    logits = jnp.dot(h.astype(jnp.bfloat16), fc_w_ref[...],
                     preferred_element_type=jnp.float32) + fc_b_ref[...]  # (S, n_pad)
    o_ref[0] = logits[:, :num_classes].astype(o_ref.dtype)


# ----------------------------- params -----------------------------

def init_params(key, vocab_size, embed_dim, num_heads, num_layers,
                hidden_dim, num_classes):
    E, H, F = embed_dim, num_heads, hidden_dim
    assert E % 128 == 0 and F % 128 == 0 and E % H == 0
    Dh = E // H
    scale_q = 1.0 / math.sqrt(Dh)
    n_pad = pl.cdiv(num_classes, 128) * 128            # pad vocab so fc_out stays lane-aligned

    def nrm(k, shape, scale=0.02):
        return (scale * jax.random.normal(k, shape)).astype(jnp.float32)

    keys = jax.random.split(key, 3 + num_layers)
    fc_w = jnp.pad(nrm(keys[1], (num_classes, E)), ((0, n_pad - num_classes), (0, 0)))
    fc_b = jnp.pad(nrm(keys[2], (num_classes,)), (0, n_pad - num_classes))

    w_in, b_in, w_out, b_out = [], [], [], []
    w_f1, b_f1, w_f2, b_f2 = [], [], [], []
    for li in range(num_layers):
        lk = jax.random.split(keys[3 + li], 8)
        wi = nrm(lk[0], (3 * E, E))                    # PyTorch in_proj_weight layout (3E, E)
        bi = nrm(lk[1], (3 * E,))
        wi = wi.at[:E, :].multiply(scale_q)            # fold 1/sqrt(Dh) into Q rows
        bi = bi.at[:E].multiply(scale_q)
        w_in.append(wi.T)                              # (E, 3E)
        b_in.append(bi.reshape(1, 3 * E))
        wo = nrm(lk[2], (E, E))                        # out_proj.weight (E_out, E_in)
        w_out.append(wo.T.reshape(H, Dh, E))           # (E_in, E_out) -> per-head (H, Dh, E)
        b_out.append(nrm(lk[3], (E,)).reshape(1, E))
        w_f1.append(nrm(lk[4], (F, E)).T)              # (E, F)
        b_f1.append(nrm(lk[5], (F,)).reshape(1, F))
        w_f2.append(nrm(lk[6], (E, F)).T)              # (F, E)
        b_f2.append(nrm(lk[7], (E,)).reshape(1, E))

    return {
        "embedding": nrm(keys[0], (vocab_size, E), 1.0),
        # stacked per-layer weights: bf16 MXU operands, f32 bias / LN params
        "w_in": jnp.stack(w_in).astype(jnp.bfloat16),        # (L, E, 3E)
        "b_in": jnp.stack(b_in),                             # (L, 1, 3E)
        "w_out": jnp.stack(w_out).astype(jnp.bfloat16),      # (L, H, Dh, E)
        "b_out": jnp.stack(b_out),                           # (L, 1, E)
        "ln1_g": jnp.ones((num_layers, 1, E), jnp.float32),
        "ln1_b": jnp.zeros((num_layers, 1, E), jnp.float32),
        "w_f1": jnp.stack(w_f1).astype(jnp.bfloat16),        # (L, E, F)
        "b_f1": jnp.stack(b_f1),                             # (L, 1, F)
        "w_f2": jnp.stack(w_f2).astype(jnp.bfloat16),        # (L, F, E)
        "b_f2": jnp.stack(b_f2),                             # (L, 1, E)
        "ln2_g": jnp.ones((num_layers, 1, E), jnp.float32),
        "ln2_b": jnp.zeros((num_layers, 1, E), jnp.float32),
        "fc_w": fc_w.T.astype(jnp.bfloat16),                 # (E, n_pad)
        "fc_b": fc_b.reshape(1, n_pad),                      # (1, n_pad)
    }


# ----------------------------- model -----------------------------

def gd_transformer_forward(tokens, params, *, num_heads, num_classes):
    # tokens: (S, B) int32 (PyTorch batch_first=False convention)
    S, B = tokens.shape
    emb = params["embedding"]
    E = emb.shape[1]
    L = params["w_in"].shape[0]
    F = params["w_f1"].shape[2]
    n_pad = params["fc_w"].shape[1]
    Dh = E // num_heads

    # TODO(synk): embedding gather and the final (B,S,C)->(S,B,C) transpose stay in
    # plain JAX (tiny glue; the gather has no clean rectangular BlockSpec form).
    x = jnp.take(emb, tokens.T, axis=0)                       # (B, S, E) f32

    full = lambda shape: pl.BlockSpec(shape, lambda b: (0,) * len(shape))

    weight_bytes = sum(int(params[k].size) * params[k].dtype.itemsize
                       for k in params if k != "embedding")
    cost = pl.CostEstimate(
        flops=2 * B * (L * (S * E * 3 * E
                            + num_heads * (2 * S * S * Dh + S * Dh * E)
                            + 2 * S * E * F)
                       + S * E * n_pad),
        transcendentals=B * L * num_heads * S * S,
        bytes_accessed=int(x.size) * 4 + B * S * num_classes * 4 + weight_bytes)

    out = pl.pallas_call(
        functools.partial(_model_kernel, num_layers=L, num_heads=num_heads,
                          num_classes=num_classes, eps=1e-5),
        out_shape=jax.ShapeDtypeStruct((B, S, num_classes), jnp.float32),
        grid=(B,),
        in_specs=[
            pl.BlockSpec((1, S, E), lambda b: (b, 0, 0)),     # activation block per batch
            full((L, E, 3 * E)), full((L, 1, 3 * E)),         # in_proj
            full((L, num_heads, Dh, E)), full((L, 1, E)),     # out_proj (per-head rows)
            full((L, 1, E)), full((L, 1, E)),                 # LN1
            full((L, E, F)), full((L, 1, F)),                 # ffn1
            full((L, F, E)), full((L, 1, E)),                 # ffn2
            full((L, 1, E)), full((L, 1, E)),                 # LN2
            full((E, n_pad)), full((1, n_pad)),               # fc_out
        ],
        out_specs=pl.BlockSpec((1, S, num_classes), lambda b: (b, 0, 0)),
        compiler_params=pltpu.CompilerParams(dimension_semantics=("parallel",)),
        cost_estimate=cost,
    )(x, params["w_in"], params["b_in"], params["w_out"], params["b_out"],
      params["ln1_g"], params["ln1_b"], params["w_f1"], params["b_f1"],
      params["w_f2"], params["b_f2"], params["ln2_g"], params["ln2_b"],
      params["fc_w"], params["fc_b"])

    return jnp.transpose(out, (1, 0, 2))                      # (S, B, C)


# ----------------------------- pure-JAX reference (mirrors kernel bf16 rounding) -----------------------------

def _ref_forward(tokens, params, num_heads, num_classes):
    rd = lambda a: a.astype(jnp.bfloat16).astype(jnp.float32)
    S, B = tokens.shape
    emb = params["embedding"]
    E = emb.shape[1]
    Dh = E // num_heads
    L = params["w_in"].shape[0]
    x = jnp.take(emb, tokens.T, axis=0)                       # (B, S, E)

    def ln(z, g, b):
        mu = jnp.mean(z, -1, keepdims=True)
        var = jnp.mean((z - mu) ** 2, -1, keepdims=True)
        return (z - mu) * jax.lax.rsqrt(var + 1e-5) * g + b

    h = x
    for l in range(L):
        qkv = rd(h) @ params["w_in"][l].astype(jnp.float32) + params["b_in"][l]
        q = qkv[..., :E].reshape(B, S, num_heads, Dh)          # Q already pre-scaled
        k = qkv[..., E:2 * E].reshape(B, S, num_heads, Dh)
        v = qkv[..., 2 * E:].reshape(B, S, num_heads, Dh)
        s = jnp.einsum("bqhd,bkhd->bhqk", rd(q), rd(k))
        p = rd(jax.nn.softmax(s, axis=-1))
        attn = jnp.einsum("bhqk,bkhd->bqhd", p, rd(v)).reshape(B, S, E)
        w_out = params["w_out"][l].astype(jnp.float32).reshape(E, E)
        y = rd(attn) @ w_out + params["b_out"][l] + h
        h = ln(y, params["ln1_g"][l], params["ln1_b"][l])
        z = jnp.maximum(rd(h) @ params["w_f1"][l].astype(jnp.float32) + params["b_f1"][l], 0.0)
        y2 = rd(z) @ params["w_f2"][l].astype(jnp.float32) + params["b_f2"][l] + h
        h = ln(y2, params["ln2_g"][l], params["ln2_b"][l])
    logits = rd(h) @ params["fc_w"].astype(jnp.float32) + params["fc_b"]
    logits = logits[..., :num_classes]
    return jnp.transpose(logits, (1, 0, 2))                    # (S, B, C)


# ----------------------------- main -----------------------------

if __name__ == "__main__":
    # hyperparams from the PyTorch spec (num_layers reduced 6 -> 2 to keep the
    # smoke test quick; the fused kernel handles any L)
    vocab_size = 2000
    embed_dim = 128
    num_heads = 8
    num_layers = 2
    hidden_dim = 512
    num_classes = vocab_size
    S, B = 8, 2

    key = jax.random.PRNGKey(0)
    pkey, tkey = jax.random.split(key)
    params = init_params(pkey, vocab_size, embed_dim, num_heads, num_layers,
                         hidden_dim, num_classes)
    tokens = jax.random.randint(tkey, (S, B), 0, vocab_size, dtype=jnp.int32)

    fwd = jax.jit(functools.partial(gd_transformer_forward,
                                    num_heads=num_heads, num_classes=num_classes))
    out = jax.block_until_ready(fwd(tokens, params))
    assert out.shape == (S, B, num_classes), out.shape

    ref = jax.block_until_ready(_ref_forward(tokens, params, num_heads, num_classes))
    err = float(jnp.max(jnp.abs(out - ref)))
    assert err < 1e-2, err

    print("KERNEL_OK")
</pallas_src>

<mosaic_0001>
module attributes {stable_mosaic.version = 11 : i64} {
  func.func @_model_kernel(%arg0: i32, %arg1: memref<1x8x128xf32, #tpu.memory_space<vmem>>, %arg2: memref<2x128x384xbf16, #tpu.memory_space<vmem>>, %arg3: memref<2x1x384xf32, #tpu.memory_space<vmem>>, %arg4: memref<2x8x16x128xbf16, #tpu.memory_space<vmem>>, %arg5: memref<2x1x128xf32, #tpu.memory_space<vmem>>, %arg6: memref<2x1x128xf32, #tpu.memory_space<vmem>>, %arg7: memref<2x1x128xf32, #tpu.memory_space<vmem>>, %arg8: memref<2x128x512xbf16, #tpu.memory_space<vmem>>, %arg9: memref<2x1x512xf32, #tpu.memory_space<vmem>>, %arg10: memref<2x512x128xbf16, #tpu.memory_space<vmem>>, %arg11: memref<2x1x128xf32, #tpu.memory_space<vmem>>, %arg12: memref<2x1x128xf32, #tpu.memory_space<vmem>>, %arg13: memref<2x1x128xf32, #tpu.memory_space<vmem>>, %arg14: memref<128x2048xbf16, #tpu.memory_space<vmem>>, %arg15: memref<1x2048xf32, #tpu.memory_space<vmem>>, %arg16: memref<1x8x2000xf32, #tpu.memory_space<vmem>>) attributes {dimension_semantics = [#tpu.dimension_semantics<parallel>], iteration_bounds = array<i64: 2>, scalar_prefetch = 0 : i64, scratch_operands = 0 : i64, tpu.core_type = #tpu.core_type<tc>, window_params = [{transform_indices = @transform_0, window_bounds = array<i64: 1, 8, 128>}, {pipeline_mode = #tpu.pipeline_mode<synchronous>, transform_indices = @transform_1, window_bounds = array<i64: 2, 128, 384>}, {pipeline_mode = #tpu.pipeline_mode<synchronous>, transform_indices = @transform_2, window_bounds = array<i64: 2, 1, 384>}, {pipeline_mode = #tpu.pipeline_mode<synchronous>, transform_indices = @transform_3, window_bounds = array<i64: 2, 8, 16, 128>}, {pipeline_mode = #tpu.pipeline_mode<synchronous>, transform_indices = @transform_4, window_bounds = array<i64: 2, 1, 128>}, {pipeline_mode = #tpu.pipeline_mode<synchronous>, transform_indices = @transform_5, window_bounds = array<i64: 2, 1, 128>}, {pipeline_mode = #tpu.pipeline_mode<synchronous>, transform_indices = @transform_6, window_bounds = array<i64: 2, 1, 128>}, {pipeline_mode = #tpu.pipeline_mode<synchronous>, transform_indices = @transform_7, window_bounds = array<i64: 2, 128, 512>}, {pipeline_mode = #tpu.pipeline_mode<synchronous>, transform_indices = @transform_8, window_bounds = array<i64: 2, 1, 512>}, {pipeline_mode = #tpu.pipeline_mode<synchronous>, transform_indices = @transform_9, window_bounds = array<i64: 2, 512, 128>}, {pipeline_mode = #tpu.pipeline_mode<synchronous>, transform_indices = @transform_10, window_bounds = array<i64: 2, 1, 128>}, {pipeline_mode = #tpu.pipeline_mode<synchronous>, transform_indices = @transform_11, window_bounds = array<i64: 2, 1, 128>}, {pipeline_mode = #tpu.pipeline_mode<synchronous>, transform_indices = @transform_12, window_bounds = array<i64: 2, 1, 128>}, {pipeline_mode = #tpu.pipeline_mode<synchronous>, transform_indices = @transform_13, window_bounds = array<i64: 128, 2048>}, {pipeline_mode = #tpu.pipeline_mode<synchronous>, transform_indices = @transform_14, window_bounds = array<i64: 1, 2048>}, {transform_indices = @transform_15, window_bounds = array<i64: 1, 8, 2000>}]} {
    %c0 = arith.constant 0 : index
    %c0_0 = arith.constant 0 : index
    %c0_1 = arith.constant 0 : index
    %0 = vector.load %arg1[%c0, %c0_0, %c0_1] : memref<1x8x128xf32, #tpu.memory_space<vmem>>, vector<1x8x128xf32>
    %1 = vector.shape_cast %0 : vector<1x8x128xf32> to vector<8x128xf32>
    %2 = arith.truncf %1 : vector<8x128xf32> to vector<8x128xbf16>
    %c0_2 = arith.constant 0 : index
    %c0_3 = arith.constant 0 : index
    %c0_4 = arith.constant 0 : index
    %3 = vector.load %arg2[%c0_2, %c0_3, %c0_4] : memref<2x128x384xbf16, #tpu.memory_space<vmem>>, vector<1x128x384xbf16>
    %4 = vector.shape_cast %3 : vector<1x128x384xbf16> to vector<128x384xbf16>
    %cst = arith.constant dense<0.000000e+00> : vector<8x384xf32>
    %5 = tpu.matmul %2, %4, %cst {dimension_numbers = #tpu.dot_dimension_numbers<[1], [0], [0], [1], [0, 0, 1, 1], [], []>} : vector<8x128xbf16>, vector<128x384xbf16>, vector<8x384xf32> -> vector<8x384xf32>
    %c0_5 = arith.constant 0 : index
    %c0_6 = arith.constant 0 : index
    %c0_7 = arith.constant 0 : index
    %6 = vector.load %arg3[%c0_5, %c0_6, %c0_7] : memref<2x1x384xf32, #tpu.memory_space<vmem>>, vector<1x1x384xf32>
    %7 = vector.shape_cast %6 : vector<1x1x384xf32> to vector<1x384xf32>
    %8 = vector.broadcast %7 : vector<1x384xf32> to vector<8x384xf32>
    %9 = arith.addf %5, %8 : vector<8x384xf32>
    %10 = vector.extract_strided_slice %9 {offsets = [0, 0], sizes = [8, 128], strides = [1, 1]} : vector<8x384xf32> to vector<8x128xf32>
    %11 = vector.extract_strided_slice %9 {offsets = [0, 128], sizes = [8, 128], strides = [1, 1]} : vector<8x384xf32> to vector<8x128xf32>
    %12 = vector.extract_strided_slice %9 {offsets = [0, 256], sizes = [8, 128], strides = [1, 1]} : vector<8x384xf32> to vector<8x128xf32>
    %13 = vector.extract_strided_slice %10 {offsets = [0, 0], sizes = [8, 16], strides = [1, 1]} : vector<8x128xf32> to vector<8x16xf32>
    %14 = arith.truncf %13 : vector<8x16xf32> to vector<8x16xbf16>
    %15 = vector.extract_strided_slice %11 {offsets = [0, 0], sizes = [8, 16], strides = [1, 1]} : vector<8x128xf32> to vector<8x16xf32>
    %16 = arith.truncf %15 : vector<8x16xf32> to vector<8x16xbf16>
    %17 = vector.extract_strided_slice %12 {offsets = [0, 0], sizes = [8, 16], strides = [1, 1]} : vector<8x128xf32> to vector<8x16xf32>
    %18 = arith.truncf %17 : vector<8x16xf32> to vector<8x16xbf16>
    %cst_8 = arith.constant dense<0.000000e+00> : vector<8x8xf32>
    %19 = tpu.matmul %14, %16, %cst_8 {dimension_numbers = #tpu.dot_dimension_numbers<[1], [1], [0], [0], [0, 0, 1, 0], [], []>} : vector<8x16xbf16>, vector<8x16xbf16>, vector<8x8xf32> -> vector<8x8xf32>
    %cst_9 = arith.constant dense<0xFF800000> : vector<8xf32>
    %20 = vector.multi_reduction <maximumf>, %19, %cst_9 [1] : vector<8x8xf32> to vector<8xf32>
    %21 = vector.shape_cast %20 : vector<8xf32> to vector<8x1xf32>
    %22 = vector.broadcast %21 : vector<8x1xf32> to vector<8x8xf32>
    %23 = arith.subf %19, %22 : vector<8x8xf32>
    %24 = math.exp %23 : vector<8x8xf32>
    %cst_10 = arith.constant dense<0.000000e+00> : vector<8xf32>
    %25 = vector.multi_reduction <add>, %24, %cst_10 [1] : vector<8x8xf32> to vector<8xf32>
    %26 = vector.shape_cast %25 : vector<8xf32> to vector<8x1xf32>
    %27 = tpu.reciprocal %26 {approx = true} : vector<8x1xf32> -> vector<8x1xf32>
    %28 = vector.broadcast %27 : vector<8x1xf32> to vector<8x8xf32>
    %29 = arith.mulf %24, %28 : vector<8x8xf32>
    %30 = arith.truncf %29 : vector<8x8xf32> to vector<8x8xbf16>
    %cst_11 = arith.constant dense<0.000000e+00> : vector<8x16xf32>
    %31 = tpu.matmul %30, %18, %cst_11 {dimension_numbers = #tpu.dot_dimension_numbers<[1], [0], [0], [1], [0, 0, 1, 1], [], []>} : vector<8x8xbf16>, vector<8x16xbf16>, vector<8x16xf32> -> vector<8x16xf32>
    %32 = arith.truncf %31 : vector<8x16xf32> to vector<8x16xbf16>
    %c0_12 = arith.constant 0 : index
    %c0_13 = arith.constant 0 : index
    %c0_14 = arith.constant 0 : index
    %c0_15 = arith.constant 0 : index
    %33 = vector.load %arg4[%c0_12, %c0_13, %c0_14, %c0_15] : memref<2x8x16x128xbf16, #tpu.memory_space<vmem>>, vector<1x1x16x128xbf16>
    %34 = vector.shape_cast %33 : vector<1x1x16x128xbf16> to vector<16x128xbf16>
    %cst_16 = arith.constant dense<0.000000e+00> : vector<8x128xf32>
    %35 = tpu.matmul %32, %34, %cst_16 {dimension_numbers = #tpu.dot_dimension_numbers<[1], [0], [0], [1], [0, 0, 1, 1], [], []>} : vector<8x16xbf16>, vector<16x128xbf16>, vector<8x128xf32> -> vector<8x128xf32>
    %36 = vector.extract_strided_slice %10 {offsets = [0, 16], sizes = [8, 16], strides = [1, 1]} : vector<8x128xf32> to vector<8x16xf32>
    %37 = arith.truncf %36 : vector<8x16xf32> to vector<8x16xbf16>
    %38 = vector.extract_strided_slice %11 {offsets = [0, 16], sizes = [8, 16], strides = [1, 1]} : vector<8x128xf32> to vector<8x16xf32>
    %39 = arith.truncf %38 : vector<8x16xf32> to vector<8x16xbf16>
    %40 = vector.extract_strided_slice %12 {offsets = [0, 16], sizes = [8, 16], strides = [1, 1]} : vector<8x128xf32> to vector<8x16xf32>
    %41 = arith.truncf %40 : vector<8x16xf32> to vector<8x16xbf16>
    %cst_17 = arith.constant dense<0.000000e+00> : vector<8x8xf32>
    %42 = tpu.matmul %37, %39, %cst_17 {dimension_numbers = #tpu.dot_dimension_numbers<[1], [1], [0], [0], [0, 0, 1, 0], [], []>} : vector<8x16xbf16>, vector<8x16xbf16>, vector<8x8xf32> -> vector<8x8xf32>
    %cst_18 = arith.constant dense<0xFF800000> : vector<8xf32>
    %43 = vector.multi_reduction <maximumf>, %42, %cst_18 [1] : vector<8x8xf32> to vector<8xf32>
    %44 = vector.shape_cast %43 : vector<8xf32> to vector<8x1xf32>
    %45 = vector.broadcast %44 : vector<8x1xf32> to vector<8x8xf32>
    %46 = arith.subf %42, %45 : vector<8x8xf32>
    %47 = math.exp %46 : vector<8x8xf32>
    %cst_19 = arith.constant dense<0.000000e+00> : vector<8xf32>
    %48 = vector.multi_reduction <add>, %47, %cst_19 [1] : vector<8x8xf32> to vector<8xf32>
    %49 = vector.shape_cast %48 : vector<8xf32> to vector<8x1xf32>
    %50 = tpu.reciprocal %49 {approx = true} : vector<8x1xf32> -> vector<8x1xf32>
    %51 = vector.broadcast %50 : vector<8x1xf32> to vector<8x8xf32>
    %52 = arith.mulf %47, %51 : vector<8x8xf32>
    %53 = arith.truncf %52 : vector<8x8xf32> to vector<8x8xbf16>
    %cst_20 = arith.constant dense<0.000000e+00> : vector<8x16xf32>
    %54 = tpu.matmul %53, %41, %cst_20 {dimension_numbers = #tpu.dot_dimension_numbers<[1], [0], [0], [1], [0, 0, 1, 1], [], []>} : vector<8x8xbf16>, vector<8x16xbf16>, vector<8x16xf32> -> vector<8x16xf32>
    %55 = arith.truncf %54 : vector<8x16xf32> to vector<8x16xbf16>
    %c0_21 = arith.constant 0 : index
    %c1 = arith.constant 1 : index
    %c0_22 = arith.constant 0 : index
    %c0_23 = arith.constant 0 : index
    %56 = vector.load %arg4[%c0_21, %c1, %c0_22, %c0_23] : memref<2x8x16x128xbf16, #tpu.memory_space<vmem>>, vector<1x1x16x128xbf16>
    %57 = vector.shape_cast %56 : vector<1x1x16x128xbf16> to vector<16x128xbf16>
    %cst_24 = arith.constant dense<0.000000e+00> : vector<8x128xf32>
    %58 = tpu.matmul %55, %57, %cst_24 {dimension_numbers = #tpu.dot_dimension_numbers<[1], [0], [0], [1], [0, 0, 1, 1], [], []>} : vector<8x16xbf16>, vector<16x128xbf16>, vector<8x128xf32> -> vector<8x128xf32>
    %59 = arith.addf %35, %58 : vector<8x128xf32>
    %60 = vector.extract_strided_slice %10 {offsets = [0, 32], sizes = [8, 16], strides = [1, 1]} : vector<8x128xf32> to vector<8x16xf32>
    %61 = arith.truncf %60 : vector<8x16xf32> to vector<8x16xbf16>
    %62 = vector.extract_strided_slice %11 {offsets = [0, 32], sizes = [8, 16], strides = [1, 1]} : vector<8x128xf32> to vector<8x16xf32>
    %63 = arith.truncf %62 : vector<8x16xf32> to vector<8x16xbf16>
    %64 = vector.extract_strided_slice %12 {offsets = [0, 32], sizes = [8, 16], strides = [1, 1]} : vector<8x128xf32> to vector<8x16xf32>
    %65 = arith.truncf %64 : vector<8x16xf32> to vector<8x16xbf16>
    %cst_25 = arith.constant dense<0.000000e+00> : vector<8x8xf32>
    %66 = tpu.matmul %61, %63, %cst_25 {dimension_numbers = #tpu.dot_dimension_numbers<[1], [1], [0], [0], [0, 0, 1, 0], [], []>} : vector<8x16xbf16>, vector<8x16xbf16>, vector<8x8xf32> -> vector<8x8xf32>
    %cst_26 = arith.constant dense<0xFF800000> : vector<8xf32>
    %67 = vector.multi_reduction <maximumf>, %66, %cst_26 [1] : vector<8x8xf32> to vector<8xf32>
    %68 = vector.shape_cast %67 : vector<8xf32> to vector<8x1xf32>
    %69 = vector.broadcast %68 : vector<8x1xf32> to vector<8x8xf32>
    %70 = arith.subf %66, %69 : vector<8x8xf32>
    %71 = math.exp %70 : vector<8x8xf32>
    %cst_27 = arith.constant dense<0.000000e+00> : vector<8xf32>
    %72 = vector.multi_reduction <add>, %71, %cst_27 [1] : vector<8x8xf32> to vector<8xf32>
    %73 = vector.shape_cast %72 : vector<8xf32> to vector<8x1xf32>
    %74 = tpu.reciprocal %73 {approx = true} : vector<8x1xf32> -> vector<8x1xf32>
    %75 = vector.broadcast %74 : vector<8x1xf32> to vector<8x8xf32>
    %76 = arith.mulf %71, %75 : vector<8x8xf32>
    %77 = arith.truncf %76 : vector<8x8xf32> to vector<8x8xbf16>
    %cst_28 = arith.constant dense<0.000000e+00> : vector<8x16xf32>
    %78 = tpu.matmul %77, %65, %cst_28 {dimension_numbers = #tpu.dot_dimension_numbers<[1], [0], [0], [1], [0, 0, 1, 1], [], []>} : vector<8x8xbf16>, vector<8x16xbf16>, vector<8x16xf32> -> vector<8x16xf32>
    %79 = arith.truncf %78 : vector<8x16xf32> to vector<8x16xbf16>
    %c0_29 = arith.constant 0 : index
    %c2 = arith.constant 2 : index
    %c0_30 = arith.constant 0 : index
    %c0_31 = arith.constant 0 : index
    %80 = vector.load %arg4[%c0_29, %c2, %c0_30, %c0_31] : memref<2x8x16x128xbf16, #tpu.memory_space<vmem>>, vector<1x1x16x128xbf16>
    %81 = vector.shape_cast %80 : vector<1x1x16x128xbf16> to vector<16x128xbf16>
    %cst_32 = arith.constant dense<0.000000e+00> : vector<8x128xf32>
    %82 = tpu.matmul %79, %81, %cst_32 {dimension_numbers = #tpu.dot_dimension_numbers<[1], [0], [0], [1], [0, 0, 1, 1], [], []>} : vector<8x16xbf16>, vector<16x128xbf16>, vector<8x128xf32> -> vector<8x128xf32>
    %83 = arith.addf %59, %82 : vector<8x128xf32>
    %84 = vector.extract_strided_slice %10 {offsets = [0, 48], sizes = [8, 16], strides = [1, 1]} : vector<8x128xf32> to vector<8x16xf32>
    %85 = arith.truncf %84 : vector<8x16xf32> to vector<8x16xbf16>
    %86 = vector.extract_strided_slice %11 {offsets = [0, 48], sizes = [8, 16], strides = [1, 1]} : vector<8x128xf32> to vector<8x16xf32>
    %87 = arith.truncf %86 : vector<8x16xf32> to vector<8x16xbf16>
    %88 = vector.extract_strided_slice %12 {offsets = [0, 48], sizes = [8, 16], strides = [1, 1]} : vector<8x128xf32> to vector<8x16xf32>
    %89 = arith.truncf %88 : vector<8x16xf32> to vector<8x16xbf16>
    %cst_33 = arith.constant dense<0.000000e+00> : vector<8x8xf32>
    %90 = tpu.matmul %85, %87, %cst_33 {dimension_numbers = #tpu.dot_dimension_numbers<[1], [1], [0], [0], [0, 0, 1, 0], [], []>} : vector<8x16xbf16>, vector<8x16xbf16>, vector<8x8xf32> -> vector<8x8xf32>
    %cst_34 = arith.constant dense<0xFF800000> : vector<8xf32>
    %91 = vector.multi_reduction <maximumf>, %90, %cst_34 [1] : vector<8x8xf32> to vector<8xf32>
    %92 = vector.shape_cast %91 : vector<8xf32> to vector<8x1xf32>
    %93 = vector.broadcast %92 : vector<8x1xf32> to vector<8x8xf32>
    %94 = arith.subf %90, %93 : vector<8x8xf32>
    %95 = math.exp %94 : vector<8x8xf32>
    %cst_35 = arith.constant dense<0.000000e+00> : vector<8xf32>
    %96 = vector.multi_reduction <add>, %95, %cst_35 [1] : vector<8x8xf32> to vector<8xf32>
    %97 = vector.shape_cast %96 : vector<8xf32> to vector<8x1xf32>
    %98 = tpu.reciprocal %97 {approx = true} : vector<8x1xf32> -> vector<8x1xf32>
    %99 = vector.broadcast %98 : vector<8x1xf32> to vector<8x8xf32>
    %100 = arith.mulf %95, %99 : vector<8x8xf32>
    %101 = arith.truncf %100 : vector<8x8xf32> to vector<8x8xbf16>
    %cst_36 = arith.constant dense<0.000000e+00> : vector<8x16xf32>
    %102 = tpu.matmul %101, %89, %cst_36 {dimension_numbers = #tpu.dot_dimension_numbers<[1], [0], [0], [1], [0, 0, 1, 1], [], []>} : vector<8x8xbf16>, vector<8x16xbf16>, vector<8x16xf32> -> vector<8x16xf32>
    %103 = arith.truncf %102 : vector<8x16xf32> to vector<8x16xbf16>
    %c0_37 = arith.constant 0 : index
    %c3 = arith.constant 3 : index
    %c0_38 = arith.constant 0 : index
    %c0_39 = arith.constant 0 : index
    %104 = vector.load %arg4[%c0_37, %c3, %c0_38, %c0_39] : memref<2x8x16x128xbf16, #tpu.memory_space<vmem>>, vector<1x1x16x128xbf16>
    %105 = vector.shape_cast %104 : vector<1x1x16x128xbf16> to vector<16x128xbf16>
    %cst_40 = arith.constant dense<0.000000e+00> : vector<8x128xf32>
    %106 = tpu.matmul %103, %105, %cst_40 {dimension_numbers = #tpu.dot_dimension_numbers<[1], [0], [0], [1], [0, 0, 1, 1], [], []>} : vector<8x16xbf16>, vector<16x128xbf16>, vector<8x128xf32> -> vector<8x128xf32>
    %107 = arith.addf %83, %106 : vector<8x128xf32>
    %108 = vector.extract_strided_slice %10 {offsets = [0, 64], sizes = [8, 16], strides = [1, 1]} : vector<8x128xf32> to vector<8x16xf32>
    %109 = arith.truncf %108 : vector<8x16xf32> to vector<8x16xbf16>
    %110 = vector.extract_strided_slice %11 {offsets = [0, 64], sizes = [8, 16], strides = [1, 1]} : vector<8x128xf32> to vector<8x16xf32>
    %111 = arith.truncf %110 : vector<8x16xf32> to vector<8x16xbf16>
    %112 = vector.extract_strided_slice %12 {offsets = [0, 64], sizes = [8, 16], strides = [1, 1]} : vector<8x128xf32> to vector<8x16xf32>
    %113 = arith.truncf %112 : vector<8x16xf32> to vector<8x16xbf16>
    %cst_41 = arith.constant dense<0.000000e+00> : vector<8x8xf32>
    %114 = tpu.matmul %109, %111, %cst_41 {dimension_numbers = #tpu.dot_dimension_numbers<[1], [1], [0], [0], [0, 0, 1, 0], [], []>} : vector<8x16xbf16>, vector<8x16xbf16>, vector<8x8xf32> -> vector<8x8xf32>
    %cst_42 = arith.constant dense<0xFF800000> : vector<8xf32>
    %115 = vector.multi_reduction <maximumf>, %114, %cst_42 [1] : vector<8x8xf32> to vector<8xf32>
    %116 = vector.shape_cast %115 : vector<8xf32> to vector<8x1xf32>
    %117 = vector.broadcast %116 : vector<8x1xf32> to vector<8x8xf32>
    %118 = arith.subf %114, %117 : vector<8x8xf32>
    %119 = math.exp %118 : vector<8x8xf32>
    %cst_43 = arith.constant dense<0.000000e+00> : vector<8xf32>
    %120 = vector.multi_reduction <add>, %119, %cst_43 [1] : vector<8x8xf32> to vector<8xf32>
    %121 = vector.shape_cast %120 : vector<8xf32> to vector<8x1xf32>
    %122 = tpu.reciprocal %121 {approx = true} : vector<8x1xf32> -> vector<8x1xf32>
    %123 = vector.broadcast %122 : vector<8x1xf32> to vector<8x8xf32>
    %124 = arith.mulf %119, %123 : vector<8x8xf32>
    %125 = arith.truncf %124 : vector<8x8xf32> to vector<8x8xbf16>
    %cst_44 = arith.constant dense<0.000000e+00> : vector<8x16xf32>
    %126 = tpu.matmul %125, %113, %cst_44 {dimension_numbers = #tpu.dot_dimension_numbers<[1], [0], [0], [1], [0, 0, 1, 1], [], []>} : vector<8x8xbf16>, vector<8x16xbf16>, vector<8x16xf32> -> vector<8x16xf32>
    %127 = arith.truncf %126 : vector<8x16xf32> to vector<8x16xbf16>
    %c0_45 = arith.constant 0 : index
    %c4 = arith.constant 4 : index
    %c0_46 = arith.constant 0 : index
    %c0_47 = arith.constant 0 : index
    %128 = vector.load %arg4[%c0_45, %c4, %c0_46, %c0_47] : memref<2x8x16x128xbf16, #tpu.memory_space<vmem>>, vector<1x1x16x128xbf16>
    %129 = vector.shape_cast %128 : vector<1x1x16x128xbf16> to vector<16x128xbf16>
    %cst_48 = arith.constant dense<0.000000e+00> : vector<8x128xf32>
    %130 = tpu.matmul %127, %129, %cst_48 {dimension_numbers = #tpu.dot_dimension_numbers<[1], [0], [0], [1], [0, 0, 1, 1], [], []>} : vector<8x16xbf16>, vector<16x128xbf16>, vector<8x128xf32> -> vector<8x128xf32>
    %131 = arith.addf %107, %130 : vector<8x128xf32>
    %132 = vector.extract_strided_slice %10 {offsets = [0, 80], sizes = [8, 16], strides = [1, 1]} : vector<8x128xf32> to vector<8x16xf32>
    %133 = arith.truncf %132 : vector<8x16xf32> to vector<8x16xbf16>
    %134 = vector.extract_strided_slice %11 {offsets = [0, 80], sizes = [8, 16], strides = [1, 1]} : vector<8x128xf32> to vector<8x16xf32>
    %135 = arith.truncf %134 : vector<8x16xf32> to vector<8x16xbf16>
    %136 = vector.extract_strided_slice %12 {offsets = [0, 80], sizes = [8, 16], strides = [1, 1]} : vector<8x128xf32> to vector<8x16xf32>
    %137 = arith.truncf %136 : vector<8x16xf32> to vector<8x16xbf16>
    %cst_49 = arith.constant dense<0.000000e+00> : vector<8x8xf32>
    %138 = tpu.matmul %133, %135, %cst_49 {dimension_numbers = #tpu.dot_dimension_numbers<[1], [1], [0], [0], [0, 0, 1, 0], [], []>} : vector<8x16xbf16>, vector<8x16xbf16>, vector<8x8xf32> -> vector<8x8xf32>
    %cst_50 = arith.constant dense<0xFF800000> : vector<8xf32>
    %139 = vector.multi_reduction <maximumf>, %138, %cst_50 [1] : vector<8x8xf32> to vector<8xf32>
    %140 = vector.shape_cast %139 : vector<8xf32> to vector<8x1xf32>
    %141 = vector.broadcast %140 : vector<8x1xf32> to vector<8x8xf32>
    %142 = arith.subf %138, %141 : vector<8x8xf32>
    %143 = math.exp %142 : vector<8x8xf32>
    %cst_51 = arith.constant dense<0.000000e+00> : vector<8xf32>
    %144 = vector.multi_reduction <add>, %143, %cst_51 [1] : vector<8x8xf32> to vector<8xf32>
    %145 = vector.shape_cast %144 : vector<8xf32> to vector<8x1xf32>
    %146 = tpu.reciprocal %145 {approx = true} : vector<8x1xf32> -> vector<8x1xf32>
    %147 = vector.broadcast %146 : vector<8x1xf32> to vector<8x8xf32>
    %148 = arith.mulf %143, %147 : vector<8x8xf32>
    %149 = arith.truncf %148 : vector<8x8xf32> to vector<8x8xbf16>
    %cst_52 = arith.constant dense<0.000000e+00> : vector<8x16xf32>
    %150 = tpu.matmul %149, %137, %cst_52 {dimension_numbers = #tpu.dot_dimension_numbers<[1], [0], [0], [1], [0, 0, 1, 1], [], []>} : vector<8x8xbf16>, vector<8x16xbf16>, vector<8x16xf32> -> vector<8x16xf32>
    %151 = arith.truncf %150 : vector<8x16xf32> to vector<8x16xbf16>
    %c0_53 = arith.constant 0 : index
    %c5 = arith.constant 5 : index
    %c0_54 = arith.constant 0 : index
    %c0_55 = arith.constant 0 : index
    %152 = vector.load %arg4[%c0_53, %c5, %c0_54, %c0_55] : memref<2x8x16x128xbf16, #tpu.memory_space<vmem>>, vector<1x1x16x128xbf16>
    %153 = vector.shape_cast %152 : vector<1x1x16x128xbf16> to vector<16x128xbf16>
    %cst_56 = arith.constant dense<0.000000e+00> : vector<8x128xf32>
    %154 = tpu.matmul %151, %153, %cst_56 {dimension_numbers = #tpu.dot_dimension_numbers<[1], [0], [0], [1], [0, 0, 1, 1], [], []>} : vector<8x16xbf16>, vector<16x128xbf16>, vector<8x128xf32> -> vector<8x128xf32>
    %155 = arith.addf %131, %154 : vector<8x128xf32>
    %156 = vector.extract_strided_slice %10 {offsets = [0, 96], sizes = [8, 16], strides = [1, 1]} : vector<8x128xf32> to vector<8x16xf32>
    %157 = arith.truncf %156 : vector<8x16xf32> to vector<8x16xbf16>
    %158 = vector.extract_strided_slice %11 {offsets = [0, 96], sizes = [8, 16], strides = [1, 1]} : vector<8x128xf32> to vector<8x16xf32>
    %159 = arith.truncf %158 : vector<8x16xf32> to vector<8x16xbf16>
    %160 = vector.extract_strided_slice %12 {offsets = [0, 96], sizes = [8, 16], strides = [1, 1]} : vector<8x128xf32> to vector<8x16xf32>
    %161 = arith.truncf %160 : vector<8x16xf32> to vector<8x16xbf16>
    %cst_57 = arith.constant dense<0.000000e+00> : vector<8x8xf32>
    %162 = tpu.matmul %157, %159, %cst_57 {dimension_numbers = #tpu.dot_dimension_numbers<[1], [1], [0], [0], [0, 0, 1, 0], [], []>} : vector<8x16xbf16>, vector<8x16xbf16>, vector<8x8xf32> -> vector<8x8xf32>
    %cst_58 = arith.constant dense<0xFF800000> : vector<8xf32>
    %163 = vector.multi_reduction <maximumf>, %162, %cst_58 [1] : vector<8x8xf32> to vector<8xf32>
    %164 = vector.shape_cast %163 : vector<8xf32> to vector<8x1xf32>
    %165 = vector.broadcast %164 : vector<8x1xf32> to vector<8x8xf32>
    %166 = arith.subf %162, %165 : vector<8x8xf32>
    %167 = math.exp %166 : vector<8x8xf32>
    %cst_59 = arith.constant dense<0.000000e+00> : vector<8xf32>
    %168 = vector.multi_reduction <add>, %167, %cst_59 [1] : vector<8x8xf32> to vector<8xf32>
    %169 = vector.shape_cast %168 : vector<8xf32> to vector<8x1xf32>
    %170 = tpu.reciprocal %169 {approx = true} : vector<8x1xf32> -> vector<8x1xf32>
    %171 = vector.broadcast %170 : vector<8x1xf32> to vector<8x8xf32>
    %172 = arith.mulf %167, %171 : vector<8x8xf32>
    %173 = arith.truncf %172 : vector<8x8xf32> to vector<8x8xbf16>
    %cst_60 = arith.constant dense<0.000000e+00> : vector<8x16xf32>
    %174 = tpu.matmul %173, %161, %cst_60 {dimension_numbers = #tpu.dot_dimension_numbers<[1], [0], [0], [1], [0, 0, 1, 1], [], []>} : vector<8x8xbf16>, vector<8x16xbf16>, vector<8x16xf32> -> vector<8x16xf32>
    %175 = arith.truncf %174 : vector<8x16xf32> to vector<8x16xbf16>
    %c0_61 = arith.constant 0 : index
    %c6 = arith.constant 6 : index
    %c0_62 = arith.constant 0 : index
    %c0_63 = arith.constant 0 : index
    %176 = vector.load %arg4[%c0_61, %c6, %c0_62, %c0_63] : memref<2x8x16x128xbf16, #tpu.memory_space<vmem>>, vector<1x1x16x128xbf16>
    %177 = vector.shape_cast %176 : vector<1x1x16x128xbf16> to vector<16x128xbf16>
    %cst_64 = arith.constant dense<0.000000e+00> : vector<8x128xf32>
    %178 = tpu.matmul %175, %177, %cst_64 {dimension_numbers = #tpu.dot_dimension_numbers<[1], [0], [0], [1], [0, 0, 1, 1], [], []>} : vector<8x16xbf16>, vector<16x128xbf16>, vector<8x128xf32> -> vector<8x128xf32>
    %179 = arith.addf %155, %178 : vector<8x128xf32>
    %180 = vector.extract_strided_slice %10 {offsets = [0, 112], sizes = [8, 16], strides = [1, 1]} : vector<8x128xf32> to vector<8x16xf32>
    %181 = arith.truncf %180 : vector<8x16xf32> to vector<8x16xbf16>
    %182 = vector.extract_strided_slice %11 {offsets = [0, 112], sizes = [8, 16], strides = [1, 1]} : vector<8x128xf32> to vector<8x16xf32>
    %183 = arith.truncf %182 : vector<8x16xf32> to vector<8x16xbf16>
    %184 = vector.extract_strided_slice %12 {offsets = [0, 112], sizes = [8, 16], strides = [1, 1]} : vector<8x128xf32> to vector<8x16xf32>
    %185 = arith.truncf %184 : vector<8x16xf32> to vector<8x16xbf16>
    %cst_65 = arith.constant dense<0.000000e+00> : vector<8x8xf32>
    %186 = tpu.matmul %181, %183, %cst_65 {dimension_numbers = #tpu.dot_dimension_numbers<[1], [1], [0], [0], [0, 0, 1, 0], [], []>} : vector<8x16xbf16>, vector<8x16xbf16>, vector<8x8xf32> -> vector<8x8xf32>
    %cst_66 = arith.constant dense<0xFF800000> : vector<8xf32>
    %187 = vector.multi_reduction <maximumf>, %186, %cst_66 [1] : vector<8x8xf32> to vector<8xf32>
    %188 = vector.shape_cast %187 : vector<8xf32> to vector<8x1xf32>
    %189 = vector.broadcast %188 : vector<8x1xf32> to vector<8x8xf32>
    %190 = arith.subf %186, %189 : vector<8x8xf32>
    %191 = math.exp %190 : vector<8x8xf32>
    %cst_67 = arith.constant dense<0.000000e+00> : vector<8xf32>
    %192 = vector.multi_reduction <add>, %191, %cst_67 [1] : vector<8x8xf32> to vector<8xf32>
    %193 = vector.shape_cast %192 : vector<8xf32> to vector<8x1xf32>
    %194 = tpu.reciprocal %193 {approx = true} : vector<8x1xf32> -> vector<8x1xf32>
    %195 = vector.broadcast %194 : vector<8x1xf32> to vector<8x8xf32>
    %196 = arith.mulf %191, %195 : vector<8x8xf32>
    %197 = arith.truncf %196 : vector<8x8xf32> to vector<8x8xbf16>
    %cst_68 = arith.constant dense<0.000000e+00> : vector<8x16xf32>
    %198 = tpu.matmul %197, %185, %cst_68 {dimension_numbers = #tpu.dot_dimension_numbers<[1], [0], [0], [1], [0, 0, 1, 1], [], []>} : vector<8x8xbf16>, vector<8x16xbf16>, vector<8x16xf32> -> vector<8x16xf32>
    %199 = arith.truncf %198 : vector<8x16xf32> to vector<8x16xbf16>
    %c0_69 = arith.constant 0 : index
    %c7 = arith.constant 7 : index
    %c0_70 = arith.constant 0 : index
    %c0_71 = arith.constant 0 : index
    %200 = vector.load %arg4[%c0_69, %c7, %c0_70, %c0_71] : memref<2x8x16x128xbf16, #tpu.memory_space<vmem>>, vector<1x1x16x128xbf16>
    %201 = vector.shape_cast %200 : vector<1x1x16x128xbf16> to vector<16x128xbf16>
    %cst_72 = arith.constant dense<0.000000e+00> : vector<8x128xf32>
    %202 = tpu.matmul %199, %201, %cst_72 {dimension_numbers = #tpu.dot_dimension_numbers<[1], [0], [0], [1], [0, 0, 1, 1], [], []>} : vector<8x16xbf16>, vector<16x128xbf16>, vector<8x128xf32> -> vector<8x128xf32>
    %203 = arith.addf %179, %202 : vector<8x128xf32>
    %c0_73 = arith.constant 0 : index
    %c0_74 = arith.constant 0 : index
    %c0_75 = arith.constant 0 : index
    %204 = vector.load %arg5[%c0_73, %c0_74, %c0_75] : memref<2x1x128xf32, #tpu.memory_space<vmem>>, vector<1x1x128xf32>
    %205 = vector.shape_cast %204 : vector<1x1x128xf32> to vector<1x128xf32>
    %206 = vector.broadcast %205 : vector<1x128xf32> to vector<8x128xf32>
    %207 = arith.addf %203, %206 : vector<8x128xf32>
    %208 = arith.addf %207, %1 : vector<8x128xf32>
    %c0_76 = arith.constant 0 : index
    %c0_77 = arith.constant 0 : index
    %c0_78 = arith.constant 0 : index
    %209 = vector.load %arg6[%c0_76, %c0_77, %c0_78] : memref<2x1x128xf32, #tpu.memory_space<vmem>>, vector<1x1x128xf32>
    %210 = vector.shape_cast %209 : vector<1x1x128xf32> to vector<1x128xf32>
    %c0_79 = arith.constant 0 : index
    %c0_80 = arith.constant 0 : index
    %c0_81 = arith.constant 0 : index
    %211 = vector.load %arg7[%c0_79, %c0_80, %c0_81] : memref<2x1x128xf32, #tpu.memory_space<vmem>>, vector<1x1x128xf32>
    %212 = vector.shape_cast %211 : vector<1x1x128xf32> to vector<1x128xf32>
    %cst_82 = arith.constant dense<0.000000e+00> : vector<8xf32>
    %213 = vector.multi_reduction <add>, %208, %cst_82 [1] : vector<8x128xf32> to vector<8xf32>
    %214 = vector.shape_cast %213 : vector<8xf32> to vector<8x1xf32>
    %215 = arith.mulf %208, %208 : vector<8x128xf32>
    %cst_83 = arith.constant dense<0.000000e+00> : vector<8xf32>
    %216 = vector.multi_reduction <add>, %215, %cst_83 [1] : vector<8x128xf32> to vector<8xf32>
    %217 = vector.shape_cast %216 : vector<8xf32> to vector<8x1xf32>
    %cst_84 = arith.constant 7.812500e-03 : f32
    %218 = vector.broadcast %cst_84 : f32 to vector<8x1xf32>
    %219 = arith.mulf %214, %218 : vector<8x1xf32>
    %cst_85 = arith.constant 7.812500e-03 : f32
    %220 = vector.broadcast %cst_85 : f32 to vector<8x1xf32>
    %221 = arith.mulf %217, %220 : vector<8x1xf32>
    %222 = arith.mulf %219, %219 : vector<8x1xf32>
    %223 = arith.subf %221, %222 : vector<8x1xf32>
    %224 = vector.broadcast %219 : vector<8x1xf32> to vector<8x128xf32>
    %225 = arith.subf %208, %224 : vector<8x128xf32>
    %cst_86 = arith.constant 9.99999974E-6 : f32
    %226 = vector.broadcast %cst_86 : f32 to vector<8x1xf32>
    %227 = arith.addf %223, %226 : vector<8x1xf32>
    %228 = math.rsqrt %227 : vector<8x1xf32>
    %229 = vector.broadcast %228 : vector<8x1xf32> to vector<8x128xf32>
    %230 = arith.mulf %225, %229 : vector<8x128xf32>
    %231 = vector.broadcast %210 : vector<1x128xf32> to vector<8x128xf32>
    %232 = arith.mulf %230, %231 : vector<8x128xf32>
    %233 = vector.broadcast %212 : vector<1x128xf32> to vector<8x128xf32>
    %234 = arith.addf %232, %233 : vector<8x128xf32>
    %235 = arith.truncf %234 : vector<8x128xf32> to vector<8x128xbf16>
    %c0_87 = arith.constant 0 : index
    %c0_88 = arith.constant 0 : index
    %c0_89 = arith.constant 0 : index
    %236 = vector.load %arg8[%c0_87, %c0_88, %c0_89] : memref<2x128x512xbf16, #tpu.memory_space<vmem>>, vector<1x128x512xbf16>
    %237 = vector.shape_cast %236 : vector<1x128x512xbf16> to vector<128x512xbf16>
    %cst_90 = arith.constant dense<0.000000e+00> : vector<8x512xf32>
    %238 = tpu.matmul %235, %237, %cst_90 {dimension_numbers = #tpu.dot_dimension_numbers<[1], [0], [0], [1], [0, 0, 1, 1], [], []>} : vector<8x128xbf16>, vector<128x512xbf16>, vector<8x512xf32> -> vector<8x512xf32>
    %c0_91 = arith.constant 0 : index
    %c0_92 = arith.constant 0 : index
    %c0_93 = arith.constant 0 : index
    %239 = vector.load %arg9[%c0_91, %c0_92, %c0_93] : memref<2x1x512xf32, #tpu.memory_space<vmem>>, vector<1x1x512xf32>
    %240 = vector.shape_cast %239 : vector<1x1x512xf32> to vector<1x512xf32>
    %241 = vector.broadcast %240 : vector<1x512xf32> to vector<8x512xf32>
    %242 = arith.addf %238, %241 : vector<8x512xf32>
    %cst_94 = arith.constant 0.000000e+00 : f32
    %243 = vector.broadcast %cst_94 : f32 to vector<8x512xf32>
    %244 = arith.maximumf %242, %243 : vector<8x512xf32>
    %245 = arith.truncf %244 : vector<8x512xf32> to vector<8x512xbf16>
    %c0_95 = arith.constant 0 : index
    %c0_96 = arith.constant 0 : index
    %c0_97 = arith.constant 0 : index
    %246 = vector.load %arg10[%c0_95, %c0_96, %c0_97] : memref<2x512x128xbf16, #tpu.memory_space<vmem>>, vector<1x512x128xbf16>
    %247 = vector.shape_cast %246 : vector<1x512x128xbf16> to vector<512x128xbf16>
    %cst_98 = arith.constant dense<0.000000e+00> : vector<8x128xf32>
    %248 = tpu.matmul %245, %247, %cst_98 {dimension_numbers = #tpu.dot_dimension_numbers<[1], [0], [0], [1], [0, 0, 1, 1], [], []>} : vector<8x512xbf16>, vector<512x128xbf16>, vector<8x128xf32> -> vector<8x128xf32>
    %c0_99 = arith.constant 0 : index
    %c0_100 = arith.constant 0 : index
    %c0_101 = arith.constant 0 : index
    %249 = vector.load %arg11[%c0_99, %c0_100, %c0_101] : memref<2x1x128xf32, #tpu.memory_space<vmem>>, vector<1x1x128xf32>
    %250 = vector.shape_cast %249 : vector<1x1x128xf32> to vector<1x128xf32>
    %251 = vector.broadcast %250 : vector<1x128xf32> to vector<8x128xf32>
    %252 = arith.addf %248, %251 : vector<8x128xf32>
    %253 = arith.addf %252, %234 : vector<8x128xf32>
    %c0_102 = arith.constant 0 : index
    %c0_103 = arith.constant 0 : index
    %c0_104 = arith.constant 0 : index
    %254 = vector.load %arg12[%c0_102, %c0_103, %c0_104] : memref<2x1x128xf32, #tpu.memory_space<vmem>>, vector<1x1x128xf32>
    %255 = vector.shape_cast %254 : vector<1x1x128xf32> to vector<1x128xf32>
    %c0_105 = arith.constant 0 : index
    %c0_106 = arith.constant 0 : index
    %c0_107 = arith.constant 0 : index
    %256 = vector.load %arg13[%c0_105, %c0_106, %c0_107] : memref<2x1x128xf32, #tpu.memory_space<vmem>>, vector<1x1x128xf32>
    %257 = vector.shape_cast %256 : vector<1x1x128xf32> to vector<1x128xf32>
    %cst_108 = arith.constant dense<0.000000e+00> : vector<8xf32>
    %258 = vector.multi_reduction <add>, %253, %cst_108 [1] : vector<8x128xf32> to vector<8xf32>
    %259 = vector.shape_cast %258 : vector<8xf32> to vector<8x1xf32>
    %260 = arith.mulf %253, %253 : vector<8x128xf32>
    %cst_109 = arith.constant dense<0.000000e+00> : vector<8xf32>
    %261 = vector.multi_reduction <add>, %260, %cst_109 [1] : vector<8x128xf32> to vector<8xf32>
    %262 = vector.shape_cast %261 : vector<8xf32> to vector<8x1xf32>
    %cst_110 = arith.constant 7.812500e-03 : f32
    %263 = vector.broadcast %cst_110 : f32 to vector<8x1xf32>
    %264 = arith.mulf %259, %263 : vector<8x1xf32>
    %cst_111 = arith.constant 7.812500e-03 : f32
    %265 = vector.broadcast %cst_111 : f32 to vector<8x1xf32>
    %266 = arith.mulf %262, %265 : vector<8x1xf32>
    %267 = arith.mulf %264, %264 : vector<8x1xf32>
    %268 = arith.subf %266, %267 : vector<8x1xf32>
    %269 = vector.broadcast %264 : vector<8x1xf32> to vector<8x128xf32>
    %270 = arith.subf %253, %269 : vector<8x128xf32>
    %cst_112 = arith.constant 9.99999974E-6 : f32
    %271 = vector.broadcast %cst_112 : f32 to vector<8x1xf32>
    %272 = arith.addf %268, %271 : vector<8x1xf32>
    %273 = math.rsqrt %272 : vector<8x1xf32>
    %274 = vector.broadcast %273 : vector<8x1xf32> to vector<8x128xf32>
    %275 = arith.mulf %270, %274 : vector<8x128xf32>
    %276 = vector.broadcast %255 : vector<1x128xf32> to vector<8x128xf32>
    %277 = arith.mulf %275, %276 : vector<8x128xf32>
    %278 = vector.broadcast %257 : vector<1x128xf32> to vector<8x128xf32>
    %279 = arith.addf %277, %278 : vector<8x128xf32>
    %280 = arith.truncf %279 : vector<8x128xf32> to vector<8x128xbf16>
    %c1_113 = arith.constant 1 : index
    %c0_114 = arith.constant 0 : index
    %c0_115 = arith.constant 0 : index
    %281 = vector.load %arg2[%c1_113, %c0_114, %c0_115] : memref<2x128x384xbf16, #tpu.memory_space<vmem>>, vector<1x128x384xbf16>
    %282 = vector.shape_cast %281 : vector<1x128x384xbf16> to vector<128x384xbf16>
    %cst_116 = arith.constant dense<0.000000e+00> : vector<8x384xf32>
    %283 = tpu.matmul %280, %282, %cst_116 {dimension_numbers = #tpu.dot_dimension_numbers<[1], [0], [0], [1], [0, 0, 1, 1], [], []>} : vector<8x128xbf16>, vector<128x384xbf16>, vector<8x384xf32> -> vector<8x384xf32>
    %c1_117 = arith.constant 1 : index
    %c0_118 = arith.constant 0 : index
    %c0_119 = arith.constant 0 : index
    %284 = vector.load %arg3[%c1_117, %c0_118, %c0_119] : memref<2x1x384xf32, #tpu.memory_space<vmem>>, vector<1x1x384xf32>
    %285 = vector.shape_cast %284 : vector<1x1x384xf32> to vector<1x384xf32>
    %286 = vector.broadcast %285 : vector<1x384xf32> to vector<8x384xf32>
    %287 = arith.addf %283, %286 : vector<8x384xf32>
    %288 = vector.extract_strided_slice %287 {offsets = [0, 0], sizes = [8, 128], strides = [1, 1]} : vector<8x384xf32> to vector<8x128xf32>
    %289 = vector.extract_strided_slice %287 {offsets = [0, 128], sizes = [8, 128], strides = [1, 1]} : vector<8x384xf32> to vector<8x128xf32>
    %290 = vector.extract_strided_slice %287 {offsets = [0, 256], sizes = [8, 128], strides = [1, 1]} : vector<8x384xf32> to vector<8x128xf32>
    %291 = vector.extract_strided_slice %288 {offsets = [0, 0], sizes = [8, 16], strides = [1, 1]} : vector<8x128xf32> to vector<8x16xf32>
    %292 = arith.truncf %291 : vector<8x16xf32> to vector<8x16xbf16>
    %293 = vector.extract_strided_slice %289 {offsets = [0, 0], sizes = [8, 16], strides = [1, 1]} : vector<8x128xf32> to vector<8x16xf32>
    %294 = arith.truncf %293 : vector<8x16xf32> to vector<8x16xbf16>
    %295 = vector.extract_strided_slice %290 {offsets = [0, 0], sizes = [8, 16], strides = [1, 1]} : vector<8x128xf32> to vector<8x16xf32>
    %296 = arith.truncf %295 : vector<8x16xf32> to vector<8x16xbf16>
    %cst_120 = arith.constant dense<0.000000e+00> : vector<8x8xf32>
    %297 = tpu.matmul %292, %294, %cst_120 {dimension_numbers = #tpu.dot_dimension_numbers<[1], [1], [0], [0], [0, 0, 1, 0], [], []>} : vector<8x16xbf16>, vector<8x16xbf16>, vector<8x8xf32> -> vector<8x8xf32>
    %cst_121 = arith.constant dense<0xFF800000> : vector<8xf32>
    %298 = vector.multi_reduction <maximumf>, %297, %cst_121 [1] : vector<8x8xf32> to vector<8xf32>
    %299 = vector.shape_cast %298 : vector<8xf32> to vector<8x1xf32>
    %300 = vector.broadcast %299 : vector<8x1xf32> to vector<8x8xf32>
    %301 = arith.subf %297, %300 : vector<8x8xf32>
    %302 = math.exp %301 : vector<8x8xf32>
    %cst_122 = arith.constant dense<0.000000e+00> : vector<8xf32>
    %303 = vector.multi_reduction <add>, %302, %cst_122 [1] : vector<8x8xf32> to vector<8xf32>
    %304 = vector.shape_cast %303 : vector<8xf32> to vector<8x1xf32>
    %305 = tpu.reciprocal %304 {approx = true} : vector<8x1xf32> -> vector<8x1xf32>
    %306 = vector.broadcast %305 : vector<8x1xf32> to vector<8x8xf32>
    %307 = arith.mulf %302, %306 : vector<8x8xf32>
    %308 = arith.truncf %307 : vector<8x8xf32> to vector<8x8xbf16>
    %cst_123 = arith.constant dense<0.000000e+00> : vector<8x16xf32>
    %309 = tpu.matmul %308, %296, %cst_123 {dimension_numbers = #tpu.dot_dimension_numbers<[1], [0], [0], [1], [0, 0, 1, 1], [], []>} : vector<8x8xbf16>, vector<8x16xbf16>, vector<8x16xf32> -> vector<8x16xf32>
    %310 = arith.truncf %309 : vector<8x16xf32> to vector<8x16xbf16>
    %c1_124 = arith.constant 1 : index
    %c0_125 = arith.constant 0 : index
    %c0_126 = arith.constant 0 : index
    %c0_127 = arith.constant 0 : index
    %311 = vector.load %arg4[%c1_124, %c0_125, %c0_126, %c0_127] : memref<2x8x16x128xbf16, #tpu.memory_space<vmem>>, vector<1x1x16x128xbf16>
    %312 = vector.shape_cast %311 : vector<1x1x16x128xbf16> to vector<16x128xbf16>
    %cst_128 = arith.constant dense<0.000000e+00> : vector<8x128xf32>
    %313 = tpu.matmul %310, %312, %cst_128 {dimension_numbers = #tpu.dot_dimension_numbers<[1], [0], [0], [1], [0, 0, 1, 1], [], []>} : vector<8x16xbf16>, vector<16x128xbf16>, vector<8x128xf32> -> vector<8x128xf32>
    %314 = vector.extract_strided_slice %288 {offsets = [0, 16], sizes = [8, 16], strides = [1, 1]} : vector<8x128xf32> to vector<8x16xf32>
    %315 = arith.truncf %314 : vector<8x16xf32> to vector<8x16xbf16>
    %316 = vector.extract_strided_slice %289 {offsets = [0, 16], sizes = [8, 16], strides = [1, 1]} : vector<8x128xf32> to vector<8x16xf32>
    %317 = arith.truncf %316 : vector<8x16xf32> to vector<8x16xbf16>
    %318 = vector.extract_strided_slice %290 {offsets = [0, 16], sizes = [8, 16], strides = [1, 1]} : vector<8x128xf32> to vector<8x16xf32>
    %319 = arith.truncf %318 : vector<8x16xf32> to vector<8x16xbf16>
    %cst_129 = arith.constant dense<0.000000e+00> : vector<8x8xf32>
    %320 = tpu.matmul %315, %317, %cst_129 {dimension_numbers = #tpu.dot_dimension_numbers<[1], [1], [0], [0], [0, 0, 1, 0], [], []>} : vector<8x16xbf16>, vector<8x16xbf16>, vector<8x8xf32> -> vector<8x8xf32>
    %cst_130 = arith.constant dense<0xFF800000> : vector<8xf32>
    %321 = vector.multi_reduction <maximumf>, %320, %cst_130 [1] : vector<8x8xf32> to vector<8xf32>
    %322 = vector.shape_cast %321 : vector<8xf32> to vector<8x1xf32>
    %323 = vector.broadcast %322 : vector<8x1xf32> to vector<8x8xf32>
    %324 = arith.subf %320, %323 : vector<8x8xf32>
    %325 = math.exp %324 : vector<8x8xf32>
    %cst_131 = arith.constant dense<0.000000e+00> : vector<8xf32>
    %326 = vector.multi_reduction <add>, %325, %cst_131 [1] : vector<8x8xf32> to vector<8xf32>
    %327 = vector.shape_cast %326 : vector<8xf32> to vector<8x1xf32>
    %328 = tpu.reciprocal %327 {approx = true} : vector<8x1xf32> -> vector<8x1xf32>
    %329 = vector.broadcast %328 : vector<8x1xf32> to vector<8x8xf32>
    %330 = arith.mulf %325, %329 : vector<8x8xf32>
    %331 = arith.truncf %330 : vector<8x8xf32> to vector<8x8xbf16>
    %cst_132 = arith.constant dense<0.000000e+00> : vector<8x16xf32>
    %332 = tpu.matmul %331, %319, %cst_132 {dimension_numbers = #tpu.dot_dimension_numbers<[1], [0], [0], [1], [0, 0, 1, 1], [], []>} : vector<8x8xbf16>, vector<8x16xbf16>, vector<8x16xf32> -> vector<8x16xf32>
    %333 = arith.truncf %332 : vector<8x16xf32> to vector<8x16xbf16>
    %c1_133 = arith.constant 1 : index
    %c1_134 = arith.constant 1 : index
    %c0_135 = arith.constant 0 : index
    %c0_136 = arith.constant 0 : index
    %334 = vector.load %arg4[%c1_133, %c1_134, %c0_135, %c0_136] : memref<2x8x16x128xbf16, #tpu.memory_space<vmem>>, vector<1x1x16x128xbf16>
    %335 = vector.shape_cast %334 : vector<1x1x16x128xbf16> to vector<16x128xbf16>
    %cst_137 = arith.constant dense<0.000000e+00> : vector<8x128xf32>
    %336 = tpu.matmul %333, %335, %cst_137 {dimension_numbers = #tpu.dot_dimension_numbers<[1], [0], [0], [1], [0, 0, 1, 1], [], []>} : vector<8x16xbf16>, vector<16x128xbf16>, vector<8x128xf32> -> vector<8x128xf32>
    %337 = arith.addf %313, %336 : vector<8x128xf32>
    %338 = vector.extract_strided_slice %288 {offsets = [0, 32], sizes = [8, 16], strides = [1, 1]} : vector<8x128xf32> to vector<8x16xf32>
    %339 = arith.truncf %338 : vector<8x16xf32> to vector<8x16xbf16>
    %340 = vector.extract_strided_slice %289 {offsets = [0, 32], sizes = [8, 16], strides = [1, 1]} : vector<8x128xf32> to vector<8x16xf32>
    %341 = arith.truncf %340 : vector<8x16xf32> to vector<8x16xbf16>
    %342 = vector.extract_strided_slice %290 {offsets = [0, 32], sizes = [8, 16], strides = [1, 1]} : vector<8x128xf32> to vector<8x16xf32>
    %343 = arith.truncf %342 : vector<8x16xf32> to vector<8x16xbf16>
    %cst_138 = arith.constant dense<0.000000e+00> : vector<8x8xf32>
    %344 = tpu.matmul %339, %341, %cst_138 {dimension_numbers = #tpu.dot_dimension_numbers<[1], [1], [0], [0], [0, 0, 1, 0], [], []>} : vector<8x16xbf16>, vector<8x16xbf16>, vector<8x8xf32> -> vector<8x8xf32>
    %cst_139 = arith.constant dense<0xFF800000> : vector<8xf32>
    %345 = vector.multi_reduction <maximumf>, %344, %cst_139 [1] : vector<8x8xf32> to vector<8xf32>
    %346 = vector.shape_cast %345 : vector<8xf32> to vector<8x1xf32>
    %347 = vector.broadcast %346 : vector<8x1xf32> to vector<8x8xf32>
    %348 = arith.subf %344, %347 : vector<8x8xf32>
    %349 = math.exp %348 : vector<8x8xf32>
    %cst_140 = arith.constant dense<0.000000e+00> : vector<8xf32>
    %350 = vector.multi_reduction <add>, %349, %cst_140 [1] : vector<8x8xf32> to vector<8xf32>
    %351 = vector.shape_cast %350 : vector<8xf32> to vector<8x1xf32>
    %352 = tpu.reciprocal %351 {approx = true} : vector<8x1xf32> -> vector<8x1xf32>
    %353 = vector.broadcast %352 : vector<8x1xf32> to vector<8x8xf32>
    %354 = arith.mulf %349, %353 : vector<8x8xf32>
    %355 = arith.truncf %354 : vector<8x8xf32> to vector<8x8xbf16>
    %cst_141 = arith.constant dense<0.000000e+00> : vector<8x16xf32>
    %356 = tpu.matmul %355, %343, %cst_141 {dimension_numbers = #tpu.dot_dimension_numbers<[1], [0], [0], [1], [0, 0, 1, 1], [], []>} : vector<8x8xbf16>, vector<8x16xbf16>, vector<8x16xf32> -> vector<8x16xf32>
    %357 = arith.truncf %356 : vector<8x16xf32> to vector<8x16xbf16>
    %c1_142 = arith.constant 1 : index
    %c2_143 = arith.constant 2 : index
    %c0_144 = arith.constant 0 : index
    %c0_145 = arith.constant 0 : index
    %358 = vector.load %arg4[%c1_142, %c2_143, %c0_144, %c0_145] : memref<2x8x16x128xbf16, #tpu.memory_space<vmem>>, vector<1x1x16x128xbf16>
    %359 = vector.shape_cast %358 : vector<1x1x16x128xbf16> to vector<16x128xbf16>
    %cst_146 = arith.constant dense<0.000000e+00> : vector<8x128xf32>
    %360 = tpu.matmul %357, %359, %cst_146 {dimension_numbers = #tpu.dot_dimension_numbers<[1], [0], [0], [1], [0, 0, 1, 1], [], []>} : vector<8x16xbf16>, vector<16x128xbf16>, vector<8x128xf32> -> vector<8x128xf32>
    %361 = arith.addf %337, %360 : vector<8x128xf32>
    %362 = vector.extract_strided_slice %288 {offsets = [0, 48], sizes = [8, 16], strides = [1, 1]} : vector<8x128xf32> to vector<8x16xf32>
    %363 = arith.truncf %362 : vector<8x16xf32> to vector<8x16xbf16>
    %364 = vector.extract_strided_slice %289 {offsets = [0, 48], sizes = [8, 16], strides = [1, 1]} : vector<8x128xf32> to vector<8x16xf32>
    %365 = arith.truncf %364 : vector<8x16xf32> to vector<8x16xbf16>
    %366 = vector.extract_strided_slice %290 {offsets = [0, 48], sizes = [8, 16], strides = [1, 1]} : vector<8x128xf32> to vector<8x16xf32>
    %367 = arith.truncf %366 : vector<8x16xf32> to vector<8x16xbf16>
    %cst_147 = arith.constant dense<0.000000e+00> : vector<8x8xf32>
    %368 = tpu.matmul %363, %365, %cst_147 {dimension_numbers = #tpu.dot_dimension_numbers<[1], [1], [0], [0], [0, 0, 1, 0], [], []>} : vector<8x16xbf16>, vector<8x16xbf16>, vector<8x8xf32> -> vector<8x8xf32>
    %cst_148 = arith.constant dense<0xFF800000> : vector<8xf32>
    %369 = vector.multi_reduction <maximumf>, %368, %cst_148 [1] : vector<8x8xf32> to vector<8xf32>
    %370 = vector.shape_cast %369 : vector<8xf32> to vector<8x1xf32>
    %371 = vector.broadcast %370 : vector<8x1xf32> to vector<8x8xf32>
    %372 = arith.subf %368, %371 : vector<8x8xf32>
    %373 = math.exp %372 : vector<8x8xf32>
    %cst_149 = arith.constant dense<0.000000e+00> : vector<8xf32>
    %374 = vector.multi_reduction <add>, %373, %cst_149 [1] : vector<8x8xf32> to vector<8xf32>
    %375 = vector.shape_cast %374 : vector<8xf32> to vector<8x1xf32>
    %376 = tpu.reciprocal %375 {approx = true} : vector<8x1xf32> -> vector<8x1xf32>
    %377 = vector.broadcast %376 : vector<8x1xf32> to vector<8x8xf32>
    %378 = arith.mulf %373, %377 : vector<8x8xf32>
    %379 = arith.truncf %378 : vector<8x8xf32> to vector<8x8xbf16>
    %cst_150 = arith.constant dense<0.000000e+00> : vector<8x16xf32>
    %380 = tpu.matmul %379, %367, %cst_150 {dimension_numbers = #tpu.dot_dimension_numbers<[1], [0], [0], [1], [0, 0, 1, 1], [], []>} : vector<8x8xbf16>, vector<8x16xbf16>, vector<8x16xf32> -> vector<8x16xf32>
    %381 = arith.truncf %380 : vector<8x16xf32> to vector<8x16xbf16>
    %c1_151 = arith.constant 1 : index
    %c3_152 = arith.constant 3 : index
    %c0_153 = arith.constant 0 : index
    %c0_154 = arith.constant 0 : index
    %382 = vector.load %arg4[%c1_151, %c3_152, %c0_153, %c0_154] : memref<2x8x16x128xbf16, #tpu.memory_space<vmem>>, vector<1x1x16x128xbf16>
    %383 = vector.shape_cast %382 : vector<1x1x16x128xbf16> to vector<16x128xbf16>
    %cst_155 = arith.constant dense<0.000000e+00> : vector<8x128xf32>
    %384 = tpu.matmul %381, %383, %cst_155 {dimension_numbers = #tpu.dot_dimension_numbers<[1], [0], [0], [1], [0, 0, 1, 1], [], []>} : vector<8x16xbf16>, vector<16x128xbf16>, vector<8x128xf32> -> vector<8x128xf32>
    %385 = arith.addf %361, %384 : vector<8x128xf32>
    %386 = vector.extract_strided_slice %288 {offsets = [0, 64], sizes = [8, 16], strides = [1, 1]} : vector<8x128xf32> to vector<8x16xf32>
    %387 = arith.truncf %386 : vector<8x16xf32> to vector<8x16xbf16>
    %388 = vector.extract_strided_slice %289 {offsets = [0, 64], sizes = [8, 16], strides = [1, 1]} : vector<8x128xf32> to vector<8x16xf32>
    %389 = arith.truncf %388 : vector<8x16xf32> to vector<8x16xbf16>
    %390 = vector.extract_strided_slice %290 {offsets = [0, 64], sizes = [8, 16], strides = [1, 1]} : vector<8x128xf32> to vector<8x16xf32>
    %391 = arith.truncf %390 : vector<8x16xf32> to vector<8x16xbf16>
    %cst_156 = arith.constant dense<0.000000e+00> : vector<8x8xf32>
    %392 = tpu.matmul %387, %389, %cst_156 {dimension_numbers = #tpu.dot_dimension_numbers<[1], [1], [0], [0], [0, 0, 1, 0], [], []>} : vector<8x16xbf16>, vector<8x16xbf16>, vector<8x8xf32> -> vector<8x8xf32>
    %cst_157 = arith.constant dense<0xFF800000> : vector<8xf32>
    %393 = vector.multi_reduction <maximumf>, %392, %cst_157 [1] : vector<8x8xf32> to vector<8xf32>
    %394 = vector.shape_cast %393 : vector<8xf32> to vector<8x1xf32>
    %395 = vector.broadcast %394 : vector<8x1xf32> to vector<8x8xf32>
    %396 = arith.subf %392, %395 : vector<8x8xf32>
    %397 = math.exp %396 : vector<8x8xf32>
    %cst_158 = arith.constant dense<0.000000e+00> : vector<8xf32>
    %398 = vector.multi_reduction <add>, %397, %cst_158 [1] : vector<8x8xf32> to vector<8xf32>
    %399 = vector.shape_cast %398 : vector<8xf32> to vector<8x1xf32>
    %400 = tpu.reciprocal %399 {approx = true} : vector<8x1xf32> -> vector<8x1xf32>
    %401 = vector.broadcast %400 : vector<8x1xf32> to vector<8x8xf32>
    %402 = arith.mulf %397, %401 : vector<8x8xf32>
    %403 = arith.truncf %402 : vector<8x8xf32> to vector<8x8xbf16>
    %cst_159 = arith.constant dense<0.000000e+00> : vector<8x16xf32>
    %404 = tpu.matmul %403, %391, %cst_159 {dimension_numbers = #tpu.dot_dimension_numbers<[1], [0], [0], [1], [0, 0, 1, 1], [], []>} : vector<8x8xbf16>, vector<8x16xbf16>, vector<8x16xf32> -> vector<8x16xf32>
    %405 = arith.truncf %404 : vector<8x16xf32> to vector<8x16xbf16>
    %c1_160 = arith.constant 1 : index
    %c4_161 = arith.constant 4 : index
    %c0_162 = arith.constant 0 : index
    %c0_163 = arith.constant 0 : index
    %406 = vector.load %arg4[%c1_160, %c4_161, %c0_162, %c0_163] : memref<2x8x16x128xbf16, #tpu.memory_space<vmem>>, vector<1x1x16x128xbf16>
    %407 = vector.shape_cast %406 : vector<1x1x16x128xbf16> to vector<16x128xbf16>
    %cst_164 = arith.constant dense<0.000000e+00> : vector<8x128xf32>
    %408 = tpu.matmul %405, %407, %cst_164 {dimension_numbers = #tpu.dot_dimension_numbers<[1], [0], [0], [1], [0, 0, 1, 1], [], []>} : vector<8x16xbf16>, vector<16x128xbf16>, vector<8x128xf32> -> vector<8x128xf32>
    %409 = arith.addf %385, %408 : vector<8x128xf32>
    %410 = vector.extract_strided_slice %288 {offsets = [0, 80], sizes = [8, 16], strides = [1, 1]} : vector<8x128xf32> to vector<8x16xf32>
    %411 = arith.truncf %410 : vector<8x16xf32> to vector<8x16xbf16>
    %412 = vector.extract_strided_slice %289 {offsets = [0, 80], sizes = [8, 16], strides = [1, 1]} : vector<8x128xf32> to vector<8x16xf32>
    %413 = arith.truncf %412 : vector<8x16xf32> to vector<8x16xbf16>
    %414 = vector.extract_strided_slice %290 {offsets = [0, 80], sizes = [8, 16], strides = [1, 1]} : vector<8x128xf32> to vector<8x16xf32>
    %415 = arith.truncf %414 : vector<8x16xf32> to vector<8x16xbf16>
    %cst_165 = arith.constant dense<0.000000e+00> : vector<8x8xf32>
    %416 = tpu.matmul %411, %413, %cst_165 {dimension_numbers = #tpu.dot_dimension_numbers<[1], [1], [0], [0], [0, 0, 1, 0], [], []>} : vector<8x16xbf16>, vector<8x16xbf16>, vector<8x8xf32> -> vector<8x8xf32>
    %cst_166 = arith.constant dense<0xFF800000> : vector<8xf32>
    %417 = vector.multi_reduction <maximumf>, %416, %cst_166 [1] : vector<8x8xf32> to vector<8xf32>
    %418 = vector.shape_cast %417 : vector<8xf32> to vector<8x1xf32>
    %419 = vector.broadcast %418 : vector<8x1xf32> to vector<8x8xf32>
    %420 = arith.subf %416, %419 : vector<8x8xf32>
    %421 = math.exp %420 : vector<8x8xf32>
    %cst_167 = arith.constant dense<0.000000e+00> : vector<8xf32>
    %422 = vector.multi_reduction <add>, %421, %cst_167 [1] : vector<8x8xf32> to vector<8xf32>
    %423 = vector.shape_cast %422 : vector<8xf32> to vector<8x1xf32>
    %424 = tpu.reciprocal %423 {approx = true} : vector<8x1xf32> -> vector<8x1xf32>
    %425 = vector.broadcast %424 : vector<8x1xf32> to vector<8x8xf32>
    %426 = arith.mulf %421, %425 : vector<8x8xf32>
    %427 = arith.truncf %426 : vector<8x8xf32> to vector<8x8xbf16>
    %cst_168 = arith.constant dense<0.000000e+00> : vector<8x16xf32>
    %428 = tpu.matmul %427, %415, %cst_168 {dimension_numbers = #tpu.dot_dimension_numbers<[1], [0], [0], [1], [0, 0, 1, 1], [], []>} : vector<8x8xbf16>, vector<8x16xbf16>, vector<8x16xf32> -> vector<8x16xf32>
    %429 = arith.truncf %428 : vector<8x16xf32> to vector<8x16xbf16>
    %c1_169 = arith.constant 1 : index
    %c5_170 = arith.constant 5 : index
    %c0_171 = arith.constant 0 : index
    %c0_172 = arith.constant 0 : index
    %430 = vector.load %arg4[%c1_169, %c5_170, %c0_171, %c0_172] : memref<2x8x16x128xbf16, #tpu.memory_space<vmem>>, vector<1x1x16x128xbf16>
    %431 = vector.shape_cast %430 : vector<1x1x16x128xbf16> to vector<16x128xbf16>
    %cst_173 = arith.constant dense<0.000000e+00> : vector<8x128xf32>
    %432 = tpu.matmul %429, %431, %cst_173 {dimension_numbers = #tpu.dot_dimension_numbers<[1], [0], [0], [1], [0, 0, 1, 1], [], []>} : vector<8x16xbf16>, vector<16x128xbf16>, vector<8x128xf32> -> vector<8x128xf32>
    %433 = arith.addf %409, %432 : vector<8x128xf32>
    %434 = vector.extract_strided_slice %288 {offsets = [0, 96], sizes = [8, 16], strides = [1, 1]} : vector<8x128xf32> to vector<8x16xf32>
    %435 = arith.truncf %434 : vector<8x16xf32> to vector<8x16xbf16>
    %436 = vector.extract_strided_slice %289 {offsets = [0, 96], sizes = [8, 16], strides = [1, 1]} : vector<8x128xf32> to vector<8x16xf32>
    %437 = arith.truncf %436 : vector<8x16xf32> to vector<8x16xbf16>
    %438 = vector.extract_strided_slice %290 {offsets = [0, 96], sizes = [8, 16], strides = [1, 1]} : vector<8x128xf32> to vector<8x16xf32>
    %439 = arith.truncf %438 : vector<8x16xf32> to vector<8x16xbf16>
    %cst_174 = arith.constant dense<0.000000e+00> : vector<8x8xf32>
    %440 = tpu.matmul %435, %437, %cst_174 {dimension_numbers = #tpu.dot_dimension_numbers<[1], [1], [0], [0], [0, 0, 1, 0], [], []>} : vector<8x16xbf16>, vector<8x16xbf16>, vector<8x8xf32> -> vector<8x8xf32>
    %cst_175 = arith.constant dense<0xFF800000> : vector<8xf32>
    %441 = vector.multi_reduction <maximumf>, %440, %cst_175 [1] : vector<8x8xf32> to vector<8xf32>
    %442 = vector.shape_cast %441 : vector<8xf32> to vector<8x1xf32>
    %443 = vector.broadcast %442 : vector<8x1xf32> to vector<8x8xf32>
    %444 = arith.subf %440, %443 : vector<8x8xf32>
    %445 = math.exp %444 : vector<8x8xf32>
    %cst_176 = arith.constant dense<0.000000e+00> : vector<8xf32>
    %446 = vector.multi_reduction <add>, %445, %cst_176 [1] : vector<8x8xf32> to vector<8xf32>
    %447 = vector.shape_cast %446 : vector<8xf32> to vector<8x1xf32>
    %448 = tpu.reciprocal %447 {approx = true} : vector<8x1xf32> -> vector<8x1xf32>
    %449 = vector.broadcast %448 : vector<8x1xf32> to vector<8x8xf32>
    %450 = arith.mulf %445, %449 : vector<8x8xf32>
    %451 = arith.truncf %450 : vector<8x8xf32> to vector<8x8xbf16>
    %cst_177 = arith.constant dense<0.000000e+00> : vector<8x16xf32>
    %452 = tpu.matmul %451, %439, %cst_177 {dimension_numbers = #tpu.dot_dimension_numbers<[1], [0], [0], [1], [0, 0, 1, 1], [], []>} : vector<8x8xbf16>, vector<8x16xbf16>, vector<8x16xf32> -> vector<8x16xf32>
    %453 = arith.truncf %452 : vector<8x16xf32> to vector<8x16xbf16>
    %c1_178 = arith.constant 1 : index
    %c6_179 = arith.constant 6 : index
    %c0_180 = arith.constant 0 : index
    %c0_181 = arith.constant 0 : index
    %454 = vector.load %arg4[%c1_178, %c6_179, %c0_180, %c0_181] : memref<2x8x16x128xbf16, #tpu.memory_space<vmem>>, vector<1x1x16x128xbf16>
    %455 = vector.shape_cast %454 : vector<1x1x16x128xbf16> to vector<16x128xbf16>
    %cst_182 = arith.constant dense<0.000000e+00> : vector<8x128xf32>
    %456 = tpu.matmul %453, %455, %cst_182 {dimension_numbers = #tpu.dot_dimension_numbers<[1], [0], [0], [1], [0, 0, 1, 1], [], []>} : vector<8x16xbf16>, vector<16x128xbf16>, vector<8x128xf32> -> vector<8x128xf32>
    %457 = arith.addf %433, %456 : vector<8x128xf32>
    %458 = vector.extract_strided_slice %288 {offsets = [0, 112], sizes = [8, 16], strides = [1, 1]} : vector<8x128xf32> to vector<8x16xf32>
    %459 = arith.truncf %458 : vector<8x16xf32> to vector<8x16xbf16>
    %460 = vector.extract_strided_slice %289 {offsets = [0, 112], sizes = [8, 16], strides = [1, 1]} : vector<8x128xf32> to vector<8x16xf32>
    %461 = arith.truncf %460 : vector<8x16xf32> to vector<8x16xbf16>
    %462 = vector.extract_strided_slice %290 {offsets = [0, 112], sizes = [8, 16], strides = [1, 1]} : vector<8x128xf32> to vector<8x16xf32>
    %463 = arith.truncf %462 : vector<8x16xf32> to vector<8x16xbf16>
    %cst_183 = arith.constant dense<0.000000e+00> : vector<8x8xf32>
    %464 = tpu.matmul %459, %461, %cst_183 {dimension_numbers = #tpu.dot_dimension_numbers<[1], [1], [0], [0], [0, 0, 1, 0], [], []>} : vector<8x16xbf16>, vector<8x16xbf16>, vector<8x8xf32> -> vector<8x8xf32>
    %cst_184 = arith.constant dense<0xFF800000> : vector<8xf32>
    %465 = vector.multi_reduction <maximumf>, %464, %cst_184 [1] : vector<8x8xf32> to vector<8xf32>
    %466 = vector.shape_cast %465 : vector<8xf32> to vector<8x1xf32>
    %467 = vector.broadcast %466 : vector<8x1xf32> to vector<8x8xf32>
    %468 = arith.subf %464, %467 : vector<8x8xf32>
    %469 = math.exp %468 : vector<8x8xf32>
    %cst_185 = arith.constant dense<0.000000e+00> : vector<8xf32>
    %470 = vector.multi_reduction <add>, %469, %cst_185 [1] : vector<8x8xf32> to vector<8xf32>
    %471 = vector.shape_cast %470 : vector<8xf32> to vector<8x1xf32>
    %472 = tpu.reciprocal %471 {approx = true} : vector<8x1xf32> -> vector<8x1xf32>
    %473 = vector.broadcast %472 : vector<8x1xf32> to vector<8x8xf32>
    %474 = arith.mulf %469, %473 : vector<8x8xf32>
    %475 = arith.truncf %474 : vector<8x8xf32> to vector<8x8xbf16>
    %cst_186 = arith.constant dense<0.000000e+00> : vector<8x16xf32>
    %476 = tpu.matmul %475, %463, %cst_186 {dimension_numbers = #tpu.dot_dimension_numbers<[1], [0], [0], [1], [0, 0, 1, 1], [], []>} : vector<8x8xbf16>, vector<8x16xbf16>, vector<8x16xf32> -> vector<8x16xf32>
    %477 = arith.truncf %476 : vector<8x16xf32> to vector<8x16xbf16>
    %c1_187 = arith.constant 1 : index
    %c7_188 = arith.constant 7 : index
    %c0_189 = arith.constant 0 : index
    %c0_190 = arith.constant 0 : index
    %478 = vector.load %arg4[%c1_187, %c7_188, %c0_189, %c0_190] : memref<2x8x16x128xbf16, #tpu.memory_space<vmem>>, vector<1x1x16x128xbf16>
    %479 = vector.shape_cast %478 : vector<1x1x16x128xbf16> to vector<16x128xbf16>
    %cst_191 = arith.constant dense<0.000000e+00> : vector<8x128xf32>
    %480 = tpu.matmul %477, %479, %cst_191 {dimension_numbers = #tpu.dot_dimension_numbers<[1], [0], [0], [1], [0, 0, 1, 1], [], []>} : vector<8x16xbf16>, vector<16x128xbf16>, vector<8x128xf32> -> vector<8x128xf32>
    %481 = arith.addf %457, %480 : vector<8x128xf32>
    %c1_192 = arith.constant 1 : index
    %c0_193 = arith.constant 0 : index
    %c0_194 = arith.constant 0 : index
    %482 = vector.load %arg5[%c1_192, %c0_193, %c0_194] : memref<2x1x128xf32, #tpu.memory_space<vmem>>, vector<1x1x128xf32>
    %483 = vector.shape_cast %482 : vector<1x1x128xf32> to vector<1x128xf32>
    %484 = vector.broadcast %483 : vector<1x128xf32> to vector<8x128xf32>
    %485 = arith.addf %481, %484 : vector<8x128xf32>
    %486 = arith.addf %485, %279 : vector<8x128xf32>
    %c1_195 = arith.constant 1 : index
    %c0_196 = arith.constant 0 : index
    %c0_197 = arith.constant 0 : index
    %487 = vector.load %arg6[%c1_195, %c0_196, %c0_197] : memref<2x1x128xf32, #tpu.memory_space<vmem>>, vector<1x1x128xf32>
    %488 = vector.shape_cast %487 : vector<1x1x128xf32> to vector<1x128xf32>
    %c1_198 = arith.constant 1 : index
    %c0_199 = arith.constant 0 : index
    %c0_200 = arith.constant 0 : index
    %489 = vector.load %arg7[%c1_198, %c0_199, %c0_200] : memref<2x1x128xf32, #tpu.memory_space<vmem>>, vector<1x1x128xf32>
    %490 = vector.shape_cast %489 : vector<1x1x128xf32> to vector<1x128xf32>
    %cst_201 = arith.constant dense<0.000000e+00> : vector<8xf32>
    %491 = vector.multi_reduction <add>, %486, %cst_201 [1] : vector<8x128xf32> to vector<8xf32>
    %492 = vector.shape_cast %491 : vector<8xf32> to vector<8x1xf32>
    %493 = arith.mulf %486, %486 : vector<8x128xf32>
    %cst_202 = arith.constant dense<0.000000e+00> : vector<8xf32>
    %494 = vector.multi_reduction <add>, %493, %cst_202 [1] : vector<8x128xf32> to vector<8xf32>
    %495 = vector.shape_cast %494 : vector<8xf32> to vector<8x1xf32>
    %cst_203 = arith.constant 7.812500e-03 : f32
    %496 = vector.broadcast %cst_203 : f32 to vector<8x1xf32>
    %497 = arith.mulf %492, %496 : vector<8x1xf32>
    %cst_204 = arith.constant 7.812500e-03 : f32
    %498 = vector.broadcast %cst_204 : f32 to vector<8x1xf32>
    %499 = arith.mulf %495, %498 : vector<8x1xf32>
    %500 = arith.mulf %497, %497 : vector<8x1xf32>
    %501 = arith.subf %499, %500 : vector<8x1xf32>
    %502 = vector.broadcast %497 : vector<8x1xf32> to vector<8x128xf32>
    %503 = arith.subf %486, %502 : vector<8x128xf32>
    %cst_205 = arith.constant 9.99999974E-6 : f32
    %504 = vector.broadcast %cst_205 : f32 to vector<8x1xf32>
    %505 = arith.addf %501, %504 : vector<8x1xf32>
    %506 = math.rsqrt %505 : vector<8x1xf32>
    %507 = vector.broadcast %506 : vector<8x1xf32> to vector<8x128xf32>
    %508 = arith.mulf %503, %507 : vector<8x128xf32>
    %509 = vector.broadcast %488 : vector<1x128xf32> to vector<8x128xf32>
    %510 = arith.mulf %508, %509 : vector<8x128xf32>
    %511 = vector.broadcast %490 : vector<1x128xf32> to vector<8x128xf32>
    %512 = arith.addf %510, %511 : vector<8x128xf32>
    %513 = arith.truncf %512 : vector<8x128xf32> to vector<8x128xbf16>
    %c1_206 = arith.constant 1 : index
    %c0_207 = arith.constant 0 : index
    %c0_208 = arith.constant 0 : index
    %514 = vector.load %arg8[%c1_206, %c0_207, %c0_208] : memref<2x128x512xbf16, #tpu.memory_space<vmem>>, vector<1x128x512xbf16>
    %515 = vector.shape_cast %514 : vector<1x128x512xbf16> to vector<128x512xbf16>
    %cst_209 = arith.constant dense<0.000000e+00> : vector<8x512xf32>
    %516 = tpu.matmul %513, %515, %cst_209 {dimension_numbers = #tpu.dot_dimension_numbers<[1], [0], [0], [1], [0, 0, 1, 1], [], []>} : vector<8x128xbf16>, vector<128x512xbf16>, vector<8x512xf32> -> vector<8x512xf32>
    %c1_210 = arith.constant 1 : index
    %c0_211 = arith.constant 0 : index
    %c0_212 = arith.constant 0 : index
    %517 = vector.load %arg9[%c1_210, %c0_211, %c0_212] : memref<2x1x512xf32, #tpu.memory_space<vmem>>, vector<1x1x512xf32>
    %518 = vector.shape_cast %517 : vector<1x1x512xf32> to vector<1x512xf32>
    %519 = vector.broadcast %518 : vector<1x512xf32> to vector<8x512xf32>
    %520 = arith.addf %516, %519 : vector<8x512xf32>
    %cst_213 = arith.constant 0.000000e+00 : f32
    %521 = vector.broadcast %cst_213 : f32 to vector<8x512xf32>
    %522 = arith.maximumf %520, %521 : vector<8x512xf32>
    %523 = arith.truncf %522 : vector<8x512xf32> to vector<8x512xbf16>
    %c1_214 = arith.constant 1 : index
    %c0_215 = arith.constant 0 : index
    %c0_216 = arith.constant 0 : index
    %524 = vector.load %arg10[%c1_214, %c0_215, %c0_216] : memref<2x512x128xbf16, #tpu.memory_space<vmem>>, vector<1x512x128xbf16>
    %525 = vector.shape_cast %524 : vector<1x512x128xbf16> to vector<512x128xbf16>
    %cst_217 = arith.constant dense<0.000000e+00> : vector<8x128xf32>
    %526 = tpu.matmul %523, %525, %cst_217 {dimension_numbers = #tpu.dot_dimension_numbers<[1], [0], [0], [1], [0, 0, 1, 1], [], []>} : vector<8x512xbf16>, vector<512x128xbf16>, vector<8x128xf32> -> vector<8x128xf32>
    %c1_218 = arith.constant 1 : index
    %c0_219 = arith.constant 0 : index
    %c0_220 = arith.constant 0 : index
    %527 = vector.load %arg11[%c1_218, %c0_219, %c0_220] : memref<2x1x128xf32, #tpu.memory_space<vmem>>, vector<1x1x128xf32>
    %528 = vector.shape_cast %527 : vector<1x1x128xf32> to vector<1x128xf32>
    %529 = vector.broadcast %528 : vector<1x128xf32> to vector<8x128xf32>
    %530 = arith.addf %526, %529 : vector<8x128xf32>
    %531 = arith.addf %530, %512 : vector<8x128xf32>
    %c1_221 = arith.constant 1 : index
    %c0_222 = arith.constant 0 : index
    %c0_223 = arith.constant 0 : index
    %532 = vector.load %arg12[%c1_221, %c0_222, %c0_223] : memref<2x1x128xf32, #tpu.memory_space<vmem>>, vector<1x1x128xf32>
    %533 = vector.shape_cast %532 : vector<1x1x128xf32> to vector<1x128xf32>
    %c1_224 = arith.constant 1 : index
    %c0_225 = arith.constant 0 : index
    %c0_226 = arith.constant 0 : index
    %534 = vector.load %arg13[%c1_224, %c0_225, %c0_226] : memref<2x1x128xf32, #tpu.memory_space<vmem>>, vector<1x1x128xf32>
    %535 = vector.shape_cast %534 : vector<1x1x128xf32> to vector<1x128xf32>
    %cst_227 = arith.constant dense<0.000000e+00> : vector<8xf32>
    %536 = vector.multi_reduction <add>, %531, %cst_227 [1] : vector<8x128xf32> to vector<8xf32>
    %537 = vector.shape_cast %536 : vector<8xf32> to vector<8x1xf32>
    %538 = arith.mulf %531, %531 : vector<8x128xf32>
    %cst_228 = arith.constant dense<0.000000e+00> : vector<8xf32>
    %539 = vector.multi_reduction <add>, %538, %cst_228 [1] : vector<8x128xf32> to vector<8xf32>
    %540 = vector.shape_cast %539 : vector<8xf32> to vector<8x1xf32>
    %cst_229 = arith.constant 7.812500e-03 : f32
    %541 = vector.broadcast %cst_229 : f32 to vector<8x1xf32>
    %542 = arith.mulf %537, %541 : vector<8x1xf32>
    %cst_230 = arith.constant 7.812500e-03 : f32
    %543 = vector.broadcast %cst_230 : f32 to vector<8x1xf32>
    %544 = arith.mulf %540, %543 : vector<8x1xf32>
    %545 = arith.mulf %542, %542 : vector<8x1xf32>
    %546 = arith.subf %544, %545 : vector<8x1xf32>
    %547 = vector.broadcast %542 : vector<8x1xf32> to vector<8x128xf32>
    %548 = arith.subf %531, %547 : vector<8x128xf32>
    %cst_231 = arith.constant 9.99999974E-6 : f32
    %549 = vector.broadcast %cst_231 : f32 to vector<8x1xf32>
    %550 = arith.addf %546, %549 : vector<8x1xf32>
    %551 = math.rsqrt %550 : vector<8x1xf32>
    %552 = vector.broadcast %551 : vector<8x1xf32> to vector<8x128xf32>
    %553 = arith.mulf %548, %552 : vector<8x128xf32>
    %554 = vector.broadcast %533 : vector<1x128xf32> to vector<8x128xf32>
    %555 = arith.mulf %553, %554 : vector<8x128xf32>
    %556 = vector.broadcast %535 : vector<1x128xf32> to vector<8x128xf32>
    %557 = arith.addf %555, %556 : vector<8x128xf32>
    %558 = arith.truncf %557 : vector<8x128xf32> to vector<8x128xbf16>
    %c0_232 = arith.constant 0 : index
    %c0_233 = arith.constant 0 : index
    %559 = vector.load %arg14[%c0_232, %c0_233] : memref<128x2048xbf16, #tpu.memory_space<vmem>>, vector<128x2048xbf16>
    %cst_234 = arith.constant dense<0.000000e+00> : vector<8x2048xf32>
    %560 = tpu.matmul %558, %559, %cst_234 {dimension_numbers = #tpu.dot_dimension_numbers<[1], [0], [0], [1], [0, 0, 1, 1], [], []>} : vector<8x128xbf16>, vector<128x2048xbf16>, vector<8x2048xf32> -> vector<8x2048xf32>
    %c0_235 = arith.constant 0 : index
    %c0_236 = arith.constant 0 : index
    %561 = vector.load %arg15[%c0_235, %c0_236] : memref<1x2048xf32, #tpu.memory_space<vmem>>, vector<1x2048xf32>
    %562 = vector.broadcast %561 : vector<1x2048xf32> to vector<8x2048xf32>
    %563 = arith.addf %560, %562 : vector<8x2048xf32>
    %564 = vector.extract_strided_slice %563 {offsets = [0, 0], sizes = [8, 2000], strides = [1, 1]} : vector<8x2048xf32> to vector<8x2000xf32>
    %c0_237 = arith.constant 0 : index
    %c0_238 = arith.constant 0 : index
    %c0_239 = arith.constant 0 : index
    %565 = vector.load %arg16[%c0_237, %c0_238, %c0_239] : memref<1x8x2000xf32, #tpu.memory_space<vmem>>, vector<1x8x2000xf32>
    %566 = vector.shape_cast %565 : vector<1x8x2000xf32> to vector<8x2000xf32>
    %567 = vector.shape_cast %564 : vector<8x2000xf32> to vector<1x8x2000xf32>
    tpu.vector_store %arg16[%c0_237, %c0_238, %c0_239], %567 {strides = array<i32>} : memref<1x8x2000xf32, #tpu.memory_space<vmem>>, vector<1x8x2000xf32>,
    return
  }
  func.func @transform_0(%arg0: i32) -> (i32, i32, i32) {
    %c0_i32 = arith.constant 0 : i32
    %c0_i32_0 = arith.constant 0 : i32
    %c0_i32_1 = arith.constant 0 : i32
    return %arg0, %c0_i32, %c0_i32_0 : i32, i32, i32
  }
  func.func @transform_1(%arg0: i32) -> (i32, i32, i32) {
    %c0_i32 = arith.constant 0 : i32
    %c0_i32_0 = arith.constant 0 : i32
    %c0_i32_1 = arith.constant 0 : i32
    %c0_i32_2 = arith.constant 0 : i32
    return %c0_i32, %c0_i32_0, %c0_i32_1 : i32, i32, i32
  }
  func.func @transform_2(%arg0: i32) -> (i32, i32, i32) {
    %c0_i32 = arith.constant 0 : i32
    %c0_i32_0 = arith.constant 0 : i32
    %c0_i32_1 = arith.constant 0 : i32
    %c0_i32_2 = arith.constant 0 : i32
    return %c0_i32, %c0_i32_0, %c0_i32_1 : i32, i32, i32
  }
  func.func @transform_3(%arg0: i32) -> (i32, i32, i32, i32) {
    %c0_i32 = arith.constant 0 : i32
    %c0_i32_0 = arith.constant 0 : i32
    %c0_i32_1 = arith.constant 0 : i32
    %c0_i32_2 = arith.constant 0 : i32
    %c0_i32_3 = arith.constant 0 : i32
    return %c0_i32, %c0_i32_0, %c0_i32_1, %c0_i32_2 : i32, i32, i32, i32
  }
  func.func @transform_4(%arg0: i32) -> (i32, i32, i32) {
    %c0_i32 = arith.constant 0 : i32
    %c0_i32_0 = arith.constant 0 : i32
    %c0_i32_1 = arith.constant 0 : i32
    %c0_i32_2 = arith.constant 0 : i32
    return %c0_i32, %c0_i32_0, %c0_i32_1 : i32, i32, i32
  }
  func.func @transform_5(%arg0: i32) -> (i32, i32, i32) {
    %c0_i32 = arith.constant 0 : i32
    %c0_i32_0 = arith.constant 0 : i32
    %c0_i32_1 = arith.constant 0 : i32
    %c0_i32_2 = arith.constant 0 : i32
    return %c0_i32, %c0_i32_0, %c0_i32_1 : i32, i32, i32
  }
  func.func @transform_6(%arg0: i32) -> (i32, i32, i32) {
    %c0_i32 = arith.constant 0 : i32
    %c0_i32_0 = arith.constant 0 : i32
    %c0_i32_1 = arith.constant 0 : i32
    %c0_i32_2 = arith.constant 0 : i32
    return %c0_i32, %c0_i32_0, %c0_i32_1 : i32, i32, i32
  }
  func.func @transform_7(%arg0: i32) -> (i32, i32, i32) {
    %c0_i32 = arith.constant 0 : i32
    %c0_i32_0 = arith.constant 0 : i32
    %c0_i32_1 = arith.constant 0 : i32
    %c0_i32_2 = arith.constant 0 : i32
    return %c0_i32, %c0_i32_0, %c0_i32_1 : i32, i32, i32
  }
  func.func @transform_8(%arg0: i32) -> (i32, i32, i32) {
    %c0_i32 = arith.constant 0 : i32
    %c0_i32_0 = arith.constant 0 : i32
    %c0_i32_1 = arith.constant 0 : i32
    %c0_i32_2 = arith.constant 0 : i32
    return %c0_i32, %c0_i32_0, %c0_i32_1 : i32, i32, i32
  }
  func.func @transform_9(%arg0: i32) -> (i32, i32, i32) {
    %c0_i32 = arith.constant 0 : i32
    %c0_i32_0 = arith.constant 0 : i32
    %c0_i32_1 = arith.constant 0 : i32
    %c0_i32_2 = arith.constant 0 : i32
    return %c0_i32, %c0_i32_0, %c0_i32_1 : i32, i32, i32
  }
  func.func @transform_10(%arg0: i32) -> (i32, i32, i32) {
    %c0_i32 = arith.constant 0 : i32
    %c0_i32_0 = arith.constant 0 : i32
    %c0_i32_1 = arith.constant 0 : i32
    %c0_i32_2 = arith.constant 0 : i32
    return %c0_i32, %c0_i32_0, %c0_i32_1 : i32, i32, i32
  }
  func.func @transform_11(%arg0: i32) -> (i32, i32, i32) {
    %c0_i32 = arith.constant 0 : i32
    %c0_i32_0 = arith.constant 0 : i32
    %c0_i32_1 = arith.constant 0 : i32
    %c0_i32_2 = arith.constant 0 : i32
    return %c0_i32, %c0_i32_0, %c0_i32_1 : i32, i32, i32
  }
  func.func @transform_12(%arg0: i32) -> (i32, i32, i32) {
    %c0_i32 = arith.constant 0 : i32
    %c0_i32_0 = arith.constant 0 : i32
    %c0_i32_1 = arith.constant 0 : i32
    %c0_i32_2 = arith.constant 0 : i32
    return %c0_i32, %c0_i32_0, %c0_i32_1 : i32, i32, i32
  }
  func.func @transform_13(%arg0: i32) -> (i32, i32) {
    %c0_i32 = arith.constant 0 : i32
    %c0_i32_0 = arith.constant 0 : i32
    %c0_i32_1 = arith.constant 0 : i32
    return %c0_i32, %c0_i32_0 : i32, i32
  }
  func.func @transform_14(%arg0: i32) -> (i32, i32) {
    %c0_i32 = arith.constant 0 : i32
    %c0_i32_0 = arith.constant 0 : i32
    %c0_i32_1 = arith.constant 0 : i32
    return %c0_i32, %c0_i32_0 : i32, i32
  }
  func.func @transform_15(%arg0: i32) -> (i32, i32, i32) {
    %c0_i32 = arith.constant 0 : i32
    %c0_i32_0 = arith.constant 0 : i32
    %c0_i32_1 = arith.constant 0 : i32
    return %arg0, %c0_i32, %c0_i32_0 : i32, i32, i32
  }
}

</mosaic_0001>

<llo_original>
// kernel: gd_transformer_forward.1
$region0: #{gd_transformer_forward.1}
  #allocation0 [shape = 'u32[]', space=smem, size = 0x4, offset = 0x4, fixed_abs, tag = 'smem constant byte address 0x4 - core index']
  #allocation1 [shape = 'u32[72,128]{1,0:T(1,128)}', space=vmem, size = 0x9000, scoped, tag = 'internal scratch']
  %s0 = inlined_call_operand.vmem [shape: f32[2,8,128], index: 0, kind: input, shape index: {}]
  %s1 = inlined_call_operand.hbm [shape: bf16[2,128,384], index: 1, kind: input, shape index: {}]
  %s2 = inlined_call_operand.vmem [shape: f32[2,1,384], index: 2, kind: input, shape index: {}]
  %s3 = inlined_call_operand.vmem [shape: bf16[2,8,16,128], index: 3, kind: input, shape index: {}]
  %s4 = inlined_call_operand.vmem [shape: f32[2,1,128], index: 4, kind: input, shape index: {}]
  %s5 = inlined_call_operand.vmem [shape: f32[2,1,128], index: 5, kind: input, shape index: {}]
  %s6 = inlined_call_operand.vmem [shape: f32[2,1,128], index: 6, kind: input, shape index: {}]
  %s7 = inlined_call_operand.hbm [shape: bf16[2,128,512], index: 7, kind: input, shape index: {}]
  %s8 = inlined_call_operand.vmem [shape: f32[2,1,512], index: 8, kind: input, shape index: {}]
  %s9 = inlined_call_operand.hbm [shape: bf16[2,512,128], index: 9, kind: input, shape index: {}]
  %s10 = inlined_call_operand.vmem [shape: f32[2,1,128], index: 10, kind: input, shape index: {}]
  %s11 = inlined_call_operand.vmem [shape: f32[2,1,128], index: 11, kind: input, shape index: {}]
  %s12 = inlined_call_operand.vmem [shape: f32[2,1,128], index: 12, kind: input, shape index: {}]
  %s13 = inlined_call_operand.hbm [shape: bf16[128,2048], index: 13, kind: input, shape index: {}]
  %s14 = inlined_call_operand.vmem [shape: f32[1,2048], index: 14, kind: input, shape index: {}]
  %s15 = inlined_call_operand.vmem [shape: f32[2,8,2000], index: 15, kind: output, shape index: {}]
  %s16 = sld [smem:[#allocation0]]
  $region109: #{gd_transformer_forward.1} parent=0
    _
  %s18 = ssub.s32 1, %s16
  %s19 = scalar_select 0, %s18, %s16
  $region1: #{gd_transformer_forward.1} parent=0
    #allocation2 [shape = 'u8[196608]{0}', space=vmem, size = 0x30000, scoped, tag = 'input window, operand 1, single buffered']
    #allocation3 [shape = 's32[2]{0}', space=sflag, size = 0x8, scoped, tag = 'scoped memory for gd_transformer_forward.1']
    #allocation4 [shape = 'u8[262144]{0}', space=vmem, size = 0x40000, scoped, tag = 'input window, operand 7, single buffered']
    #allocation5 [shape = 's32[1]{0}', space=sflag, size = 0x4, scoped, tag = 'scoped memory for gd_transformer_forward.1']
    #allocation6 [shape = 'u8[262144]{0}', space=vmem, size = 0x40000, scoped, tag = 'input window, operand 9, single buffered']
    #allocation7 [shape = 'u8[524288]{0}', space=vmem, size = 0x80000, scoped, tag = 'input window, operand 13, single buffered']
    #allocation8 [shape = 's32[1]{0}', space=sflag, size = 0x4, scoped, tag = 'scoped memory for gd_transformer_forward.1']
    %20 = vsyncpa [#allocation3], 0
    %21 = vsyncpa [#allocation5], 0
    %22 = vsyncpa [#allocation8], 0
    loop: start=0, step=1, limit=4
    $region2: #{gd_transformer_forward.1} parent=1 // loop_pre_header
      _
    $region3: #{gd_transformer_forward.1} parent=1 // loop_header
      %s24 = sphi 0, %s28
      %p25 = scmp.ge.s32.totalorder %s24, 4
      %s34 = sphi 0, %s36
      %s37 = sphi 0, %s34
      %s38 = sphi 0, %s37
      %s54 = sphi 0, %s38
      %s58 = sphi 0, %s58
      %s60 = sphi 0, %s58
      %s61 = sphi 0, %s60
      %s75 = sphi 0, %s61
      %s79 = sphi 0, %s79
      %s81 = sphi 0, %s79
      %s82 = sphi 0, %s81
      %s96 = sphi 0, %s82
      %s100 = sphi 0, %s100
      %s102 = sphi 0, %s100
      %s103 = sphi 0, %s102
      %s117 = sphi 0, %s103
      %s121 = sphi 0, %s121
      %s123 = sphi 0, %s121
      %s124 = sphi 0, %s123
      %s138 = sphi 0, %s124
      %s142 = sphi 0, %s142
      %s144 = sphi 0, %s142
      %s145 = sphi 0, %s144
      %s159 = sphi 0, %s145
      %s163 = sphi 0, %s163
      %s165 = sphi 0, %s163
      %s166 = sphi 0, %s165
      %s180 = sphi 0, %s166
      %s184 = sphi 0, %s184
      %s186 = sphi 0, %s184
      %s187 = sphi 0, %s186
      %s201 = sphi 0, %s187
      %s205 = sphi 0, %s205
      %s207 = sphi 0, %s205
      %s208 = sphi 0, %s207
      %s222 = sphi 0, %s208
      %s226 = sphi 0, %s226
      %s228 = sphi 0, %s226
      %s229 = sphi 0, %s228
      %s243 = sphi 0, %s229
      %s247 = sphi 0, %s247
      %s249 = sphi 0, %s247
      %s250 = sphi 0, %s249
      %s264 = sphi 0, %s250
      %s268 = sphi 0, %s268
      %s270 = sphi 0, %s268
      %s271 = sphi 0, %s270
      %s285 = sphi 0, %s271
      %s289 = sphi 0, %s289
      %s291 = sphi 0, %s289
      %s292 = sphi 0, %s291
      %s306 = sphi 0, %s292
      %s310 = sphi 0, %s310
      %s312 = sphi 0, %s310
      %s313 = sphi 0, %s312
      %s327 = sphi 0, %s313
      %s331 = sphi 0, %s331
      %s333 = sphi 0, %s331
      %s334 = sphi 0, %s333
      %s348 = sphi 0, %s334
      %s354 = sphi 0, %s356
      %s357 = sphi 0, %s354
      %s358 = sphi 0, %s357
      %s374 = sphi 0, %s358
    $region4: #{gd_transformer_forward.1} parent=1 // loop_header_branch
      %27 = sbr.rel (%p25) target = $region8
    $region5: #{gd_transformer_forward.1} parent=1 // loop_body
      %s29 = ssub.s32 %s24, 1
      %s30 = ssub.s32 %s24, 2
      %s31 = sadd.s32 %s24, 1
      %s32 = ssub.s32 %s24, %s31
      %p33 = scmp.eq.s32.totalorder %s32, 0
      %s35 = sadd.s32 %s34, 1
      %s36 = scalar_select %p33, %s34, %s35
      %p39 = pneg %p33
      %p40 = scmp.eq.s32.totalorder %s24, 1
      %p41 = por %p39, %p40
      %p42 = scmp.ne.s32.totalorder %s34, %s37
      %p43 = scmp.eq.s32.totalorder %s24, 0
      %p44 = por %p42, %p43
      %p45 = scmp.ne.s32.totalorder %s34, %s37
      %p46 = scmp.eq.s32.totalorder %s29, 1
      %p47 = por %p45, %p46
      %p48 = scmp.ne.s32.totalorder %s37, %s38
      %p49 = scmp.eq.s32.totalorder %s29, 0
      %p50 = por %p48, %p49
      %p51 = scmp.ne.s32.totalorder %s37, %s38
      %p52 = scmp.eq.s32.totalorder %s30, 1
      %p53 = por %p51, %p52
      %p55 = scmp.ne.s32.totalorder %s38, %s54
      %p56 = scmp.eq.s32.totalorder %s30, 0
      %p57 = por %p55, %p56
      %s59 = sadd.s32 %s58, 1
      %p62 = scmp.eq.s32.totalorder %s24, 1
      %p63 = scmp.ne.s32.totalorder %s58, %s60
      %p64 = scmp.eq.s32.totalorder %s24, 0
      %p65 = por %p63, %p64
      %p66 = scmp.ne.s32.totalorder %s58, %s60
      %p67 = scmp.eq.s32.totalorder %s29, 1
      %p68 = por %p66, %p67
      %p69 = scmp.ne.s32.totalorder %s60, %s61
      %p70 = scmp.eq.s32.totalorder %s29, 0
      %p71 = por %p69, %p70
      %p72 = scmp.ne.s32.totalorder %s60, %s61
      %p73 = scmp.eq.s32.totalorder %s30, 1
      %p74 = por %p72, %p73
      %p76 = scmp.ne.s32.totalorder %s61, %s75
      %p77 = scmp.eq.s32.totalorder %s30, 0
      %p78 = por %p76, %p77
      %s80 = sadd.s32 %s79, 1
      %p83 = scmp.eq.s32.totalorder %s24, 1
      %p84 = scmp.ne.s32.totalorder %s79, %s81
      %p85 = scmp.eq.s32.totalorder %s24, 0
      %p86 = por %p84, %p85
      %p87 = scmp.ne.s32.totalorder %s79, %s81
      %p88 = scmp.eq.s32.totalorder %s29, 1
      %p89 = por %p87, %p88
      %p90 = scmp.ne.s32.totalorder %s81, %s82
      %p91 = scmp.eq.s32.totalorder %s29, 0
      %p92 = por %p90, %p91
      %p93 = scmp.ne.s32.totalorder %s81, %s82
      %p94 = scmp.eq.s32.totalorder %s30, 1
      %p95 = por %p93, %p94
      %p97 = scmp.ne.s32.totalorder %s82, %s96
      %p98 = scmp.eq.s32.totalorder %s30, 0
      %p99 = por %p97, %p98
      %s101 = sadd.s32 %s100, 1
      %p104 = scmp.eq.s32.totalorder %s24, 1
      %p105 = scmp.ne.s32.totalorder %s100, %s102
      %p106 = scmp.eq.s32.totalorder %s24, 0
      %p107 = por %p105, %p106
      %p108 = scmp.ne.s32.totalorder %s100, %s102
      %p109 = scmp.eq.s32.totalorder %s29, 1
      %p110 = por %p108, %p109
      %p111 = scmp.ne.s32.totalorder %s102, %s103
      %p112 = scmp.eq.s32.totalorder %s29, 0
      %p113 = por %p111, %p112
      %p114 = scmp.ne.s32.totalorder %s102, %s103
      %p115 = scmp.eq.s32.totalorder %s30, 1
      %p116 = por %p114, %p115
      %p118 = scmp.ne.s32.totalorder %s103, %s117
      %p119 = scmp.eq.s32.totalorder %s30, 0
      %p120 = por %p118, %p119
      %s122 = sadd.s32 %s121, 1
      %p125 = scmp.eq.s32.totalorder %s24, 1
      %p126 = scmp.ne.s32.totalorder %s121, %s123
      %p127 = scmp.eq.s32.totalorder %s24, 0
      %p128 = por %p126, %p127
      %p129 = scmp.ne.s32.totalorder %s121, %s123
      %p130 = scmp.eq.s32.totalorder %s29, 1
      %p131 = por %p129, %p130
      %p132 = scmp.ne.s32.totalorder %s123, %s124
      %p133 = scmp.eq.s32.totalorder %s29, 0
      %p134 = por %p132, %p133
      %p135 = scmp.ne.s32.totalorder %s123, %s124
      %p136 = scmp.eq.s32.totalorder %s30, 1
      %p137 = por %p135, %p136
      %p139 = scmp.ne.s32.totalorder %s124, %s138
      %p140 = scmp.eq.s32.totalorder %s30, 0
      %p141 = por %p139, %p140
      %s143 = sadd.s32 %s142, 1
      %p146 = scmp.eq.s32.totalorder %s24, 1
      %p147 = scmp.ne.s32.totalorder %s142, %s144
      %p148 = scmp.eq.s32.totalorder %s24, 0
      %p149 = por %p147, %p148
      %p150 = scmp.ne.s32.totalorder %s142, %s144
      %p151 = scmp.eq.s32.totalorder %s29, 1
      %p152 = por %p150, %p151
      %p153 = scmp.ne.s32.totalorder %s144, %s145
      %p154 = scmp.eq.s32.totalorder %s29, 0
      %p155 = por %p153, %p154
      %p156 = scmp.ne.s32.totalorder %s144, %s145
      %p157 = scmp.eq.s32.totalorder %s30, 1
      %p158 = por %p156, %p157
      %p160 = scmp.ne.s32.totalorder %s145, %s159
      %p161 = scmp.eq.s32.totalorder %s30, 0
      %p162 = por %p160, %p161
      %s164 = sadd.s32 %s163, 1
      %p167 = scmp.eq.s32.totalorder %s24, 1
      %p168 = scmp.ne.s32.totalorder %s163, %s165
      %p169 = scmp.eq.s32.totalorder %s24, 0
      %p170 = por %p168, %p169
      %p171 = scmp.ne.s32.totalorder %s163, %s165
      %p172 = scmp.eq.s32.totalorder %s29, 1
      %p173 = por %p171, %p172
      %p174 = scmp.ne.s32.totalorder %s165, %s166
      %p175 = scmp.eq.s32.totalorder %s29, 0
      %p176 = por %p174, %p175
      %p177 = scmp.ne.s32.totalorder %s165, %s166
      %p178 = scmp.eq.s32.totalorder %s30, 1
      %p179 = por %p177, %p178
      %p181 = scmp.ne.s32.totalorder %s166, %s180
      %p182 = scmp.eq.s32.totalorder %s30, 0
      %p183 = por %p181, %p182
      %s185 = sadd.s32 %s184, 1
      %p188 = scmp.eq.s32.totalorder %s24, 1
      %p189 = scmp.ne.s32.totalorder %s184, %s186
      %p190 = scmp.eq.s32.totalorder %s24, 0
      %p191 = por %p189, %p190
      %p192 = scmp.ne.s32.totalorder %s184, %s186
      %p193 = scmp.eq.s32.totalorder %s29, 1
      %p194 = por %p192, %p193
      %p195 = scmp.ne.s32.totalorder %s186, %s187
      %p196 = scmp.eq.s32.totalorder %s29, 0
      %p197 = por %p195, %p196
      %p198 = scmp.ne.s32.totalorder %s186, %s187
      %p199 = scmp.eq.s32.totalorder %s30, 1
      %p200 = por %p198, %p199
      %p202 = scmp.ne.s32.totalorder %s187, %s201
      %p203 = scmp.eq.s32.totalorder %s30, 0
      %p204 = por %p202, %p203
      %s206 = sadd.s32 %s205, 1
      %p209 = scmp.eq.s32.totalorder %s24, 1
      %p210 = scmp.ne.s32.totalorder %s205, %s207
      %p211 = scmp.eq.s32.totalorder %s24, 0
      %p212 = por %p210, %p211
      %p213 = scmp.ne.s32.totalorder %s205, %s207
      %p214 = scmp.eq.s32.totalorder %s29, 1
      %p215 = por %p213, %p214
      %p216 = scmp.ne.s32.totalorder %s207, %s208
      %p217 = scmp.eq.s32.totalorder %s29, 0
      %p218 = por %p216, %p217
      %p219 = scmp.ne.s32.totalorder %s207, %s208
      %p220 = scmp.eq.s32.totalorder %s30, 1
      %p221 = por %p219, %p220
      %p223 = scmp.ne.s32.totalorder %s208, %s222
      %p224 = scmp.eq.s32.totalorder %s30, 0
      %p225 = por %p223, %p224
      %s227 = sadd.s32 %s226, 1
      %p230 = scmp.eq.s32.totalorder %s24, 1
      %p231 = scmp.ne.s32.totalorder %s226, %s228
      %p232 = scmp.eq.s32.totalorder %s24, 0
      %p233 = por %p231, %p232
      %p234 = scmp.ne.s32.totalorder %s226, %s228
      %p235 = scmp.eq.s32.totalorder %s29, 1
      %p236 = por %p234, %p235
      %p237 = scmp.ne.s32.totalorder %s228, %s229
      %p238 = scmp.eq.s32.totalorder %s29, 0
      %p239 = por %p237, %p238
      %p240 = scmp.ne.s32.totalorder %s228, %s229
      %p241 = scmp.eq.s32.totalorder %s30, 1
      %p242 = por %p240, %p241
      %p244 = scmp.ne.s32.totalorder %s229, %s243
      %p245 = scmp.eq.s32.totalorder %s30, 0
      %p246 = por %p244, %p245
      %s248 = sadd.s32 %s247, 1
      %p251 = scmp.eq.s32.totalorder %s24, 1
      %p252 = scmp.ne.s32.totalorder %s247, %s249
      %p253 = scmp.eq.s32.totalorder %s24, 0
      %p254 = por %p252, %p253
      %p255 = scmp.ne.s32.totalorder %s247, %s249
      %p256 = scmp.eq.s32.totalorder %s29, 1
      %p257 = por %p255, %p256
      %p258 = scmp.ne.s32.totalorder %s249, %s250
      %p259 = scmp.eq.s32.totalorder %s29, 0
      %p260 = por %p258, %p259
      %p261 = scmp.ne.s32.totalorder %s249, %s250
      %p262 = scmp.eq.s32.totalorder %s30, 1
      %p263 = por %p261, %p262
      %p265 = scmp.ne.s32.totalorder %s250, %s264
      %p266 = scmp.eq.s32.totalorder %s30, 0
      %p267 = por %p265, %p266
      %s269 = sadd.s32 %s268, 1
      %p272 = scmp.eq.s32.totalorder %s24, 1
      %p273 = scmp.ne.s32.totalorder %s268, %s270
      %p274 = scmp.eq.s32.totalorder %s24, 0
      %p275 = por %p273, %p274
      %p276 = scmp.ne.s32.totalorder %s268, %s270
      %p277 = scmp.eq.s32.totalorder %s29, 1
      %p278 = por %p276, %p277
      %p279 = scmp.ne.s32.totalorder %s270, %s271
      %p280 = scmp.eq.s32.totalorder %s29, 0
      %p281 = por %p279, %p280
      %p282 = scmp.ne.s32.totalorder %s270, %s271
      %p283 = scmp.eq.s32.totalorder %s30, 1
      %p284 = por %p282, %p283
      %p286 = scmp.ne.s32.totalorder %s271, %s285
      %p287 = scmp.eq.s32.totalorder %s30, 0
      %p288 = por %p286, %p287
      %s290 = sadd.s32 %s289, 1
      %p293 = scmp.eq.s32.totalorder %s24, 1
      %p294 = scmp.ne.s32.totalorder %s289, %s291
      %p295 = scmp.eq.s32.totalorder %s24, 0
      %p296 = por %p294, %p295
      %p297 = scmp.ne.s32.totalorder %s289, %s291
      %p298 = scmp.eq.s32.totalorder %s29, 1
      %p299 = por %p297, %p298
      %p300 = scmp.ne.s32.totalorder %s291, %s292
      %p301 = scmp.eq.s32.totalorder %s29, 0
      %p302 = por %p300, %p301
      %p303 = scmp.ne.s32.totalorder %s291, %s292
      %p304 = scmp.eq.s32.totalorder %s30, 1
      %p305 = por %p303, %p304
      %p307 = scmp.ne.s32.totalorder %s292, %s306
      %p308 = scmp.eq.s32.totalorder %s30, 0
      %p309 = por %p307, %p308
      %s311 = sadd.s32 %s310, 1
      %p314 = scmp.eq.s32.totalorder %s24, 1
      %p315 = scmp.ne.s32.totalorder %s310, %s312
      %p316 = scmp.eq.s32.totalorder %s24, 0
      %p317 = por %p315, %p316
      %p318 = scmp.ne.s32.totalorder %s310, %s312
      %p319 = scmp.eq.s32.totalorder %s29, 1
      %p320 = por %p318, %p319
      %p321 = scmp.ne.s32.totalorder %s312, %s313
      %p322 = scmp.eq.s32.totalorder %s29, 0
      %p323 = por %p321, %p322
      %p324 = scmp.ne.s32.totalorder %s312, %s313
      %p325 = scmp.eq.s32.totalorder %s30, 1
      %p326 = por %p324, %p325
      %p328 = scmp.ne.s32.totalorder %s313, %s327
      %p329 = scmp.eq.s32.totalorder %s30, 0
      %p330 = por %p328, %p329
      %s332 = sadd.s32 %s331, 1
      %p335 = scmp.eq.s32.totalorder %s24, 1
      %p336 = scmp.ne.s32.totalorder %s331, %s333
      %p337 = scmp.eq.s32.totalorder %s24, 0
      %p338 = por %p336, %p337
      %p339 = scmp.ne.s32.totalorder %s331, %s333
      %p340 = scmp.eq.s32.totalorder %s29, 1
      %p341 = por %p339, %p340
      %p342 = scmp.ne.s32.totalorder %s333, %s334
      %p343 = scmp.eq.s32.totalorder %s29, 0
      %p344 = por %p342, %p343
      %p345 = scmp.ne.s32.totalorder %s333, %s334
      %p346 = scmp.eq.s32.totalorder %s30, 1
      %p347 = por %p345, %p346
      %p349 = scmp.ne.s32.totalorder %s334, %s348
      %p350 = scmp.eq.s32.totalorder %s30, 0
      %p351 = por %p349, %p350
      %s352 = ssub.s32 %s24, %s31
      %p353 = scmp.eq.s32.totalorder %s352, 0
      %s355 = sadd.s32 %s354, 1
      %s356 = scalar_select %p353, %s354, %s355
      %p359 = pneg %p353
      %p360 = scmp.eq.s32.totalorder %s24, 1
      %p361 = por %p359, %p360
      %p362 = scmp.ne.s32.totalorder %s354, %s357
      %p363 = scmp.eq.s32.totalorder %s24, 0
      %p364 = por %p362, %p363
      %p365 = scmp.ne.s32.totalorder %s354, %s357
      %p366 = scmp.eq.s32.totalorder %s29, 1
      %p367 = por %p365, %p366
      %p368 = scmp.ne.s32.totalorder %s357, %s358
      %p369 = scmp.eq.s32.totalorder %s29, 0
      %p370 = por %p368, %p369
      %p371 = scmp.ne.s32.totalorder %s357, %s358
      %p372 = scmp.eq.s32.totalorder %s30, 1
      %p373 = por %p371, %p372
      %p375 = scmp.ne.s32.totalorder %s358, %s374
      %p376 = scmp.eq.s32.totalorder %s30, 0
      %p377 = por %p375, %p376
      %p378 = scmp.le.s32.totalorder 1, %s24
      %p379 = scmp.lt.s32.totalorder %s24, 3
      %p380 = pnand %p378, %p379
      %p381 = pneg %p380
      // Predicated region
      $region9: #{gd_transformer_forward.1} parent=5 // pred_check
        _
      $region10: #{gd_transformer_forward.1} parent=5 // pred_check_branch
        %383 = sbr.rel (%p380) target = $region12
      $region11: #{gd_transformer_forward.1} parent=5 // pred_region
        %s384 = ssub.s32 %s24, 1
        // Predicated region
        $region13: #{gd_transformer_forward.1} parent=11 // pred_check
          %p385 = pneg %p71
        $region14: #{gd_transformer_forward.1} parent=11 // pred_check_branch
          %387 = sbr.rel (%p385) target = $region16
        $region15: #{gd_transformer_forward.1} parent=11 // pred_region
          %389 = vsyncadd [#allocation3], 0
          %s390 = sshll.u32 %s1, 4
          %s391 = int_to_ptr.hbm [resolvable:$true] %s390
          %s392 = sshll.u32 [#allocation2], 4
          %s393 = int_to_ptr.vmem [resolvable:$true] %s392
          %398 = dma.hbm_to_vmem [thread:$0]  %s391, 6144, %s393, [#allocation3], 192, 192, 12
        $region16: #{gd_transformer_forward.1} parent=11 // pred_fallthru
          _
        // Predicated region
        $region17: #{gd_transformer_forward.1} parent=11 // pred_check
          %p399 = pneg %p92
        $region18: #{gd_transformer_forward.1} parent=11 // pred_check_branch
          %401 = sbr.rel (%p399) target = $region20
        $region19: #{gd_transformer_forward.1} parent=11 // pred_region
          _
        $region20: #{gd_transformer_forward.1} parent=11 // pred_fallthru
          _
        // Predicated region
        $region21: #{gd_transformer_forward.1} parent=11 // pred_check
          %p402 = pneg %p113
        $region22: #{gd_transformer_forward.1} parent=11 // pred_check_branch
          %404 = sbr.rel (%p402) target = $region24
        $region23: #{gd_transformer_forward.1} parent=11 // pred_region
          _
        $region24: #{gd_transformer_forward.1} parent=11 // pred_fallthru
          _
        // Predicated region
        $region25: #{gd_transformer_forward.1} parent=11 // pred_check
          %p405 = pneg %p134
        $region26: #{gd_transformer_forward.1} parent=11 // pred_check_branch
          %407 = sbr.rel (%p405) target = $region28
        $region27: #{gd_transformer_forward.1} parent=11 // pred_region
          _
        $region28: #{gd_transformer_forward.1} parent=11 // pred_fallthru
          _
        // Predicated region
        $region29: #{gd_transformer_forward.1} parent=11 // pred_check
          %p408 = pneg %p155
        $region30: #{gd_transformer_forward.1} parent=11 // pred_check_branch
          %410 = sbr.rel (%p408) target = $region32
        $region31: #{gd_transformer_forward.1} parent=11 // pred_region
          _
        $region32: #{gd_transformer_forward.1} parent=11 // pred_fallthru
          _
        // Predicated region
        $region33: #{gd_transformer_forward.1} parent=11 // pred_check
          %p411 = pneg %p176
        $region34: #{gd_transformer_forward.1} parent=11 // pred_check_branch
          %413 = sbr.rel (%p411) target = $region36
        $region35: #{gd_transformer_forward.1} parent=11 // pred_region
          _
        $region36: #{gd_transformer_forward.1} parent=11 // pred_fallthru
          _
        // Predicated region
        $region37: #{gd_transformer_forward.1} parent=11 // pred_check
          %p414 = pneg %p197
        $region38: #{gd_transformer_forward.1} parent=11 // pred_check_branch
          %416 = sbr.rel (%p414) target = $region40
        $region39: #{gd_transformer_forward.1} parent=11 // pred_region
          %418 = vsyncadd [#allocation5], 0
          %s419 = sshll.u32 %s7, 4
          %s420 = int_to_ptr.hbm [resolvable:$true] %s419
          %s421 = sshll.u32 [#allocation4], 4
          %s422 = int_to_ptr.vmem [resolvable:$true] %s421
          %427 = dma.hbm_to_vmem [thread:$0]  %s420, 8192, %s422, [#allocation5], 256, 256, 16
        $region40: #{gd_transformer_forward.1} parent=11 // pred_fallthru
          _
        // Predicated region
        $region41: #{gd_transformer_forward.1} parent=11 // pred_check
          %p428 = pneg %p218
        $region42: #{gd_transformer_forward.1} parent=11 // pred_check_branch
          %430 = sbr.rel (%p428) target = $region44
        $region43: #{gd_transformer_forward.1} parent=11 // pred_region
          _
        $region44: #{gd_transformer_forward.1} parent=11 // pred_fallthru
          _
        // Predicated region
        $region45: #{gd_transformer_forward.1} parent=11 // pred_check
          %p431 = pneg %p239
        $region46: #{gd_transformer_forward.1} parent=11 // pred_check_branch
          %433 = sbr.rel (%p431) target = $region48
        $region47: #{gd_transformer_forward.1} parent=11 // pred_region
          %435 = vsyncadd [#allocation5], 0
          %s436 = sshll.u32 %s9, 4
          %s437 = int_to_ptr.hbm [resolvable:$true] %s436
          %s438 = sshll.u32 [#allocation6], 4
          %s439 = int_to_ptr.vmem [resolvable:$true] %s438
          %444 = dma.hbm_to_vmem [thread:$0]  %s437, 8192, %s439, [#allocation5], 64, 64, 4
        $region48: #{gd_transformer_forward.1} parent=11 // pred_fallthru
          _
        // Predicated region
        $region49: #{gd_transformer_forward.1} parent=11 // pred_check
          %p445 = pneg %p260
        $region50: #{gd_transformer_forward.1} parent=11 // pred_check_branch
          %447 = sbr.rel (%p445) target = $region52
        $region51: #{gd_transformer_forward.1} parent=11 // pred_region
          _
        $region52: #{gd_transformer_forward.1} parent=11 // pred_fallthru
          _
        // Predicated region
        $region53: #{gd_transformer_forward.1} parent=11 // pred_check
          %p448 = pneg %p281
        $region54: #{gd_transformer_forward.1} parent=11 // pred_check_branch
          %450 = sbr.rel (%p448) target = $region56
        $region55: #{gd_transformer_forward.1} parent=11 // pred_region
          _
        $region56: #{gd_transformer_forward.1} parent=11 // pred_fallthru
          _
        // Predicated region
        $region57: #{gd_transformer_forward.1} parent=11 // pred_check
          %p451 = pneg %p302
        $region58: #{gd_transformer_forward.1} parent=11 // pred_check_branch
          %453 = sbr.rel (%p451) target = $region60
        $region59: #{gd_transformer_forward.1} parent=11 // pred_region
          _
        $region60: #{gd_transformer_forward.1} parent=11 // pred_fallthru
          _
        // Predicated region
        $region61: #{gd_transformer_forward.1} parent=11 // pred_check
          %p454 = pneg %p323
        $region62: #{gd_transformer_forward.1} parent=11 // pred_check_branch
          %456 = sbr.rel (%p454) target = $region64
        $region63: #{gd_transformer_forward.1} parent=11 // pred_region
          %458 = vsyncadd [#allocation8], 0
          %s459 = sshll.u32 %s13, 4
          %s460 = int_to_ptr.hbm [resolvable:$true] %s459
          %s461 = sshll.u32 [#allocation7], 4
          %s462 = int_to_ptr.vmem [resolvable:$true] %s461
          %467 = dma.hbm_to_vmem [thread:$0]  %s460, 16384, %s462, [#allocation8], 1024, 1024, 64
        $region64: #{gd_transformer_forward.1} parent=11 // pred_fallthru
          _
        // Predicated region
        $region65: #{gd_transformer_forward.1} parent=11 // pred_check
          %p468 = pneg %p344
        $region66: #{gd_transformer_forward.1} parent=11 // pred_check_branch
          %470 = sbr.rel (%p468) target = $region68
        $region67: #{gd_transformer_forward.1} parent=11 // pred_region
          _
        $region68: #{gd_transformer_forward.1} parent=11 // pred_fallthru
          _
      $region12: #{gd_transformer_forward.1} parent=5 // pred_fallthru
        _
      %p471 = scmp.lt.s32.totalorder %s24, 2
      // Predicated region
      $region69: #{gd_transformer_forward.1} parent=5 // pred_check
        %p472 = pneg %p471
      $region70: #{gd_transformer_forward.1} parent=5 // pred_check_branch
        %474 = sbr.rel (%p472) target = $region72
      $region71: #{gd_transformer_forward.1} parent=5 // pred_region
        // Predicated region
        $region73: #{gd_transformer_forward.1} parent=71 // pred_check
          %p475 = pneg %p44
        $region74: #{gd_transformer_forward.1} parent=71 // pred_check_branch
          %477 = sbr.rel (%p475) target = $region76
        $region75: #{gd_transformer_forward.1} parent=71 // pred_region
          %p478 = scmp.lt.s32.totalorder %s24, 1
          %s479 = scalar_select %p478, %s24, 1
          %s480 = smul.addr %s479, 8
          %s481 = scalar_lea.vmem %s0, %s480
        $region76: #{gd_transformer_forward.1} parent=71 // pred_fallthru
          _
      $region72: #{gd_transformer_forward.1} parent=5 // pred_fallthru
        _
      %p482 = scmp.le.s32.totalorder 1, %s24
      %p483 = scmp.lt.s32.totalorder %s24, 3
      %p484 = pnand %p482, %p483
      %p485 = pneg %p484
      // Predicated region
      $region77: #{gd_transformer_forward.1} parent=5 // pred_check
        _
      $region78: #{gd_transformer_forward.1} parent=5 // pred_check_branch
        %487 = sbr.rel (%p484) target = $region80
      $region79: #{gd_transformer_forward.1} parent=5 // pred_region
        %s488 = ssub.s32 %s24, 1
        // Predicated region
        $region81: #{gd_transformer_forward.1} parent=79 // pred_check
          %p489 = pneg %p71
        $region82: #{gd_transformer_forward.1} parent=79 // pred_check_branch
          %491 = sbr.rel (%p489) target = $region84
        $region83: #{gd_transformer_forward.1} parent=79 // pred_region
          %493 = dma.done [#allocation3], 6144
        $region84: #{gd_transformer_forward.1} parent=79 // pred_fallthru
          _
        // Predicated region
        $region85: #{gd_transformer_forward.1} parent=79 // pred_check
          %p494 = pneg %p197
        $region86: #{gd_transformer_forward.1} parent=79 // pred_check_branch
          %496 = sbr.rel (%p494) target = $region88
        $region87: #{gd_transformer_forward.1} parent=79 // pred_region
          %498 = dma.done [#allocation5], 8192
        $region88: #{gd_transformer_forward.1} parent=79 // pred_fallthru
          _
        // Predicated region
        $region89: #{gd_transformer_forward.1} parent=79 // pred_check
          %p499 = pneg %p239
        $region90: #{gd_transformer_forward.1} parent=79 // pred_check_branch
          %501 = sbr.rel (%p499) target = $region92
        $region91: #{gd_transformer_forward.1} parent=79 // pred_region
          %503 = dma.done [#allocation5], 8192
        $region92: #{gd_transformer_forward.1} parent=79 // pred_fallthru
          _
        // Predicated region
        $region93: #{gd_transformer_forward.1} parent=79 // pred_check
          %p504 = pneg %p323
        $region94: #{gd_transformer_forward.1} parent=79 // pred_check_branch
          %506 = sbr.rel (%p504) target = $region96
        $region95: #{gd_transformer_forward.1} parent=79 // pred_region
          %508 = dma.done [#allocation8], 16384
        $region96: #{gd_transformer_forward.1} parent=79 // pred_fallthru
          _
        %p509 = scmp.lt.s32.totalorder %s29, 1
        %s510 = scalar_select %p509, %s29, 1
        %s511 = smul.addr %s510, 8
        %s512 = scalar_lea.vmem %s0, %s511
        %p513 = pneg %p50
        %p514 = pneg %p47
        %p515 = pneg %p71
        %p516 = pneg %p68
        %p517 = pneg %p92
        %p518 = pneg %p89
        %p519 = pneg %p113
        %p520 = pneg %p110
        %p521 = pneg %p134
        %p522 = pneg %p131
        %p523 = pneg %p155
        %p524 = pneg %p152
        %p525 = pneg %p176
        %p526 = pneg %p173
        %p527 = pneg %p197
        %p528 = pneg %p194
        %p529 = pneg %p218
        %p530 = pneg %p215
        %p531 = pneg %p239
        %p532 = pneg %p236
        %p533 = pneg %p260
        %p534 = pneg %p257
        %p535 = pneg %p281
        %p536 = pneg %p278
        %p537 = pneg %p302
        %p538 = pneg %p299
        %p539 = pneg %p323
        %p540 = pneg %p320
        %p541 = pneg %p344
        %p542 = pneg %p341
        %p543 = pneg %p370
        %p544 = pneg %p367
        %p545 = scmp.lt.s32.totalorder %s29, 1
        %s546 = scalar_select %p545, %s29, 1
        %s547 = smul.addr %s546, 16
        %s548 = smul.addr %s547, 8
        %s549 = scalar_lea.vmem %s15, %s548
        %p550 = scmp.lt.s32.totalorder %s29, 1
        %s551 = scalar_select %p550, %s29, 1
        %s552 = smul.addr %s551, 8
        %s553 = scalar_lea.vmem %s0, %s552
        %p554 = scmp.lt.s32.totalorder %s29, 1
        %s555 = scalar_select %p554, %s29, 1
        %s556 = smul.addr %s555, 16
        %s557 = smul.addr %s556, 8
        %s558 = scalar_lea.vmem %s15, %s557
        %v560 = vld [vmem:[%s553] sm:$0xff]
        %v561 = vpack.c.bf16 %v560, %v560
        %v562 = vld [vmem:[#allocation2] sm:$0xff]
        %v563 = vld [vmem:[#allocation2 + $0x8] sm:$0xf]
        %v564 = vld [vmem:[#allocation2 + $0xc] sm:$0xff]
        %v565 = vld [vmem:[#allocation2 + $0x14] sm:$0xf]
        %v566 = vld [vmem:[#allocation2 + $0x18] sm:$0xff]
        %v567 = vld [vmem:[#allocation2 + $0x20] sm:$0xf]
        %v568 = vld [vmem:[#allocation2 + $0x24] sm:$0xff]
        %v569 = vld [vmem:[#allocation2 + $0x2c] sm:$0xf]
        %v570 = vld [vmem:[#allocation2 + $0x30] sm:$0xff]
        %v571 = vld [vmem:[#allocation2 + $0x38] sm:$0xf]
        %v572 = vld [vmem:[#allocation2 + $0x3c] sm:$0xff]
        %v573 = vld [vmem:[#allocation2 + $0x44] sm:$0xf]
        %v574 = vld [vmem:[#allocation2 + $0x48] sm:$0xff]
        %v575 = vld [vmem:[#allocation2 + $0x50] sm:$0xf]
        %v576 = vld [vmem:[#allocation2 + $0x54] sm:$0xff]
        %v577 = vld [vmem:[#allocation2 + $0x5c] sm:$0xf]
        %v578 = vld [vmem:[#allocation2 + $0x60] sm:$0xff]
        %v579 = vld [vmem:[#allocation2 + $0x68] sm:$0xf]
        %v580 = vld [vmem:[#allocation2 + $0x6c] sm:$0xff]
        %v581 = vld [vmem:[#allocation2 + $0x74] sm:$0xf]
        %v582 = vld [vmem:[#allocation2 + $0x78] sm:$0xff]
        %v583 = vld [vmem:[#allocation2 + $0x80] sm:$0xf]
        %v584 = vld [vmem:[#allocation2 + $0x84] sm:$0xff]
        %v585 = vld [vmem:[#allocation2 + $0x8c] sm:$0xf]
        %v586 = vld [vmem:[#allocation2 + $0x90] sm:$0xff]
        %v587 = vld [vmem:[#allocation2 + $0x98] sm:$0xf]
        %v588 = vld [vmem:[#allocation2 + $0x9c] sm:$0xff]
        %v589 = vld [vmem:[#allocation2 + $0xa4] sm:$0xf]
        %v590 = vld [vmem:[#allocation2 + $0xa8] sm:$0xff]
        %v591 = vld [vmem:[#allocation2 + $0xb0] sm:$0xf]
        %v592 = vld [vmem:[#allocation2 + $0xb4] sm:$0xff]
        %v593 = vld [vmem:[#allocation2 + $0xbc] sm:$0xf]
        %v594 = vld [vmem:[%s2] sm:$0x7]
        %v596 = vperm.slane %v594, 0
        %v597 = vperm.slane %v594, 1
        %v598 = vperm.slane %v594, 2
        %v634 = vunpack.c.l.b16 %v562
        %v635 = vunpack.c.h.b16 %v562
        %v636 = vunpack.c.l.b16 %v563
        %v637 = vunpack.c.l.b16 %v564
        %v638 = vunpack.c.h.b16 %v564
        %v639 = vunpack.c.l.b16 %v565
        %v640 = vunpack.c.l.b16 %v566
        %v641 = vunpack.c.h.b16 %v566
        %v642 = vunpack.c.l.b16 %v567
        %v643 = vunpack.c.l.b16 %v568
        %v644 = vunpack.c.h.b16 %v568
        %v645 = vunpack.c.l.b16 %v569
        %v646 = vunpack.c.l.b16 %v570
        %v647 = vunpack.c.h.b16 %v570
        %v648 = vunpack.c.l.b16 %v571
        %v649 = vunpack.c.l.b16 %v572
        %v650 = vunpack.c.h.b16 %v572
        %v651 = vunpack.c.l.b16 %v573
        %v652 = vunpack.c.l.b16 %v574
        %v653 = vunpack.c.h.b16 %v574
        %v654 = vunpack.c.l.b16 %v575
        %v655 = vunpack.c.l.b16 %v576
        %v656 = vunpack.c.h.b16 %v576
        %v657 = vunpack.c.l.b16 %v577
        %v658 = vunpack.c.l.b16 %v578
        %v659 = vunpack.c.h.b16 %v578
        %v660 = vunpack.c.l.b16 %v579
        %v661 = vunpack.c.l.b16 %v580
        %v662 = vunpack.c.h.b16 %v580
        %v663 = vunpack.c.l.b16 %v581
        %v664 = vunpack.c.l.b16 %v582
        %v665 = vunpack.c.h.b16 %v582
        %v666 = vunpack.c.l.b16 %v583
        %v667 = vunpack.c.l.b16 %v584
        %v668 = vunpack.c.h.b16 %v584
        %v669 = vunpack.c.l.b16 %v585
        %v670 = vunpack.c.l.b16 %v586
        %v671 = vunpack.c.h.b16 %v586
        %v672 = vunpack.c.l.b16 %v587
        %v673 = vunpack.c.l.b16 %v588
        %v674 = vunpack.c.h.b16 %v588
        %v675 = vunpack.c.l.b16 %v589
        %v676 = vunpack.c.l.b16 %v590
        %v677 = vunpack.c.h.b16 %v590
        %v678 = vunpack.c.l.b16 %v591
        %v679 = vunpack.c.l.b16 %v592
        %v680 = vunpack.c.h.b16 %v592
        %v681 = vunpack.c.l.b16 %v593
        %v682 = vpack.c.b16 %v637, %v634
        %v683 = vpack.c.b16 %v638, %v635
        %v684 = vpack.c.b16 %v639, %v636
        %v685 = vpack.c.b16 %v643, %v640
        %v686 = vpack.c.b16 %v644, %v641
        %v687 = vpack.c.b16 %v645, %v642
        %v688 = vpack.c.b16 %v649, %v646
        %v689 = vpack.c.b16 %v650, %v647
        %v690 = vpack.c.b16 %v651, %v648
        %v691 = vpack.c.b16 %v655, %v652
        %v692 = vpack.c.b16 %v656, %v653
        %v693 = vpack.c.b16 %v657, %v654
        %v694 = vpack.c.b16 %v661, %v658
        %v695 = vpack.c.b16 %v662, %v659
        %v696 = vpack.c.b16 %v663, %v660
        %v697 = vpack.c.b16 %v667, %v664
        %v698 = vpack.c.b16 %v668, %v665
        %v699 = vpack.c.b16 %v669, %v666
        %v700 = vpack.c.b16 %v673, %v670
        %v701 = vpack.c.b16 %v674, %v671
        %v702 = vpack.c.b16 %v675, %v672
        %v703 = vpack.c.b16 %v679, %v676
        %v704 = vpack.c.b16 %v680, %v677
        %v705 = vpack.c.b16 %v681, %v678
        %730 = vmatpush.bf16.msra.mxu0 %v703
        %731 = vmatpush.bf16.msra.mxu0 %v700
        %732 = vmatpush.bf16.msra.mxu0 %v697
        %733 = vmatpush.bf16.msra.mxu0 %v694
        %734 = vmatpush.bf16.msra.mxu0 %v691
        %735 = vmatpush.bf16.msra.mxu0 %v688
        %736 = vmatpush.bf16.msra.mxu0 %v685
        %737 = vmatpush.bf16.msra.mxu0 %v682
        %738 = vmatmul.bf16.gmra.mxu0 %v561
        %v739 = vpop.f32.mrf.mxu0
        %v740 = vadd.f32 %v596, %v739
        %v741 = vpop.f32.mrf.mxu0
        %742 = vdwg.mxu0
        %743 = vmatpush.bf16.msra.mxu0 %v704
        %744 = vmatpush.bf16.msra.mxu0 %v701
        %745 = vmatpush.bf16.msra.mxu0 %v698
        %746 = vmatpush.bf16.msra.mxu0 %v695
        %747 = vmatpush.bf16.msra.mxu0 %v692
        %748 = vmatpush.bf16.msra.mxu0 %v689
        %749 = vmatpush.bf16.msra.mxu0 %v686
        %750 = vmatpush.bf16.msra.mxu0 %v683
        %751 = vmatmul.bf16.gmra.mxu0 %v561
        %v752 = vpop.f32.mrf.mxu0
        %v753 = vadd.f32 %v597, %v752
        %v754 = vpop.f32.mrf.mxu0
        %755 = vdwg.mxu0
        %756 = vmatpush.bf16.msra.mxu0 %v705
        %757 = vmatpush.bf16.msra.mxu0 %v702
        %758 = vmatpush.bf16.msra.mxu0 %v699
        %759 = vmatpush.bf16.msra.mxu0 %v696
        %760 = vmatpush.bf16.msra.mxu0 %v693
        %761 = vmatpush.bf16.msra.mxu0 %v690
        %762 = vmatpush.bf16.msra.mxu0 %v687
        %763 = vmatpush.bf16.msra.mxu0 %v684
        %764 = vmatmul.bf16.gmra.mxu0 %v561
        %v765 = vpop.f32.mrf.mxu0
        %v766 = vadd.f32 %v598, %v765
        %v767 = vpop.f32.mrf.mxu0
        %768 = vdwg.mxu0
        %v769 = vpack.c.bf16 %v740, %v740
        %v770 = vpack.c.bf16 %v753, %v753
        %v771 = vpack.c.bf16 %v766, %v766
        %vm772 = vcmask 130048
        %v774 = vsel %vm772, %v769, 0
        %v777 = vsel %vm772, %v770, 0
        %779 = vmatpush.bf16.xpose.msra.mxu0 0
        %780 = vmatpush.bf16.xpose.msra.mxu0 0
        %781 = vmatpush.bf16.xpose.msra.mxu0 0
        %782 = vmatpush.bf16.xpose.msra.mxu0 0
        %783 = vmatpush.bf16.xpose.msra.mxu0 0
        %784 = vmatpush.bf16.xpose.msra.mxu0 0
        %785 = vmatpush.bf16.xpose.msra.mxu0 0
        %786 = vmatpush.bf16.xpose.msra.mxu0 %v777
        %787 = vmatmul.bf16.gmra.mxu0 %v774
        %v788 = vpop.f32.mrf.mxu0
        %v789 = vadd.f32 0.0, %v788
        %v790 = vpop.f32.mrf.mxu0
        %791 = vdwg.mxu0
        %vm792 = vcmask 64512
        %v793 = vsel %vm792, %v789, -inf
        %794 = vmax.xlane.f32.xlu0 %v793
        %v795 = vpop.xlane.xlu0 %794
        %v796 = vsub.f32 %v789, %v795
        %v797 = vmul.f32 %v796, 1.442695
        %v798 = vpow.pop %v797
        %v799 = vsel %vm792, %v798, 0.0
        %800 = vadd.xlane.f32.xlu0 %v799
        %v801 = vpop.xlane.xlu0 %800
        %v802 = vrcp.pop %v801
        %v803 = vmul.f32 %v798, %v802
        %v804 = vpack.c.bf16 %v803, %v803
        %v806 = vsel %vm792, %v804, 0
        %vm808 = vcmask 1043456
        %v810 = vsel %vm808, %v771, 0
        %812 = vmatpush.bf16.msra.mxu0 0
        %813 = vmatpush.bf16.msra.mxu0 0
        %814 = vmatpush.bf16.msra.mxu0 0
        %815 = vmatpush.bf16.msra.mxu0 0
        %816 = vmatpush.bf16.msra.mxu0 0
        %817 = vmatpush.bf16.msra.mxu0 0
        %818 = vmatpush.bf16.msra.mxu0 0
        %819 = vmatpush.bf16.msra.mxu0 %v810
        %820 = vmatmul.bf16.gmra.mxu0 %v806
        %v821 = vpop.f32.mrf.mxu0
        %v822 = vadd.f32 0.0, %v821
        %v823 = vpop.f32.mrf.mxu0
        %824 = vdwg.mxu0
        %v825 = vpack.c.bf16 %v822, %v822
        %v826 = vld [vmem:[%s3] sm:$0xf]
        %v827 = vld [vmem:[%s3 + $0x4] sm:$0xf]
        %829 = vrot.lane.b32.xlu0 %v769, 112
        %v830 = vpop.permute.xlu0 %829
        %832 = vrot.lane.b32.xlu0 %v770, 112
        %v833 = vpop.permute.xlu0 %832
        %v835 = vsel %vm772, %v830, 0
        %v838 = vsel %vm772, %v833, 0
        %840 = vmatpush.bf16.xpose.msra.mxu0 0
        %841 = vmatpush.bf16.xpose.msra.mxu0 0
        %842 = vmatpush.bf16.xpose.msra.mxu0 0
        %843 = vmatpush.bf16.xpose.msra.mxu0 0
        %844 = vmatpush.bf16.xpose.msra.mxu0 0
        %845 = vmatpush.bf16.xpose.msra.mxu0 0
        %846 = vmatpush.bf16.xpose.msra.mxu0 0
        %847 = vmatpush.bf16.xpose.msra.mxu0 %v838
        %848 = vmatmul.bf16.gmra.mxu0 %v835
        %v849 = vpop.f32.mrf.mxu0
        %v850 = vadd.f32 0.0, %v849
        %v851 = vpop.f32.mrf.mxu0
        %852 = vdwg.mxu0
        %v853 = vsel %vm792, %v850, -inf
        %854 = vmax.xlane.f32.xlu0 %v853
        %v855 = vpop.xlane.xlu0 %854
        %v856 = vsub.f32 %v850, %v855
        %v857 = vmul.f32 %v856, 1.442695
        %v858 = vpow.pop %v857
        %v859 = vsel %vm792, %v858, 0.0
        %860 = vadd.xlane.f32.xlu0 %v859
        %v861 = vpop.xlane.xlu0 %860
        %v862 = vrcp.pop %v861
        %v863 = vmul.f32 %v858, %v862
        %v864 = vpack.c.bf16 %v863, %v863
        %866 = vrot.lane.b32.xlu0 %v771, 112
        %v867 = vpop.permute.xlu0 %866
        %v869 = vsel %vm792, %v864, 0
        %v872 = vsel %vm808, %v867, 0
        %874 = vmatpush.bf16.msra.mxu0 0
        %875 = vmatpush.bf16.msra.mxu0 0
        %876 = vmatpush.bf16.msra.mxu0 0
        %877 = vmatpush.bf16.msra.mxu0 0
        %878 = vmatpush.bf16.msra.mxu0 0
        %879 = vmatpush.bf16.msra.mxu0 0
        %880 = vmatpush.bf16.msra.mxu0 0
        %881 = vmatpush.bf16.msra.mxu0 %v872
        %882 = vmatmul.bf16.gmra.mxu0 %v869
        %v883 = vpop.f32.mrf.mxu0
        %v884 = vadd.f32 0.0, %v883
        %v885 = vpop.f32.mrf.mxu0
        %886 = vdwg.mxu0
        %v887 = vpack.c.bf16 %v884, %v884
        %s888 = scalar_lea.vmem %s3, 8
        %v889 = vld [vmem:[%s888] sm:$0xf]
        %v890 = vld [vmem:[%s888 + $0x4] sm:$0xf]
        %v893 = vunpack.c.l.b16 %v889
        %v894 = vunpack.c.l.b16 %v890
        %v895 = vpack.c.b16 %v894, %v893
        %v898 = vsel %vm772, %v887, 0
        %900 = vmatpush.bf16.msra.mxu0 0
        %901 = vmatpush.bf16.msra.mxu0 0
        %902 = vmatpush.bf16.msra.mxu0 0
        %903 = vmatpush.bf16.msra.mxu0 0
        %904 = vmatpush.bf16.msra.mxu0 0
        %905 = vmatpush.bf16.msra.mxu0 0
        %906 = vmatpush.bf16.msra.mxu0 0
        %907 = vmatpush.bf16.msra.mxu0 %v895
        %908 = vmatmul.bf16.gmra.mxu0 %v898
        %v909 = vpop.f32.mrf.mxu0
        %v910 = vadd.f32 0.0, %v909
        %v911 = vpop.f32.mrf.mxu0
        %912 = vdwg.mxu0
        %v915 = vunpack.c.l.b16 %v826
        %v916 = vunpack.c.l.b16 %v827
        %v917 = vpack.c.b16 %v916, %v915
        %v920 = vsel %vm772, %v825, 0
        %922 = vmatpush.bf16.msra.mxu0 0
        %923 = vmatpush.bf16.msra.mxu0 0
        %924 = vmatpush.bf16.msra.mxu0 0
        %925 = vmatpush.bf16.msra.mxu0 0
        %926 = vmatpush.bf16.msra.mxu0 0
        %927 = vmatpush.bf16.msra.mxu0 0
        %928 = vmatpush.bf16.msra.mxu0 0
        %929 = vmatpush.bf16.msra.mxu0 %v917
        %930 = vmatmul.bf16.gmra.mxu0 %v920
        %v931 = vpop.f32.mrf.mxu0
        %v932 = vadd.f32 %v910, %v931
        %v933 = vpop.f32.mrf.mxu0
        %934 = vdwg.mxu0
        %935 = vrot.lane.b32.xlu0 %v769, 96
        %v936 = vpop.permute.xlu0 %935
        %937 = vrot.lane.b32.xlu0 %v770, 96
        %v938 = vpop.permute.xlu0 %937
        %v940 = vsel %vm772, %v936, 0
        %v943 = vsel %vm772, %v938, 0
        %945 = vmatpush.bf16.xpose.msra.mxu0 0
        %946 = vmatpush.bf16.xpose.msra.mxu0 0
        %947 = vmatpush.bf16.xpose.msra.mxu0 0
        %948 = vmatpush.bf16.xpose.msra.mxu0 0
        %949 = vmatpush.bf16.xpose.msra.mxu0 0
        %950 = vmatpush.bf16.xpose.msra.mxu0 0
        %951 = vmatpush.bf16.xpose.msra.mxu0 0
        %952 = vmatpush.bf16.xpose.msra.mxu0 %v943
        %953 = vmatmul.bf16.gmra.mxu0 %v940
        %v954 = vpop.f32.mrf.mxu0
        %v955 = vadd.f32 0.0, %v954
        %v956 = vpop.f32.mrf.mxu0
        %957 = vdwg.mxu0
        %v958 = vsel %vm792, %v955, -inf
        %959 = vmax.xlane.f32.xlu0 %v958
        %v960 = vpop.xlane.xlu0 %959
        %v961 = vsub.f32 %v955, %v960
        %v962 = vmul.f32 %v961, 1.442695
        %v963 = vpow.pop %v962
        %v964 = vsel %vm792, %v963, 0.0
        %965 = vadd.xlane.f32.xlu0 %v964
        %v966 = vpop.xlane.xlu0 %965
        %v967 = vrcp.pop %v966
        %v968 = vmul.f32 %v963, %v967
        %v969 = vpack.c.bf16 %v968, %v968
        %970 = vrot.lane.b32.xlu0 %v771, 96
        %v971 = vpop.permute.xlu0 %970
        %v973 = vsel %vm792, %v969, 0
        %v976 = vsel %vm808, %v971, 0
        %978 = vmatpush.bf16.msra.mxu0 0
        %979 = vmatpush.bf16.msra.mxu0 0
        %980 = vmatpush.bf16.msra.mxu0 0
        %981 = vmatpush.bf16.msra.mxu0 0
        %982 = vmatpush.bf16.msra.mxu0 0
        %983 = vmatpush.bf16.msra.mxu0 0
        %984 = vmatpush.bf16.msra.mxu0 0
        %985 = vmatpush.bf16.msra.mxu0 %v976
        %986 = vmatmul.bf16.gmra.mxu0 %v973
        %v987 = vpop.f32.mrf.mxu0
        %v988 = vadd.f32 0.0, %v987
        %v989 = vpop.f32.mrf.mxu0
        %990 = vdwg.mxu0
        %v991 = vpack.c.bf16 %v988, %v988
        %s992 = scalar_lea.vmem %s3, 16
        %v993 = vld [vmem:[%s992] sm:$0xf]
        %v994 = vld [vmem:[%s992 + $0x4] sm:$0xf]
        %v997 = vunpack.c.l.b16 %v993
        %v998 = vunpack.c.l.b16 %v994
        %v999 = vpack.c.b16 %v998, %v997
        %v1002 = vsel %vm772, %v991, 0
        %1004 = vmatpush.bf16.msra.mxu0 0
        %1005 = vmatpush.bf16.msra.mxu0 0
        %1006 = vmatpush.bf16.msra.mxu0 0
        %1007 = vmatpush.bf16.msra.mxu0 0
        %1008 = vmatpush.bf16.msra.mxu0 0
        %1009 = vmatpush.bf16.msra.mxu0 0
        %1010 = vmatpush.bf16.msra.mxu0 0
        %1011 = vmatpush.bf16.msra.mxu0 %v999
        %1012 = vmatmul.bf16.gmra.mxu0 %v1002
        %v1013 = vpop.f32.mrf.mxu0
        %v1014 = vadd.f32 0.0, %v1013
        %v1015 = vpop.f32.mrf.mxu0
        %1016 = vdwg.mxu0
        %v1017 = vadd.f32 %v932, %v1014
        %1018 = vrot.lane.b32.xlu0 %v769, 80
        %v1019 = vpop.permute.xlu0 %1018
        %1020 = vrot.lane.b32.xlu0 %v770, 80
        %v1021 = vpop.permute.xlu0 %1020
        %v1023 = vsel %vm772, %v1019, 0
        %v1026 = vsel %vm772, %v1021, 0
        %1028 = vmatpush.bf16.xpose.msra.mxu0 0
        %1029 = vmatpush.bf16.xpose.msra.mxu0 0
        %1030 = vmatpush.bf16.xpose.msra.mxu0 0
        %1031 = vmatpush.bf16.xpose.msra.mxu0 0
        %1032 = vmatpush.bf16.xpose.msra.mxu0 0
        %1033 = vmatpush.bf16.xpose.msra.mxu0 0
        %1034 = vmatpush.bf16.xpose.msra.mxu0 0
        %1035 = vmatpush.bf16.xpose.msra.mxu0 %v1026
        %1036 = vmatmul.bf16.gmra.mxu0 %v1023
        %v1037 = vpop.f32.mrf.mxu0
        %v1038 = vadd.f32 0.0, %v1037
        %v1039 = vpop.f32.mrf.mxu0
        %1040 = vdwg.mxu0
        %v1041 = vsel %vm792, %v1038, -inf
        %1042 = vmax.xlane.f32.xlu0 %v1041
        %v1043 = vpop.xlane.xlu0 %1042
        %v1044 = vsub.f32 %v1038, %v1043
        %v1045 = vmul.f32 %v1044, 1.442695
        %v1046 = vpow.pop %v1045
        %v1047 = vsel %vm792, %v1046, 0.0
        %1048 = vadd.xlane.f32.xlu0 %v1047
        %v1049 = vpop.xlane.xlu0 %1048
        %v1050 = vrcp.pop %v1049
        %v1051 = vmul.f32 %v1046, %v1050
        %v1052 = vpack.c.bf16 %v1051, %v1051
        %1053 = vrot.lane.b32.xlu0 %v771, 80
        %v1054 = vpop.permute.xlu0 %1053
        %v1056 = vsel %vm792, %v1052, 0
        %v1059 = vsel %vm808, %v1054, 0
        %1061 = vmatpush.bf16.msra.mxu0 0
        %1062 = vmatpush.bf16.msra.mxu0 0
        %1063 = vmatpush.bf16.msra.mxu0 0
        %1064 = vmatpush.bf16.msra.mxu0 0
        %1065 = vmatpush.bf16.msra.mxu0 0
        %1066 = vmatpush.bf16.msra.mxu0 0
        %1067 = vmatpush.bf16.msra.mxu0 0
        %1068 = vmatpush.bf16.msra.mxu0 %v1059
        %1069 = vmatmul.bf16.gmra.mxu0 %v1056
        %v1070 = vpop.f32.mrf.mxu0
        %v1071 = vadd.f32 0.0, %v1070
        %v1072 = vpop.f32.mrf.mxu0
        %1073 = vdwg.mxu0
        %v1074 = vpack.c.bf16 %v1071, %v1071
        %s1075 = scalar_lea.vmem %s3, 24
        %v1076 = vld [vmem:[%s1075] sm:$0xf]
        %v1077 = vld [vmem:[%s1075 + $0x4] sm:$0xf]
        %v1080 = vunpack.c.l.b16 %v1076
        %v1081 = vunpack.c.l.b16 %v1077
        %v1082 = vpack.c.b16 %v1081, %v1080
        %v1085 = vsel %vm772, %v1074, 0
        %1087 = vmatpush.bf16.msra.mxu0 0
        %1088 = vmatpush.bf16.msra.mxu0 0
        %1089 = vmatpush.bf16.msra.mxu0 0
        %1090 = vmatpush.bf16.msra.mxu0 0
        %1091 = vmatpush.bf16.msra.mxu0 0
        %1092 = vmatpush.bf16.msra.mxu0 0
        %1093 = vmatpush.bf16.msra.mxu0 0
        %1094 = vmatpush.bf16.msra.mxu0 %v1082
        %1095 = vmatmul.bf16.gmra.mxu0 %v1085
        %v1096 = vpop.f32.mrf.mxu0
        %v1097 = vadd.f32 0.0, %v1096
        %v1098 = vpop.f32.mrf.mxu0
        %1099 = vdwg.mxu0
        %v1100 = vadd.f32 %v1017, %v1097
        %1101 = vrot.lane.b32.xlu0 %v769, 64
        %v1102 = vpop.permute.xlu0 %1101
        %1103 = vrot.lane.b32.xlu0 %v770, 64
        %v1104 = vpop.permute.xlu0 %1103
        %v1106 = vsel %vm772, %v1102, 0
        %v1109 = vsel %vm772, %v1104, 0
        %1111 = vmatpush.bf16.xpose.msra.mxu0 0
        %1112 = vmatpush.bf16.xpose.msra.mxu0 0
        %1113 = vmatpush.bf16.xpose.msra.mxu0 0
        %1114 = vmatpush.bf16.xpose.msra.mxu0 0
        %1115 = vmatpush.bf16.xpose.msra.mxu0 0
        %1116 = vmatpush.bf16.xpose.msra.mxu0 0
        %1117 = vmatpush.bf16.xpose.msra.mxu0 0
        %1118 = vmatpush.bf16.xpose.msra.mxu0 %v1109
        %1119 = vmatmul.bf16.gmra.mxu0 %v1106
        %v1120 = vpop.f32.mrf.mxu0
        %v1121 = vadd.f32 0.0, %v1120
        %v1122 = vpop.f32.mrf.mxu0
        %1123 = vdwg.mxu0
        %v1124 = vsel %vm792, %v1121, -inf
        %1125 = vmax.xlane.f32.xlu0 %v1124
        %v1126 = vpop.xlane.xlu0 %1125
        %v1127 = vsub.f32 %v1121, %v1126
        %v1128 = vmul.f32 %v1127, 1.442695
        %v1129 = vpow.pop %v1128
        %v1130 = vsel %vm792, %v1129, 0.0
        %1131 = vadd.xlane.f32.xlu0 %v1130
        %v1132 = vpop.xlane.xlu0 %1131
        %v1133 = vrcp.pop %v1132
        %v1134 = vmul.f32 %v1129, %v1133
        %v1135 = vpack.c.bf16 %v1134, %v1134
        %1136 = vrot.lane.b32.xlu0 %v771, 64
        %v1137 = vpop.permute.xlu0 %1136
        %v1139 = vsel %vm792, %v1135, 0
        %v1142 = vsel %vm808, %v1137, 0
        %1144 = vmatpush.bf16.msra.mxu0 0
        %1145 = vmatpush.bf16.msra.mxu0 0
        %1146 = vmatpush.bf16.msra.mxu0 0
        %1147 = vmatpush.bf16.msra.mxu0 0
        %1148 = vmatpush.bf16.msra.mxu0 0
        %1149 = vmatpush.bf16.msra.mxu0 0
        %1150 = vmatpush.bf16.msra.mxu0 0
        %1151 = vmatpush.bf16.msra.mxu0 %v1142
        %1152 = vmatmul.bf16.gmra.mxu0 %v1139
        %v1153 = vpop.f32.mrf.mxu0
        %v1154 = vadd.f32 0.0, %v1153
        %v1155 = vpop.f32.mrf.mxu0
        %1156 = vdwg.mxu0
        %v1157 = vpack.c.bf16 %v1154, %v1154
        %s1158 = scalar_lea.vmem %s3, 32
        %v1159 = vld [vmem:[%s1158] sm:$0xf]
        %v1160 = vld [vmem:[%s1158 + $0x4] sm:$0xf]
        %v1163 = vunpack.c.l.b16 %v1159
        %v1164 = vunpack.c.l.b16 %v1160
        %v1165 = vpack.c.b16 %v1164, %v1163
        %v1168 = vsel %vm772, %v1157, 0
        %1170 = vmatpush.bf16.msra.mxu0 0
        %1171 = vmatpush.bf16.msra.mxu0 0
        %1172 = vmatpush.bf16.msra.mxu0 0
        %1173 = vmatpush.bf16.msra.mxu0 0
        %1174 = vmatpush.bf16.msra.mxu0 0
        %1175 = vmatpush.bf16.msra.mxu0 0
        %1176 = vmatpush.bf16.msra.mxu0 0
        %1177 = vmatpush.bf16.msra.mxu0 %v1165
        %1178 = vmatmul.bf16.gmra.mxu0 %v1168
        %v1179 = vpop.f32.mrf.mxu0
        %v1180 = vadd.f32 0.0, %v1179
        %v1181 = vpop.f32.mrf.mxu0
        %1182 = vdwg.mxu0
        %v1183 = vadd.f32 %v1100, %v1180
        %1184 = vrot.lane.b32.xlu0 %v769, 48
        %v1185 = vpop.permute.xlu0 %1184
        %1186 = vrot.lane.b32.xlu0 %v770, 48
        %v1187 = vpop.permute.xlu0 %1186
        %v1189 = vsel %vm772, %v1185, 0
        %v1192 = vsel %vm772, %v1187, 0
        %1194 = vmatpush.bf16.xpose.msra.mxu0 0
        %1195 = vmatpush.bf16.xpose.msra.mxu0 0
        %1196 = vmatpush.bf16.xpose.msra.mxu0 0
        %1197 = vmatpush.bf16.xpose.msra.mxu0 0
        %1198 = vmatpush.bf16.xpose.msra.mxu0 0
        %1199 = vmatpush.bf16.xpose.msra.mxu0 0
        %1200 = vmatpush.bf16.xpose.msra.mxu0 0
        %1201 = vmatpush.bf16.xpose.msra.mxu0 %v1192
        %1202 = vmatmul.bf16.gmra.mxu0 %v1189
        %v1203 = vpop.f32.mrf.mxu0
        %v1204 = vadd.f32 0.0, %v1203
        %v1205 = vpop.f32.mrf.mxu0
        %1206 = vdwg.mxu0
        %v1207 = vsel %vm792, %v1204, -inf
        %1208 = vmax.xlane.f32.xlu0 %v1207
        %v1209 = vpop.xlane.xlu0 %1208
        %v1210 = vsub.f32 %v1204, %v1209
        %v1211 = vmul.f32 %v1210, 1.442695
        %v1212 = vpow.pop %v1211
        %v1213 = vsel %vm792, %v1212, 0.0
        %1214 = vadd.xlane.f32.xlu0 %v1213
        %v1215 = vpop.xlane.xlu0 %1214
        %v1216 = vrcp.pop %v1215
        %v1217 = vmul.f32 %v1212, %v1216
        %v1218 = vpack.c.bf16 %v1217, %v1217
        %1219 = vrot.lane.b32.xlu0 %v771, 48
        %v1220 = vpop.permute.xlu0 %1219
        %v1222 = vsel %vm792, %v1218, 0
        %v1225 = vsel %vm808, %v1220, 0
        %1227 = vmatpush.bf16.msra.mxu0 0
        %1228 = vmatpush.bf16.msra.mxu0 0
        %1229 = vmatpush.bf16.msra.mxu0 0
        %1230 = vmatpush.bf16.msra.mxu0 0
        %1231 = vmatpush.bf16.msra.mxu0 0
        %1232 = vmatpush.bf16.msra.mxu0 0
        %1233 = vmatpush.bf16.msra.mxu0 0
        %1234 = vmatpush.bf16.msra.mxu0 %v1225
        %1235 = vmatmul.bf16.gmra.mxu0 %v1222
        %v1236 = vpop.f32.mrf.mxu0
        %v1237 = vadd.f32 0.0, %v1236
        %v1238 = vpop.f32.mrf.mxu0
        %1239 = vdwg.mxu0
        %v1240 = vpack.c.bf16 %v1237, %v1237
        %s1241 = scalar_lea.vmem %s3, 40
        %v1242 = vld [vmem:[%s1241] sm:$0xf]
        %v1243 = vld [vmem:[%s1241 + $0x4] sm:$0xf]
        %v1246 = vunpack.c.l.b16 %v1242
        %v1247 = vunpack.c.l.b16 %v1243
        %v1248 = vpack.c.b16 %v1247, %v1246
        %v1251 = vsel %vm772, %v1240, 0
        %1253 = vmatpush.bf16.msra.mxu0 0
        %1254 = vmatpush.bf16.msra.mxu0 0
        %1255 = vmatpush.bf16.msra.mxu0 0
        %1256 = vmatpush.bf16.msra.mxu0 0
        %1257 = vmatpush.bf16.msra.mxu0 0
        %1258 = vmatpush.bf16.msra.mxu0 0
        %1259 = vmatpush.bf16.msra.mxu0 0
        %1260 = vmatpush.bf16.msra.mxu0 %v1248
        %1261 = vmatmul.bf16.gmra.mxu0 %v1251
        %v1262 = vpop.f32.mrf.mxu0
        %v1263 = vadd.f32 0.0, %v1262
        %v1264 = vpop.f32.mrf.mxu0
        %1265 = vdwg.mxu0
        %v1266 = vadd.f32 %v1183, %v1263
        %1267 = vrot.lane.b32.xlu0 %v769, 32
        %v1268 = vpop.permute.xlu0 %1267
        %1269 = vrot.lane.b32.xlu0 %v770, 32
        %v1270 = vpop.permute.xlu0 %1269
        %v1272 = vsel %vm772, %v1268, 0
        %v1275 = vsel %vm772, %v1270, 0
        %1277 = vmatpush.bf16.xpose.msra.mxu0 0
        %1278 = vmatpush.bf16.xpose.msra.mxu0 0
        %1279 = vmatpush.bf16.xpose.msra.mxu0 0
        %1280 = vmatpush.bf16.xpose.msra.mxu0 0
        %1281 = vmatpush.bf16.xpose.msra.mxu0 0
        %1282 = vmatpush.bf16.xpose.msra.mxu0 0
        %1283 = vmatpush.bf16.xpose.msra.mxu0 0
        %1284 = vmatpush.bf16.xpose.msra.mxu0 %v1275
        %1285 = vmatmul.bf16.gmra.mxu0 %v1272
        %v1286 = vpop.f32.mrf.mxu0
        %v1287 = vadd.f32 0.0, %v1286
        %v1288 = vpop.f32.mrf.mxu0
        %1289 = vdwg.mxu0
        %v1290 = vsel %vm792, %v1287, -inf
        %1291 = vmax.xlane.f32.xlu0 %v1290
        %v1292 = vpop.xlane.xlu0 %1291
        %v1293 = vsub.f32 %v1287, %v1292
        %v1294 = vmul.f32 %v1293, 1.442695
        %v1295 = vpow.pop %v1294
        %v1296 = vsel %vm792, %v1295, 0.0
        %1297 = vadd.xlane.f32.xlu0 %v1296
        %v1298 = vpop.xlane.xlu0 %1297
        %v1299 = vrcp.pop %v1298
        %v1300 = vmul.f32 %v1295, %v1299
        %v1301 = vpack.c.bf16 %v1300, %v1300
        %1302 = vrot.lane.b32.xlu0 %v771, 32
        %v1303 = vpop.permute.xlu0 %1302
        %v1305 = vsel %vm792, %v1301, 0
        %v1308 = vsel %vm808, %v1303, 0
        %1310 = vmatpush.bf16.msra.mxu0 0
        %1311 = vmatpush.bf16.msra.mxu0 0
        %1312 = vmatpush.bf16.msra.mxu0 0
        %1313 = vmatpush.bf16.msra.mxu0 0
        %1314 = vmatpush.bf16.msra.mxu0 0
        %1315 = vmatpush.bf16.msra.mxu0 0
        %1316 = vmatpush.bf16.msra.mxu0 0
        %1317 = vmatpush.bf16.msra.mxu0 %v1308
        %1318 = vmatmul.bf16.gmra.mxu0 %v1305
        %v1319 = vpop.f32.mrf.mxu0
        %v1320 = vadd.f32 0.0, %v1319
        %v1321 = vpop.f32.mrf.mxu0
        %1322 = vdwg.mxu0
        %v1323 = vpack.c.bf16 %v1320, %v1320
        %s1324 = scalar_lea.vmem %s3, 48
        %v1325 = vld [vmem:[%s1324] sm:$0xf]
        %v1326 = vld [vmem:[%s1324 + $0x4] sm:$0xf]
        %v1329 = vunpack.c.l.b16 %v1325
        %v1330 = vunpack.c.l.b16 %v1326
        %v1331 = vpack.c.b16 %v1330, %v1329
        %v1334 = vsel %vm772, %v1323, 0
        %1336 = vmatpush.bf16.msra.mxu0 0
        %1337 = vmatpush.bf16.msra.mxu0 0
        %1338 = vmatpush.bf16.msra.mxu0 0
        %1339 = vmatpush.bf16.msra.mxu0 0
        %1340 = vmatpush.bf16.msra.mxu0 0
        %1341 = vmatpush.bf16.msra.mxu0 0
        %1342 = vmatpush.bf16.msra.mxu0 0
        %1343 = vmatpush.bf16.msra.mxu0 %v1331
        %1344 = vmatmul.bf16.gmra.mxu0 %v1334
        %v1345 = vpop.f32.mrf.mxu0
        %v1346 = vadd.f32 0.0, %v1345
        %v1347 = vpop.f32.mrf.mxu0
        %1348 = vdwg.mxu0
        %v1349 = vadd.f32 %v1266, %v1346
        %1350 = vrot.lane.b32.xlu0 %v769, 16
        %v1351 = vpop.permute.xlu0 %1350
        %1352 = vrot.lane.b32.xlu0 %v770, 16
        %v1353 = vpop.permute.xlu0 %1352
        %v1355 = vsel %vm772, %v1351, 0
        %v1358 = vsel %vm772, %v1353, 0
        %1360 = vmatpush.bf16.xpose.msra.mxu0 0
        %1361 = vmatpush.bf16.xpose.msra.mxu0 0
        %1362 = vmatpush.bf16.xpose.msra.mxu0 0
        %1363 = vmatpush.bf16.xpose.msra.mxu0 0
        %1364 = vmatpush.bf16.xpose.msra.mxu0 0
        %1365 = vmatpush.bf16.xpose.msra.mxu0 0
        %1366 = vmatpush.bf16.xpose.msra.mxu0 0
        %1367 = vmatpush.bf16.xpose.msra.mxu0 %v1358
        %1368 = vmatmul.bf16.gmra.mxu0 %v1355
        %v1369 = vpop.f32.mrf.mxu0
        %v1370 = vadd.f32 0.0, %v1369
        %v1371 = vpop.f32.mrf.mxu0
        %1372 = vdwg.mxu0
        %v1373 = vsel %vm792, %v1370, -inf
        %1374 = vmax.xlane.f32.xlu0 %v1373
        %v1375 = vpop.xlane.xlu0 %1374
        %v1376 = vsub.f32 %v1370, %v1375
        %v1377 = vmul.f32 %v1376, 1.442695
        %v1378 = vpow.pop %v1377
        %v1379 = vsel %vm792, %v1378, 0.0
        %1380 = vadd.xlane.f32.xlu0 %v1379
        %v1381 = vpop.xlane.xlu0 %1380
        %v1382 = vrcp.pop %v1381
        %v1383 = vmul.f32 %v1378, %v1382
        %v1384 = vpack.c.bf16 %v1383, %v1383
        %1385 = vrot.lane.b32.xlu0 %v771, 16
        %v1386 = vpop.permute.xlu0 %1385
        %v1388 = vsel %vm792, %v1384, 0
        %v1391 = vsel %vm808, %v1386, 0
        %1393 = vmatpush.bf16.msra.mxu0 0
        %1394 = vmatpush.bf16.msra.mxu0 0
        %1395 = vmatpush.bf16.msra.mxu0 0
        %1396 = vmatpush.bf16.msra.mxu0 0
        %1397 = vmatpush.bf16.msra.mxu0 0
        %1398 = vmatpush.bf16.msra.mxu0 0
        %1399 = vmatpush.bf16.msra.mxu0 0
        %1400 = vmatpush.bf16.msra.mxu0 %v1391
        %1401 = vmatmul.bf16.gmra.mxu0 %v1388
        %v1402 = vpop.f32.mrf.mxu0
        %v1403 = vadd.f32 0.0, %v1402
        %v1404 = vpop.f32.mrf.mxu0
        %1405 = vdwg.mxu0
        %v1406 = vpack.c.bf16 %v1403, %v1403
        %s1407 = scalar_lea.vmem %s3, 56
        %v1408 = vld [vmem:[%s1407] sm:$0xf]
        %v1409 = vld [vmem:[%s1407 + $0x4] sm:$0xf]
        %v1412 = vunpack.c.l.b16 %v1408
        %v1413 = vunpack.c.l.b16 %v1409
        %v1414 = vpack.c.b16 %v1413, %v1412
        %v1417 = vsel %vm772, %v1406, 0
        %1419 = vmatpush.bf16.msra.mxu0 0
        %1420 = vmatpush.bf16.msra.mxu0 0
        %1421 = vmatpush.bf16.msra.mxu0 0
        %1422 = vmatpush.bf16.msra.mxu0 0
        %1423 = vmatpush.bf16.msra.mxu0 0
        %1424 = vmatpush.bf16.msra.mxu0 0
        %1425 = vmatpush.bf16.msra.mxu0 0
        %1426 = vmatpush.bf16.msra.mxu0 %v1414
        %1427 = vmatmul.bf16.gmra.mxu0 %v1417
        %v1428 = vpop.f32.mrf.mxu0
        %v1429 = vadd.f32 0.0, %v1428
        %v1430 = vpop.f32.mrf.mxu0
        %1431 = vdwg.mxu0
        %v1432 = vadd.f32 %v1349, %v1429
        %v1433 = vld [vmem:[%s4] sm:$0x1]
        %v1435 = vperm.slane %v1433, 0
        %v1437 = vadd.f32 %v1432, %v1435
        %v1438 = vadd.f32 %v1437, %v560
        %v1439 = vld [vmem:[%s5] sm:$0x1]
        %v1440 = vld [vmem:[%s6] sm:$0x1]
        %1441 = vadd.xlane.f32.xlu0 %v1438
        %v1442 = vpop.xlane.xlu0 %1441
        %v1443 = vmul.f32 %v1438, %v1438
        %1444 = vadd.xlane.f32.xlu0 %v1443
        %v1445 = vpop.xlane.xlu0 %1444
        %v1446 = vmul.f32 %v1442, 0.0078125
        %v1447 = vmul.f32 %v1445, 0.0078125
        %v1448 = vmul.f32 %v1446, %v1446
        %v1449 = vsub.f32 %v1447, %v1448
        %v1450 = vsub.f32 %v1438, %v1446
        %v1451 = vadd.f32 %v1449, 1e-05
        %v1452 = vrsqrt.pop %v1451
        %v1453 = vmul.f32 %v1452, %v1451
        %v1454 = vmul.f32 %v1453, %v1452
        %v1455 = vmul.f32 0.5, %v1454
        %v1456 = vsub.f32 1.5, %v1455
        %v1457 = vmul.f32 %v1452, %v1456
        %vm1458 = vweird.f32 %v1451
        %vm1459 = vweird.f32 %v1452
        %vm1460 = vmor %vm1458, %vm1459
        %v1461 = vsel %vm1460, %v1452, %v1457
        %v1462 = vmul.f32 %v1450, %v1461
        %v1464 = vperm.slane %v1439, 0
        %v1466 = vmul.f32 %v1462, %v1464
        %v1468 = vperm.slane %v1440, 0
        %v1470 = vadd.f32 %v1466, %v1468
        %v1471 = vpack.c.bf16 %v1470, %v1470
        %v1472 = vld [vmem:[#allocation4] sm:$0xff]
        %v1473 = vld [vmem:[#allocation4 + $0x8] sm:$0xff]
        %v1474 = vld [vmem:[#allocation4 + $0x10] sm:$0xff]
        %v1475 = vld [vmem:[#allocation4 + $0x18] sm:$0xff]
        %v1476 = vld [vmem:[#allocation4 + $0x20] sm:$0xff]
        %v1477 = vld [vmem:[#allocation4 + $0x28] sm:$0xff]
        %v1478 = vld [vmem:[#allocation4 + $0x30] sm:$0xff]
        %v1479 = vld [vmem:[#allocation4 + $0x38] sm:$0xff]
        %v1480 = vld [vmem:[#allocation4 + $0x40] sm:$0xff]
        %v1481 = vld [vmem:[#allocation4 + $0x48] sm:$0xff]
        %v1482 = vld [vmem:[#allocation4 + $0x50] sm:$0xff]
        %v1483 = vld [vmem:[#allocation4 + $0x58] sm:$0xff]
        %v1484 = vld [vmem:[#allocation4 + $0x60] sm:$0xff]
        %v1485 = vld [vmem:[#allocation4 + $0x68] sm:$0xff]
        %v1486 = vld [vmem:[#allocation4 + $0x70] sm:$0xff]
        %v1487 = vld [vmem:[#allocation4 + $0x78] sm:$0xff]
        %v1488 = vld [vmem:[#allocation4 + $0x80] sm:$0xff]
        %v1489 = vld [vmem:[#allocation4 + $0x88] sm:$0xff]
        %v1490 = vld [vmem:[#allocation4 + $0x90] sm:$0xff]
        %v1491 = vld [vmem:[#allocation4 + $0x98] sm:$0xff]
        %v1492 = vld [vmem:[#allocation4 + $0xa0] sm:$0xff]
        %v1493 = vld [vmem:[#allocation4 + $0xa8] sm:$0xff]
        %v1494 = vld [vmem:[#allocation4 + $0xb0] sm:$0xff]
        %v1495 = vld [vmem:[#allocation4 + $0xb8] sm:$0xff]
        %v1496 = vld [vmem:[#allocation4 + $0xc0] sm:$0xff]
        %v1497 = vld [vmem:[#allocation4 + $0xc8] sm:$0xff]
        %v1498 = vld [vmem:[#allocation4 + $0xd0] sm:$0xff]
        %v1499 = vld [vmem:[#allocation4 + $0xd8] sm:$0xff]
        %v1500 = vld [vmem:[#allocation4 + $0xe0] sm:$0xff]
        %v1501 = vld [vmem:[#allocation4 + $0xe8] sm:$0xff]
        %v1502 = vld [vmem:[#allocation4 + $0xf0] sm:$0xff]
        %v1503 = vld [vmem:[#allocation4 + $0xf8] sm:$0xff]
        %v1504 = vld [vmem:[%s8] sm:$0xf]
        %v1506 = vperm.slane %v1504, 0
        %v1507 = vperm.slane %v1504, 1
        %v1508 = vperm.slane %v1504, 2
        %v1509 = vperm.slane %v1504, 3
        %v1546 = vunpack.c.l.b16 %v1472
        %v1547 = vunpack.c.h.b16 %v1472
        %v1548 = vunpack.c.l.b16 %v1473
        %v1549 = vunpack.c.h.b16 %v1473
        %v1550 = vunpack.c.l.b16 %v1474
        %v1551 = vunpack.c.h.b16 %v1474
        %v1552 = vunpack.c.l.b16 %v1475
        %v1553 = vunpack.c.h.b16 %v1475
        %v1554 = vunpack.c.l.b16 %v1476
        %v1555 = vunpack.c.h.b16 %v1476
        %v1556 = vunpack.c.l.b16 %v1477
        %v1557 = vunpack.c.h.b16 %v1477
        %v1558 = vunpack.c.l.b16 %v1478
        %v1559 = vunpack.c.h.b16 %v1478
        %v1560 = vunpack.c.l.b16 %v1479
        %v1561 = vunpack.c.h.b16 %v1479
        %v1562 = vunpack.c.l.b16 %v1480
        %v1563 = vunpack.c.h.b16 %v1480
        %v1564 = vunpack.c.l.b16 %v1481
        %v1565 = vunpack.c.h.b16 %v1481
        %v1566 = vunpack.c.l.b16 %v1482
        %v1567 = vunpack.c.h.b16 %v1482
        %v1568 = vunpack.c.l.b16 %v1483
        %v1569 = vunpack.c.h.b16 %v1483
        %v1570 = vunpack.c.l.b16 %v1484
        %v1571 = vunpack.c.h.b16 %v1484
        %v1572 = vunpack.c.l.b16 %v1485
        %v1573 = vunpack.c.h.b16 %v1485
        %v1574 = vunpack.c.l.b16 %v1486
        %v1575 = vunpack.c.h.b16 %v1486
        %v1576 = vunpack.c.l.b16 %v1487
        %v1577 = vunpack.c.h.b16 %v1487
        %v1578 = vunpack.c.l.b16 %v1488
        %v1579 = vunpack.c.h.b16 %v1488
        %v1580 = vunpack.c.l.b16 %v1489
        %v1581 = vunpack.c.h.b16 %v1489
        %v1582 = vunpack.c.l.b16 %v1490
        %v1583 = vunpack.c.h.b16 %v1490
        %v1584 = vunpack.c.l.b16 %v1491
        %v1585 = vunpack.c.h.b16 %v1491
        %v1586 = vunpack.c.l.b16 %v1492
        %v1587 = vunpack.c.h.b16 %v1492
        %v1588 = vunpack.c.l.b16 %v1493
        %v1589 = vunpack.c.h.b16 %v1493
        %v1590 = vunpack.c.l.b16 %v1494
        %v1591 = vunpack.c.h.b16 %v1494
        %v1592 = vunpack.c.l.b16 %v1495
        %v1593 = vunpack.c.h.b16 %v1495
        %v1594 = vunpack.c.l.b16 %v1496
        %v1595 = vunpack.c.h.b16 %v1496
        %v1596 = vunpack.c.l.b16 %v1497
        %v1597 = vunpack.c.h.b16 %v1497
        %v1598 = vunpack.c.l.b16 %v1498
        %v1599 = vunpack.c.h.b16 %v1498
        %v1600 = vunpack.c.l.b16 %v1499
        %v1601 = vunpack.c.h.b16 %v1499
        %v1602 = vunpack.c.l.b16 %v1500
        %v1603 = vunpack.c.h.b16 %v1500
        %v1604 = vunpack.c.l.b16 %v1501
        %v1605 = vunpack.c.h.b16 %v1501
        %v1606 = vunpack.c.l.b16 %v1502
        %v1607 = vunpack.c.h.b16 %v1502
        %v1608 = vunpack.c.l.b16 %v1503
        %v1609 = vunpack.c.h.b16 %v1503
        %v1610 = vpack.c.b16 %v1550, %v1546
        %v1611 = vpack.c.b16 %v1551, %v1547
        %v1612 = vpack.c.b16 %v1552, %v1548
        %v1613 = vpack.c.b16 %v1553, %v1549
        %v1614 = vpack.c.b16 %v1558, %v1554
        %v1615 = vpack.c.b16 %v1559, %v1555
        %v1616 = vpack.c.b16 %v1560, %v1556
        %v1617 = vpack.c.b16 %v1561, %v1557
        %v1618 = vpack.c.b16 %v1566, %v1562
        %v1619 = vpack.c.b16 %v1567, %v1563
        %v1620 = vpack.c.b16 %v1568, %v1564
        %v1621 = vpack.c.b16 %v1569, %v1565
        %v1622 = vpack.c.b16 %v1574, %v1570
        %v1623 = vpack.c.b16 %v1575, %v1571
        %v1624 = vpack.c.b16 %v1576, %v1572
        %v1625 = vpack.c.b16 %v1577, %v1573
        %v1626 = vpack.c.b16 %v1582, %v1578
        %v1627 = vpack.c.b16 %v1583, %v1579
        %v1628 = vpack.c.b16 %v1584, %v1580
        %v1629 = vpack.c.b16 %v1585, %v1581
        %v1630 = vpack.c.b16 %v1590, %v1586
        %v1631 = vpack.c.b16 %v1591, %v1587
        %v1632 = vpack.c.b16 %v1592, %v1588
        %v1633 = vpack.c.b16 %v1593, %v1589
        %v1634 = vpack.c.b16 %v1598, %v1594
        %v1635 = vpack.c.b16 %v1599, %v1595
        %v1636 = vpack.c.b16 %v1600, %v1596
        %v1637 = vpack.c.b16 %v1601, %v1597
        %v1638 = vpack.c.b16 %v1606, %v1602
        %v1639 = vpack.c.b16 %v1607, %v1603
        %v1640 = vpack.c.b16 %v1608, %v1604
        %v1641 = vpack.c.b16 %v1609, %v1605
        %1674 = vmatpush.bf16.msra.mxu0 %v1638
        %1675 = vmatpush.bf16.msra.mxu0 %v1634
        %1676 = vmatpush.bf16.msra.mxu0 %v1630
        %1677 = vmatpush.bf16.msra.mxu0 %v1626
        %1678 = vmatpush.bf16.msra.mxu0 %v1622
        %1679 = vmatpush.bf16.msra.mxu0 %v1618
        %1680 = vmatpush.bf16.msra.mxu0 %v1614
        %1681 = vmatpush.bf16.msra.mxu0 %v1610
        %1682 = vmatmul.bf16.gmra.mxu0 %v1471
        %v1683 = vpop.f32.mrf.mxu0
        %v1684 = vadd.f32 %v1506, %v1683
        %v1685 = vpop.f32.mrf.mxu0
        %1686 = vdwg.mxu0
        %1687 = vmatpush.bf16.msra.mxu0 %v1639
        %1688 = vmatpush.bf16.msra.mxu0 %v1635
        %1689 = vmatpush.bf16.msra.mxu0 %v1631
        %1690 = vmatpush.bf16.msra.mxu0 %v1627
        %1691 = vmatpush.bf16.msra.mxu0 %v1623
        %1692 = vmatpush.bf16.msra.mxu0 %v1619
        %1693 = vmatpush.bf16.msra.mxu0 %v1615
        %1694 = vmatpush.bf16.msra.mxu0 %v1611
        %1695 = vmatmul.bf16.gmra.mxu0 %v1471
        %v1696 = vpop.f32.mrf.mxu0
        %v1697 = vadd.f32 %v1507, %v1696
        %v1698 = vpop.f32.mrf.mxu0
        %1699 = vdwg.mxu0
        %1700 = vmatpush.bf16.msra.mxu0 %v1640
        %1701 = vmatpush.bf16.msra.mxu0 %v1636
        %1702 = vmatpush.bf16.msra.mxu0 %v1632
        %1703 = vmatpush.bf16.msra.mxu0 %v1628
        %1704 = vmatpush.bf16.msra.mxu0 %v1624
        %1705 = vmatpush.bf16.msra.mxu0 %v1620
        %1706 = vmatpush.bf16.msra.mxu0 %v1616
        %1707 = vmatpush.bf16.msra.mxu0 %v1612
        %1708 = vmatmul.bf16.gmra.mxu0 %v1471
        %v1709 = vpop.f32.mrf.mxu0
        %v1710 = vadd.f32 %v1508, %v1709
        %v1711 = vpop.f32.mrf.mxu0
        %1712 = vdwg.mxu0
        %1713 = vmatpush.bf16.msra.mxu0 %v1641
        %1714 = vmatpush.bf16.msra.mxu0 %v1637
        %1715 = vmatpush.bf16.msra.mxu0 %v1633
        %1716 = vmatpush.bf16.msra.mxu0 %v1629
        %1717 = vmatpush.bf16.msra.mxu0 %v1625
        %1718 = vmatpush.bf16.msra.mxu0 %v1621
        %1719 = vmatpush.bf16.msra.mxu0 %v1617
        %1720 = vmatpush.bf16.msra.mxu0 %v1613
        %1721 = vmatmul.bf16.gmra.mxu0 %v1471
        %v1722 = vpop.f32.mrf.mxu0
        %v1723 = vadd.f32 %v1509, %v1722
        %v1724 = vpop.f32.mrf.mxu0
        %1725 = vdwg.mxu0
        %v1726 = vmax.f32 %v1684, 0.0
        %v1727 = vmax.f32 %v1697, 0.0
        %v1728 = vmax.f32 %v1710, 0.0
        %v1729 = vmax.f32 %v1723, 0.0
        %v1730 = vpack.c.bf16 %v1726, %v1726
        %v1731 = vpack.c.bf16 %v1727, %v1727
        %v1732 = vpack.c.bf16 %v1728, %v1728
        %v1733 = vpack.c.bf16 %v1729, %v1729
        %v1734 = vld [vmem:[#allocation6] sm:$0xf]
        %v1735 = vld [vmem:[#allocation6 + $0x4] sm:$0xf]
        %v1736 = vld [vmem:[#allocation6 + $0x8] sm:$0xf]
        %v1737 = vld [vmem:[#allocation6 + $0xc] sm:$0xf]
        %v1738 = vld [vmem:[#allocation6 + $0x10] sm:$0xf]
        %v1739 = vld [vmem:[#allocation6 + $0x14] sm:$0xf]
        %v1740 = vld [vmem:[#allocation6 + $0x18] sm:$0xf]
        %v1741 = vld [vmem:[#allocation6 + $0x1c] sm:$0xf]
        %v1742 = vld [vmem:[#allocation6 + $0x20] sm:$0xf]
        %v1743 = vld [vmem:[#allocation6 + $0x24] sm:$0xf]
        %v1744 = vld [vmem:[#allocation6 + $0x28] sm:$0xf]
        %v1745 = vld [vmem:[#allocation6 + $0x2c] sm:$0xf]
        %v1746 = vld [vmem:[#allocation6 + $0x30] sm:$0xf]
        %v1747 = vld [vmem:[#allocation6 + $0x34] sm:$0xf]
        %v1748 = vld [vmem:[#allocation6 + $0x38] sm:$0xf]
        %v1749 = vld [vmem:[#allocation6 + $0x3c] sm:$0xf]
        %v1750 = vld [vmem:[#allocation6 + $0x40] sm:$0xf]
        %v1751 = vld [vmem:[#allocation6 + $0x44] sm:$0xf]
        %v1752 = vld [vmem:[#allocation6 + $0x48] sm:$0xf]
        %v1753 = vld [vmem:[#allocation6 + $0x4c] sm:$0xf]
        %v1754 = vld [vmem:[#allocation6 + $0x50] sm:$0xf]
        %v1755 = vld [vmem:[#allocation6 + $0x54] sm:$0xf]
        %v1756 = vld [vmem:[#allocation6 + $0x58] sm:$0xf]
        %v1757 = vld [vmem:[#allocation6 + $0x5c] sm:$0xf]
        %v1758 = vld [vmem:[#allocation6 + $0x60] sm:$0xf]
        %v1759 = vld [vmem:[#allocation6 + $0x64] sm:$0xf]
        %v1760 = vld [vmem:[#allocation6 + $0x68] sm:$0xf]
        %v1761 = vld [vmem:[#allocation6 + $0x6c] sm:$0xf]
        %v1762 = vld [vmem:[#allocation6 + $0x70] sm:$0xf]
        %v1763 = vld [vmem:[#allocation6 + $0x74] sm:$0xf]
        %v1764 = vld [vmem:[#allocation6 + $0x78] sm:$0xf]
        %v1765 = vld [vmem:[#allocation6 + $0x7c] sm:$0xf]
        %v1766 = vld [vmem:[#allocation6 + $0x80] sm:$0xf]
        %v1767 = vld [vmem:[#allocation6 + $0x84] sm:$0xf]
        %v1768 = vld [vmem:[#allocation6 + $0x88] sm:$0xf]
        %v1769 = vld [vmem:[#allocation6 + $0x8c] sm:$0xf]
        %v1770 = vld [vmem:[#allocation6 + $0x90] sm:$0xf]
        %v1771 = vld [vmem:[#allocation6 + $0x94] sm:$0xf]
        %v1772 = vld [vmem:[#allocation6 + $0x98] sm:$0xf]
        %v1773 = vld [vmem:[#allocation6 + $0x9c] sm:$0xf]
        %v1774 = vld [vmem:[#allocation6 + $0xa0] sm:$0xf]
        %v1775 = vld [vmem:[#allocation6 + $0xa4] sm:$0xf]
        %v1776 = vld [vmem:[#allocation6 + $0xa8] sm:$0xf]
        %v1777 = vld [vmem:[#allocation6 + $0xac] sm:$0xf]
        %v1778 = vld [vmem:[#allocation6 + $0xb0] sm:$0xf]
        %v1779 = vld [vmem:[#allocation6 + $0xb4] sm:$0xf]
        %v1780 = vld [vmem:[#allocation6 + $0xb8] sm:$0xf]
        %v1781 = vld [vmem:[#allocation6 + $0xbc] sm:$0xf]
        %v1782 = vld [vmem:[#allocation6 + $0xc0] sm:$0xf]
        %v1783 = vld [vmem:[#allocation6 + $0xc4] sm:$0xf]
        %v1784 = vld [vmem:[#allocation6 + $0xc8] sm:$0xf]
        %v1785 = vld [vmem:[#allocation6 + $0xcc] sm:$0xf]
        %v1786 = vld [vmem:[#allocation6 + $0xd0] sm:$0xf]
        %v1787 = vld [vmem:[#allocation6 + $0xd4] sm:$0xf]
        %v1788 = vld [vmem:[#allocation6 + $0xd8] sm:$0xf]
        %v1789 = vld [vmem:[#allocation6 + $0xdc] sm:$0xf]
        %v1790 = vld [vmem:[#allocation6 + $0xe0] sm:$0xf]
        %v1791 = vld [vmem:[#allocation6 + $0xe4] sm:$0xf]
        %v1792 = vld [vmem:[#allocation6 + $0xe8] sm:$0xf]
        %v1793 = vld [vmem:[#allocation6 + $0xec] sm:$0xf]
        %v1794 = vld [vmem:[#allocation6 + $0xf0] sm:$0xf]
        %v1795 = vld [vmem:[#allocation6 + $0xf4] sm:$0xf]
        %v1796 = vld [vmem:[#allocation6 + $0xf8] sm:$0xf]
        %v1797 = vld [vmem:[#allocation6 + $0xfc] sm:$0xf]
        %v1798 = vld [vmem:[%s10] sm:$0x1]
        %v1800 = vperm.slane %v1798, 0
        %v1866 = vunpack.c.l.b16 %v1734
        %v1867 = vunpack.c.l.b16 %v1735
        %v1868 = vunpack.c.l.b16 %v1736
        %v1869 = vunpack.c.l.b16 %v1737
        %v1870 = vunpack.c.l.b16 %v1738
        %v1871 = vunpack.c.l.b16 %v1739
        %v1872 = vunpack.c.l.b16 %v1740
        %v1873 = vunpack.c.l.b16 %v1741
        %v1874 = vunpack.c.l.b16 %v1742
        %v1875 = vunpack.c.l.b16 %v1743
        %v1876 = vunpack.c.l.b16 %v1744
        %v1877 = vunpack.c.l.b16 %v1745
        %v1878 = vunpack.c.l.b16 %v1746
        %v1879 = vunpack.c.l.b16 %v1747
        %v1880 = vunpack.c.l.b16 %v1748
        %v1881 = vunpack.c.l.b16 %v1749
        %v1882 = vunpack.c.l.b16 %v1750
        %v1883 = vunpack.c.l.b16 %v1751
        %v1884 = vunpack.c.l.b16 %v1752
        %v1885 = vunpack.c.l.b16 %v1753
        %v1886 = vunpack.c.l.b16 %v1754
        %v1887 = vunpack.c.l.b16 %v1755
        %v1888 = vunpack.c.l.b16 %v1756
        %v1889 = vunpack.c.l.b16 %v1757
        %v1890 = vunpack.c.l.b16 %v1758
        %v1891 = vunpack.c.l.b16 %v1759
        %v1892 = vunpack.c.l.b16 %v1760
        %v1893 = vunpack.c.l.b16 %v1761
        %v1894 = vunpack.c.l.b16 %v1762
        %v1895 = vunpack.c.l.b16 %v1763
        %v1896 = vunpack.c.l.b16 %v1764
        %v1897 = vunpack.c.l.b16 %v1765
        %v1898 = vunpack.c.l.b16 %v1766
        %v1899 = vunpack.c.l.b16 %v1767
        %v1900 = vunpack.c.l.b16 %v1768
        %v1901 = vunpack.c.l.b16 %v1769
        %v1902 = vunpack.c.l.b16 %v1770
        %v1903 = vunpack.c.l.b16 %v1771
        %v1904 = vunpack.c.l.b16 %v1772
        %v1905 = vunpack.c.l.b16 %v1773
        %v1906 = vunpack.c.l.b16 %v1774
        %v1907 = vunpack.c.l.b16 %v1775
        %v1908 = vunpack.c.l.b16 %v1776
        %v1909 = vunpack.c.l.b16 %v1777
        %v1910 = vunpack.c.l.b16 %v1778
        %v1911 = vunpack.c.l.b16 %v1779
        %v1912 = vunpack.c.l.b16 %v1780
        %v1913 = vunpack.c.l.b16 %v1781
        %v1914 = vunpack.c.l.b16 %v1782
        %v1915 = vunpack.c.l.b16 %v1783
        %v1916 = vunpack.c.l.b16 %v1784
        %v1917 = vunpack.c.l.b16 %v1785
        %v1918 = vunpack.c.l.b16 %v1786
        %v1919 = vunpack.c.l.b16 %v1787
        %v1920 = vunpack.c.l.b16 %v1788
        %v1921 = vunpack.c.l.b16 %v1789
        %v1922 = vunpack.c.l.b16 %v1790
        %v1923 = vunpack.c.l.b16 %v1791
        %v1924 = vunpack.c.l.b16 %v1792
        %v1925 = vunpack.c.l.b16 %v1793
        %v1926 = vunpack.c.l.b16 %v1794
        %v1927 = vunpack.c.l.b16 %v1795
        %v1928 = vunpack.c.l.b16 %v1796
        %v1929 = vunpack.c.l.b16 %v1797
        %v1930 = vpack.c.b16 %v1867, %v1866
        %v1931 = vpack.c.b16 %v1869, %v1868
        %v1932 = vpack.c.b16 %v1871, %v1870
        %v1933 = vpack.c.b16 %v1873, %v1872
        %v1934 = vpack.c.b16 %v1875, %v1874
        %v1935 = vpack.c.b16 %v1877, %v1876
        %v1936 = vpack.c.b16 %v1879, %v1878
        %v1937 = vpack.c.b16 %v1881, %v1880
        %v1938 = vpack.c.b16 %v1883, %v1882
        %v1939 = vpack.c.b16 %v1885, %v1884
        %v1940 = vpack.c.b16 %v1887, %v1886
        %v1941 = vpack.c.b16 %v1889, %v1888
        %v1942 = vpack.c.b16 %v1891, %v1890
        %v1943 = vpack.c.b16 %v1893, %v1892
        %v1944 = vpack.c.b16 %v1895, %v1894
        %v1945 = vpack.c.b16 %v1897, %v1896
        %v1946 = vpack.c.b16 %v1899, %v1898
        %v1947 = vpack.c.b16 %v1901, %v1900
        %v1948 = vpack.c.b16 %v1903, %v1902
        %v1949 = vpack.c.b16 %v1905, %v1904
        %v1950 = vpack.c.b16 %v1907, %v1906
        %v1951 = vpack.c.b16 %v1909, %v1908
        %v1952 = vpack.c.b16 %v1911, %v1910
        %v1953 = vpack.c.b16 %v1913, %v1912
        %v1954 = vpack.c.b16 %v1915, %v1914
        %v1955 = vpack.c.b16 %v1917, %v1916
        %v1956 = vpack.c.b16 %v1919, %v1918
        %v1957 = vpack.c.b16 %v1921, %v1920
        %v1958 = vpack.c.b16 %v1923, %v1922
        %v1959 = vpack.c.b16 %v1925, %v1924
        %v1960 = vpack.c.b16 %v1927, %v1926
        %v1961 = vpack.c.b16 %v1929, %v1928
        %1994 = vmatpush.bf16.msra.mxu0 %v1937
        %1995 = vmatpush.bf16.msra.mxu0 %v1936
        %1996 = vmatpush.bf16.msra.mxu0 %v1935
        %1997 = vmatpush.bf16.msra.mxu0 %v1934
        %1998 = vmatpush.bf16.msra.mxu0 %v1933
        %1999 = vmatpush.bf16.msra.mxu0 %v1932
        %2000 = vmatpush.bf16.msra.mxu0 %v1931
        %2001 = vmatpush.bf16.msra.mxu0 %v1930
        %2002 = vmatmul.bf16.gmra.mxu0 %v1730
        %v2003 = vpop.f32.mrf.mxu0
        %v2004 = vadd.f32 %v1800, %v2003
        %v2005 = vpop.f32.mrf.mxu0
        %2006 = vdwg.mxu0
        %2007 = vmatpush.bf16.msra.mxu0 %v1945
        %2008 = vmatpush.bf16.msra.mxu0 %v1944
        %2009 = vmatpush.bf16.msra.mxu0 %v1943
        %2010 = vmatpush.bf16.msra.mxu0 %v1942
        %2011 = vmatpush.bf16.msra.mxu0 %v1941
        %2012 = vmatpush.bf16.msra.mxu0 %v1940
        %2013 = vmatpush.bf16.msra.mxu0 %v1939
        %2014 = vmatpush.bf16.msra.mxu0 %v1938
        %2015 = vmatmul.bf16.gmra.mxu0 %v1731
        %v2016 = vpop.f32.mrf.mxu0
        %v2017 = vadd.f32 %v2004, %v2016
        %v2018 = vpop.f32.mrf.mxu0
        %2019 = vdwg.mxu0
        %2020 = vmatpush.bf16.msra.mxu0 %v1953
        %2021 = vmatpush.bf16.msra.mxu0 %v1952
        %2022 = vmatpush.bf16.msra.mxu0 %v1951
        %2023 = vmatpush.bf16.msra.mxu0 %v1950
        %2024 = vmatpush.bf16.msra.mxu0 %v1949
        %2025 = vmatpush.bf16.msra.mxu0 %v1948
        %2026 = vmatpush.bf16.msra.mxu0 %v1947
        %2027 = vmatpush.bf16.msra.mxu0 %v1946
        %2028 = vmatmul.bf16.gmra.mxu0 %v1732
        %v2029 = vpop.f32.mrf.mxu0
        %v2030 = vadd.f32 %v2017, %v2029
        %v2031 = vpop.f32.mrf.mxu0
        %2032 = vdwg.mxu0
        %2033 = vmatpush.bf16.msra.mxu0 %v1961
        %2034 = vmatpush.bf16.msra.mxu0 %v1960
        %2035 = vmatpush.bf16.msra.mxu0 %v1959
        %2036 = vmatpush.bf16.msra.mxu0 %v1958
        %2037 = vmatpush.bf16.msra.mxu0 %v1957
        %2038 = vmatpush.bf16.msra.mxu0 %v1956
        %2039 = vmatpush.bf16.msra.mxu0 %v1955
        %2040 = vmatpush.bf16.msra.mxu0 %v1954
        %2041 = vmatmul.bf16.gmra.mxu0 %v1733
        %v2042 = vpop.f32.mrf.mxu0
        %v2043 = vadd.f32 %v2030, %v2042
        %v2044 = vpop.f32.mrf.mxu0
        %2045 = vdwg.mxu0
        %v2046 = vadd.f32 %v2043, %v1470
        %v2047 = vld [vmem:[%s11] sm:$0x1]
        %v2048 = vld [vmem:[%s12] sm:$0x1]
        %2049 = vadd.xlane.f32.xlu0 %v2046
        %v2050 = vpop.xlane.xlu0 %2049
        %v2051 = vmul.f32 %v2046, %v2046
        %2052 = vadd.xlane.f32.xlu0 %v2051
        %v2053 = vpop.xlane.xlu0 %2052
        %v2054 = vmul.f32 %v2050, 0.0078125
        %v2055 = vmul.f32 %v2053, 0.0078125
        %v2056 = vmul.f32 %v2054, %v2054
        %v2057 = vsub.f32 %v2055, %v2056
        %v2058 = vsub.f32 %v2046, %v2054
        %v2059 = vadd.f32 %v2057, 1e-05
        %v2060 = vrsqrt.pop %v2059
        %v2061 = vmul.f32 %v2060, %v2059
        %v2062 = vmul.f32 %v2061, %v2060
        %v2063 = vmul.f32 0.5, %v2062
        %v2064 = vsub.f32 1.5, %v2063
        %v2065 = vmul.f32 %v2060, %v2064
        %vm2066 = vweird.f32 %v2059
        %vm2067 = vweird.f32 %v2060
        %vm2068 = vmor %vm2066, %vm2067
        %v2069 = vsel %vm2068, %v2060, %v2065
        %v2070 = vmul.f32 %v2058, %v2069
        %v2072 = vperm.slane %v2047, 0
        %v2074 = vmul.f32 %v2070, %v2072
        %v2076 = vperm.slane %v2048, 0
        %v2078 = vadd.f32 %v2074, %v2076
        %v2079 = vpack.c.bf16 %v2078, %v2078
        %s2080 = scalar_lea.vmem [#allocation2], 192
        %v2081 = vld [vmem:[%s2080] sm:$0xff]
        %v2082 = vld [vmem:[%s2080 + $0x8] sm:$0xf]
        %v2083 = vld [vmem:[%s2080 + $0xc] sm:$0xff]
        %v2084 = vld [vmem:[%s2080 + $0x14] sm:$0xf]
        %v2085 = vld [vmem:[%s2080 + $0x18] sm:$0xff]
        %v2086 = vld [vmem:[%s2080 + $0x20] sm:$0xf]
        %v2087 = vld [vmem:[%s2080 + $0x24] sm:$0xff]
        %v2088 = vld [vmem:[%s2080 + $0x2c] sm:$0xf]
        %v2089 = vld [vmem:[%s2080 + $0x30] sm:$0xff]
        %v2090 = vld [vmem:[%s2080 + $0x38] sm:$0xf]
        %v2091 = vld [vmem:[%s2080 + $0x3c] sm:$0xff]
        %v2092 = vld [vmem:[%s2080 + $0x44] sm:$0xf]
        %v2093 = vld [vmem:[%s2080 + $0x48] sm:$0xff]
        %v2094 = vld [vmem:[%s2080 + $0x50] sm:$0xf]
        %v2095 = vld [vmem:[%s2080 + $0x54] sm:$0xff]
        %v2096 = vld [vmem:[%s2080 + $0x5c] sm:$0xf]
        %v2097 = vld [vmem:[%s2080 + $0x60] sm:$0xff]
        %v2098 = vld [vmem:[%s2080 + $0x68] sm:$0xf]
        %v2099 = vld [vmem:[%s2080 + $0x6c] sm:$0xff]
        %v2100 = vld [vmem:[%s2080 + $0x74] sm:$0xf]
        %v2101 = vld [vmem:[%s2080 + $0x78] sm:$0xff]
        %v2102 = vld [vmem:[%s2080 + $0x80] sm:$0xf]
        %v2103 = vld [vmem:[%s2080 + $0x84] sm:$0xff]
        %v2104 = vld [vmem:[%s2080 + $0x8c] sm:$0xf]
        %v2105 = vld [vmem:[%s2080 + $0x90] sm:$0xff]
        %v2106 = vld [vmem:[%s2080 + $0x98] sm:$0xf]
        %v2107 = vld [vmem:[%s2080 + $0x9c] sm:$0xff]
        %v2108 = vld [vmem:[%s2080 + $0xa4] sm:$0xf]
        %v2109 = vld [vmem:[%s2080 + $0xa8] sm:$0xff]
        %v2110 = vld [vmem:[%s2080 + $0xb0] sm:$0xf]
        %v2111 = vld [vmem:[%s2080 + $0xb4] sm:$0xff]
        %v2112 = vld [vmem:[%s2080 + $0xbc] sm:$0xf]
        %s2113 = scalar_lea.vmem %s2, 3
        %v2114 = vld [vmem:[%s2113] sm:$0x7]
        %v2116 = vperm.slane %v2114, 0
        %v2117 = vperm.slane %v2114, 1
        %v2118 = vperm.slane %v2114, 2
        %v2154 = vunpack.c.l.b16 %v2081
        %v2155 = vunpack.c.h.b16 %v2081
        %v2156 = vunpack.c.l.b16 %v2082
        %v2157 = vunpack.c.l.b16 %v2083
        %v2158 = vunpack.c.h.b16 %v2083
        %v2159 = vunpack.c.l.b16 %v2084
        %v2160 = vunpack.c.l.b16 %v2085
        %v2161 = vunpack.c.h.b16 %v2085
        %v2162 = vunpack.c.l.b16 %v2086
        %v2163 = vunpack.c.l.b16 %v2087
        %v2164 = vunpack.c.h.b16 %v2087
        %v2165 = vunpack.c.l.b16 %v2088
        %v2166 = vunpack.c.l.b16 %v2089
        %v2167 = vunpack.c.h.b16 %v2089
        %v2168 = vunpack.c.l.b16 %v2090
        %v2169 = vunpack.c.l.b16 %v2091
        %v2170 = vunpack.c.h.b16 %v2091
        %v2171 = vunpack.c.l.b16 %v2092
        %v2172 = vunpack.c.l.b16 %v2093
        %v2173 = vunpack.c.h.b16 %v2093
        %v2174 = vunpack.c.l.b16 %v2094
        %v2175 = vunpack.c.l.b16 %v2095
        %v2176 = vunpack.c.h.b16 %v2095
        %v2177 = vunpack.c.l.b16 %v2096
        %v2178 = vunpack.c.l.b16 %v2097
        %v2179 = vunpack.c.h.b16 %v2097
        %v2180 = vunpack.c.l.b16 %v2098
        %v2181 = vunpack.c.l.b16 %v2099
        %v2182 = vunpack.c.h.b16 %v2099
        %v2183 = vunpack.c.l.b16 %v2100
        %v2184 = vunpack.c.l.b16 %v2101
        %v2185 = vunpack.c.h.b16 %v2101
        %v2186 = vunpack.c.l.b16 %v2102
        %v2187 = vunpack.c.l.b16 %v2103
        %v2188 = vunpack.c.h.b16 %v2103
        %v2189 = vunpack.c.l.b16 %v2104
        %v2190 = vunpack.c.l.b16 %v2105
        %v2191 = vunpack.c.h.b16 %v2105
        %v2192 = vunpack.c.l.b16 %v2106
        %v2193 = vunpack.c.l.b16 %v2107
        %v2194 = vunpack.c.h.b16 %v2107
        %v2195 = vunpack.c.l.b16 %v2108
        %v2196 = vunpack.c.l.b16 %v2109
        %v2197 = vunpack.c.h.b16 %v2109
        %v2198 = vunpack.c.l.b16 %v2110
        %v2199 = vunpack.c.l.b16 %v2111
        %v2200 = vunpack.c.h.b16 %v2111
        %v2201 = vunpack.c.l.b16 %v2112
        %v2202 = vpack.c.b16 %v2157, %v2154
        %v2203 = vpack.c.b16 %v2158, %v2155
        %v2204 = vpack.c.b16 %v2159, %v2156
        %v2205 = vpack.c.b16 %v2163, %v2160
        %v2206 = vpack.c.b16 %v2164, %v2161
        %v2207 = vpack.c.b16 %v2165, %v2162
        %v2208 = vpack.c.b16 %v2169, %v2166
        %v2209 = vpack.c.b16 %v2170, %v2167
        %v2210 = vpack.c.b16 %v2171, %v2168
        %v2211 = vpack.c.b16 %v2175, %v2172
        %v2212 = vpack.c.b16 %v2176, %v2173
        %v2213 = vpack.c.b16 %v2177, %v2174
        %v2214 = vpack.c.b16 %v2181, %v2178
        %v2215 = vpack.c.b16 %v2182, %v2179
        %v2216 = vpack.c.b16 %v2183, %v2180
        %v2217 = vpack.c.b16 %v2187, %v2184
        %v2218 = vpack.c.b16 %v2188, %v2185
        %v2219 = vpack.c.b16 %v2189, %v2186
        %v2220 = vpack.c.b16 %v2193, %v2190
        %v2221 = vpack.c.b16 %v2194, %v2191
        %v2222 = vpack.c.b16 %v2195, %v2192
        %v2223 = vpack.c.b16 %v2199, %v2196
        %v2224 = vpack.c.b16 %v2200, %v2197
        %v2225 = vpack.c.b16 %v2201, %v2198
        %2250 = vmatpush.bf16.msra.mxu0 %v2223
        %2251 = vmatpush.bf16.msra.mxu0 %v2220
        %2252 = vmatpush.bf16.msra.mxu0 %v2217
        %2253 = vmatpush.bf16.msra.mxu0 %v2214
        %2254 = vmatpush.bf16.msra.mxu0 %v2211
        %2255 = vmatpush.bf16.msra.mxu0 %v2208
        %2256 = vmatpush.bf16.msra.mxu0 %v2205
        %2257 = vmatpush.bf16.msra.mxu0 %v2202
        %2258 = vmatmul.bf16.gmra.mxu0 %v2079
        %v2259 = vpop.f32.mrf.mxu0
        %v2260 = vadd.f32 %v2116, %v2259
        %v2261 = vpop.f32.mrf.mxu0
        %2262 = vdwg.mxu0
        %2263 = vmatpush.bf16.msra.mxu0 %v2224
        %2264 = vmatpush.bf16.msra.mxu0 %v2221
        %2265 = vmatpush.bf16.msra.mxu0 %v2218
        %2266 = vmatpush.bf16.msra.mxu0 %v2215
        %2267 = vmatpush.bf16.msra.mxu0 %v2212
        %2268 = vmatpush.bf16.msra.mxu0 %v2209
        %2269 = vmatpush.bf16.msra.mxu0 %v2206
        %2270 = vmatpush.bf16.msra.mxu0 %v2203
        %2271 = vmatmul.bf16.gmra.mxu0 %v2079
        %v2272 = vpop.f32.mrf.mxu0
        %v2273 = vadd.f32 %v2117, %v2272
        %v2274 = vpop.f32.mrf.mxu0
        %2275 = vdwg.mxu0
        %2276 = vmatpush.bf16.msra.mxu0 %v2225
        %2277 = vmatpush.bf16.msra.mxu0 %v2222
        %2278 = vmatpush.bf16.msra.mxu0 %v2219
        %2279 = vmatpush.bf16.msra.mxu0 %v2216
        %2280 = vmatpush.bf16.msra.mxu0 %v2213
        %2281 = vmatpush.bf16.msra.mxu0 %v2210
        %2282 = vmatpush.bf16.msra.mxu0 %v2207
        %2283 = vmatpush.bf16.msra.mxu0 %v2204
        %2284 = vmatmul.bf16.gmra.mxu0 %v2079
        %v2285 = vpop.f32.mrf.mxu0
        %v2286 = vadd.f32 %v2118, %v2285
        %v2287 = vpop.f32.mrf.mxu0
        %2288 = vdwg.mxu0
        %v2289 = vpack.c.bf16 %v2260, %v2260
        %v2290 = vpack.c.bf16 %v2273, %v2273
        %v2291 = vpack.c.bf16 %v2286, %v2286
        %v2293 = vsel %vm772, %v2289, 0
        %v2296 = vsel %vm772, %v2290, 0
        %2298 = vmatpush.bf16.xpose.msra.mxu0 0
        %2299 = vmatpush.bf16.xpose.msra.mxu0 0
        %2300 = vmatpush.bf16.xpose.msra.mxu0 0
        %2301 = vmatpush.bf16.xpose.msra.mxu0 0
        %2302 = vmatpush.bf16.xpose.msra.mxu0 0
        %2303 = vmatpush.bf16.xpose.msra.mxu0 0
        %2304 = vmatpush.bf16.xpose.msra.mxu0 0
        %2305 = vmatpush.bf16.xpose.msra.mxu0 %v2296
        %2306 = vmatmul.bf16.gmra.mxu0 %v2293
        %v2307 = vpop.f32.mrf.mxu0
        %v2308 = vadd.f32 0.0, %v2307
        %v2309 = vpop.f32.mrf.mxu0
        %2310 = vdwg.mxu0
        %v2311 = vsel %vm792, %v2308, -inf
        %2312 = vmax.xlane.f32.xlu0 %v2311
        %v2313 = vpop.xlane.xlu0 %2312
        %v2314 = vsub.f32 %v2308, %v2313
        %v2315 = vmul.f32 %v2314, 1.442695
        %v2316 = vpow.pop %v2315
        %v2317 = vsel %vm792, %v2316, 0.0
        %2318 = vadd.xlane.f32.xlu0 %v2317
        %v2319 = vpop.xlane.xlu0 %2318
        %v2320 = vrcp.pop %v2319
        %v2321 = vmul.f32 %v2316, %v2320
        %v2322 = vpack.c.bf16 %v2321, %v2321
        %v2324 = vsel %vm792, %v2322, 0
        %v2327 = vsel %vm808, %v2291, 0
        %2329 = vmatpush.bf16.msra.mxu0 0
        %2330 = vmatpush.bf16.msra.mxu0 0
        %2331 = vmatpush.bf16.msra.mxu0 0
        %2332 = vmatpush.bf16.msra.mxu0 0
        %2333 = vmatpush.bf16.msra.mxu0 0
        %2334 = vmatpush.bf16.msra.mxu0 0
        %2335 = vmatpush.bf16.msra.mxu0 0
        %2336 = vmatpush.bf16.msra.mxu0 %v2327
        %2337 = vmatmul.bf16.gmra.mxu0 %v2324
        %v2338 = vpop.f32.mrf.mxu0
        %v2339 = vadd.f32 0.0, %v2338
        %v2340 = vpop.f32.mrf.mxu0
        %2341 = vdwg.mxu0
        %v2342 = vpack.c.bf16 %v2339, %v2339
        %s2343 = scalar_lea.vmem %s3, 64
        %v2344 = vld [vmem:[%s2343] sm:$0xf]
        %v2345 = vld [vmem:[%s2343 + $0x4] sm:$0xf]
        %2347 = vrot.lane.b32.xlu0 %v2289, 112
        %v2348 = vpop.permute.xlu0 %2347
        %2350 = vrot.lane.b32.xlu0 %v2290, 112
        %v2351 = vpop.permute.xlu0 %2350
        %v2353 = vsel %vm772, %v2348, 0
        %v2356 = vsel %vm772, %v2351, 0
        %2358 = vmatpush.bf16.xpose.msra.mxu0 0
        %2359 = vmatpush.bf16.xpose.msra.mxu0 0
        %2360 = vmatpush.bf16.xpose.msra.mxu0 0
        %2361 = vmatpush.bf16.xpose.msra.mxu0 0
        %2362 = vmatpush.bf16.xpose.msra.mxu0 0
        %2363 = vmatpush.bf16.xpose.msra.mxu0 0
        %2364 = vmatpush.bf16.xpose.msra.mxu0 0
        %2365 = vmatpush.bf16.xpose.msra.mxu0 %v2356
        %2366 = vmatmul.bf16.gmra.mxu0 %v2353
        %v2367 = vpop.f32.mrf.mxu0
        %v2368 = vadd.f32 0.0, %v2367
        %v2369 = vpop.f32.mrf.mxu0
        %2370 = vdwg.mxu0
        %v2371 = vsel %vm792, %v2368, -inf
        %2372 = vmax.xlane.f32.xlu0 %v2371
        %v2373 = vpop.xlane.xlu0 %2372
        %v2374 = vsub.f32 %v2368, %v2373
        %v2375 = vmul.f32 %v2374, 1.442695
        %v2376 = vpow.pop %v2375
        %v2377 = vsel %vm792, %v2376, 0.0
        %2378 = vadd.xlane.f32.xlu0 %v2377
        %v2379 = vpop.xlane.xlu0 %2378
        %v2380 = vrcp.pop %v2379
        %v2381 = vmul.f32 %v2376, %v2380
        %v2382 = vpack.c.bf16 %v2381, %v2381
        %2384 = vrot.lane.b32.xlu0 %v2291, 112
        %v2385 = vpop.permute.xlu0 %2384
        %v2387 = vsel %vm792, %v2382, 0
        %v2390 = vsel %vm808, %v2385, 0
        %2392 = vmatpush.bf16.msra.mxu0 0
        %2393 = vmatpush.bf16.msra.mxu0 0
        %2394 = vmatpush.bf16.msra.mxu0 0
        %2395 = vmatpush.bf16.msra.mxu0 0
        %2396 = vmatpush.bf16.msra.mxu0 0
        %2397 = vmatpush.bf16.msra.mxu0 0
        %2398 = vmatpush.bf16.msra.mxu0 0
        %2399 = vmatpush.bf16.msra.mxu0 %v2390
        %2400 = vmatmul.bf16.gmra.mxu0 %v2387
        %v2401 = vpop.f32.mrf.mxu0
        %v2402 = vadd.f32 0.0, %v2401
        %v2403 = vpop.f32.mrf.mxu0
        %2404 = vdwg.mxu0
        %v2405 = vpack.c.bf16 %v2402, %v2402
        %s2406 = scalar_lea.vmem %s3, 72
        %v2407 = vld [vmem:[%s2406] sm:$0xf]
        %v2408 = vld [vmem:[%s2406 + $0x4] sm:$0xf]
        %v2411 = vunpack.c.l.b16 %v2407
        %v2412 = vunpack.c.l.b16 %v2408
        %v2413 = vpack.c.b16 %v2412, %v2411
        %v2416 = vsel %vm772, %v2405, 0
        %2418 = vmatpush.bf16.msra.mxu0 0
        %2419 = vmatpush.bf16.msra.mxu0 0
        %2420 = vmatpush.bf16.msra.mxu0 0
        %2421 = vmatpush.bf16.msra.mxu0 0
        %2422 = vmatpush.bf16.msra.mxu0 0
        %2423 = vmatpush.bf16.msra.mxu0 0
        %2424 = vmatpush.bf16.msra.mxu0 0
        %2425 = vmatpush.bf16.msra.mxu0 %v2413
        %2426 = vmatmul.bf16.gmra.mxu0 %v2416
        %v2427 = vpop.f32.mrf.mxu0
        %v2428 = vadd.f32 0.0, %v2427
        %v2429 = vpop.f32.mrf.mxu0
        %2430 = vdwg.mxu0
        %v2433 = vunpack.c.l.b16 %v2344
        %v2434 = vunpack.c.l.b16 %v2345
        %v2435 = vpack.c.b16 %v2434, %v2433
        %v2438 = vsel %vm772, %v2342, 0
        %2440 = vmatpush.bf16.msra.mxu0 0
        %2441 = vmatpush.bf16.msra.mxu0 0
        %2442 = vmatpush.bf16.msra.mxu0 0
        %2443 = vmatpush.bf16.msra.mxu0 0
        %2444 = vmatpush.bf16.msra.mxu0 0
        %2445 = vmatpush.bf16.msra.mxu0 0
        %2446 = vmatpush.bf16.msra.mxu0 0
        %2447 = vmatpush.bf16.msra.mxu0 %v2435
        %2448 = vmatmul.bf16.gmra.mxu0 %v2438
        %v2449 = vpop.f32.mrf.mxu0
        %v2450 = vadd.f32 %v2428, %v2449
        %v2451 = vpop.f32.mrf.mxu0
        %2452 = vdwg.mxu0
        %2453 = vrot.lane.b32.xlu0 %v2289, 96
        %v2454 = vpop.permute.xlu0 %2453
        %2455 = vrot.lane.b32.xlu0 %v2290, 96
        %v2456 = vpop.permute.xlu0 %2455
        %v2458 = vsel %vm772, %v2454, 0
        %v2461 = vsel %vm772, %v2456, 0
        %2463 = vmatpush.bf16.xpose.msra.mxu0 0
        %2464 = vmatpush.bf16.xpose.msra.mxu0 0
        %2465 = vmatpush.bf16.xpose.msra.mxu0 0
        %2466 = vmatpush.bf16.xpose.msra.mxu0 0
        %2467 = vmatpush.bf16.xpose.msra.mxu0 0
        %2468 = vmatpush.bf16.xpose.msra.mxu0 0
        %2469 = vmatpush.bf16.xpose.msra.mxu0 0
        %2470 = vmatpush.bf16.xpose.msra.mxu0 %v2461
        %2471 = vmatmul.bf16.gmra.mxu0 %v2458
        %v2472 = vpop.f32.mrf.mxu0
        %v2473 = vadd.f32 0.0, %v2472
        %v2474 = vpop.f32.mrf.mxu0
        %2475 = vdwg.mxu0
        %v2476 = vsel %vm792, %v2473, -inf
        %2477 = vmax.xlane.f32.xlu0 %v2476
        %v2478 = vpop.xlane.xlu0 %2477
        %v2479 = vsub.f32 %v2473, %v2478
        %v2480 = vmul.f32 %v2479, 1.442695
        %v2481 = vpow.pop %v2480
        %v2482 = vsel %vm792, %v2481, 0.0
        %2483 = vadd.xlane.f32.xlu0 %v2482
        %v2484 = vpop.xlane.xlu0 %2483
        %v2485 = vrcp.pop %v2484
        %v2486 = vmul.f32 %v2481, %v2485
        %v2487 = vpack.c.bf16 %v2486, %v2486
        %2488 = vrot.lane.b32.xlu0 %v2291, 96
        %v2489 = vpop.permute.xlu0 %2488
        %v2491 = vsel %vm792, %v2487, 0
        %v2494 = vsel %vm808, %v2489, 0
        %2496 = vmatpush.bf16.msra.mxu0 0
        %2497 = vmatpush.bf16.msra.mxu0 0
        %2498 = vmatpush.bf16.msra.mxu0 0
        %2499 = vmatpush.bf16.msra.mxu0 0
        %2500 = vmatpush.bf16.msra.mxu0 0
        %2501 = vmatpush.bf16.msra.mxu0 0
        %2502 = vmatpush.bf16.msra.mxu0 0
        %2503 = vmatpush.bf16.msra.mxu0 %v2494
        %2504 = vmatmul.bf16.gmra.mxu0 %v2491
        %v2505 = vpop.f32.mrf.mxu0
        %v2506 = vadd.f32 0.0, %v2505
        %v2507 = vpop.f32.mrf.mxu0
        %2508 = vdwg.mxu0
        %v2509 = vpack.c.bf16 %v2506, %v2506
        %s2510 = scalar_lea.vmem %s3, 80
        %v2511 = vld [vmem:[%s2510] sm:$0xf]
        %v2512 = vld [vmem:[%s2510 + $0x4] sm:$0xf]
        %v2515 = vunpack.c.l.b16 %v2511
        %v2516 = vunpack.c.l.b16 %v2512
        %v2517 = vpack.c.b16 %v2516, %v2515
        %v2520 = vsel %vm772, %v2509, 0
        %2522 = vmatpush.bf16.msra.mxu0 0
        %2523 = vmatpush.bf16.msra.mxu0 0
        %2524 = vmatpush.bf16.msra.mxu0 0
        %2525 = vmatpush.bf16.msra.mxu0 0
        %2526 = vmatpush.bf16.msra.mxu0 0
        %2527 = vmatpush.bf16.msra.mxu0 0
        %2528 = vmatpush.bf16.msra.mxu0 0
        %2529 = vmatpush.bf16.msra.mxu0 %v2517
        %2530 = vmatmul.bf16.gmra.mxu0 %v2520
        %v2531 = vpop.f32.mrf.mxu0
        %v2532 = vadd.f32 0.0, %v2531
        %v2533 = vpop.f32.mrf.mxu0
        %2534 = vdwg.mxu0
        %v2535 = vadd.f32 %v2450, %v2532
        %2536 = vrot.lane.b32.xlu0 %v2289, 80
        %v2537 = vpop.permute.xlu0 %2536
        %2538 = vrot.lane.b32.xlu0 %v2290, 80
        %v2539 = vpop.permute.xlu0 %2538
        %v2541 = vsel %vm772, %v2537, 0
        %v2544 = vsel %vm772, %v2539, 0
        %2546 = vmatpush.bf16.xpose.msra.mxu0 0
        %2547 = vmatpush.bf16.xpose.msra.mxu0 0
        %2548 = vmatpush.bf16.xpose.msra.mxu0 0
        %2549 = vmatpush.bf16.xpose.msra.mxu0 0
        %2550 = vmatpush.bf16.xpose.msra.mxu0 0
        %2551 = vmatpush.bf16.xpose.msra.mxu0 0
        %2552 = vmatpush.bf16.xpose.msra.mxu0 0
        %2553 = vmatpush.bf16.xpose.msra.mxu0 %v2544
        %2554 = vmatmul.bf16.gmra.mxu0 %v2541
        %v2555 = vpop.f32.mrf.mxu0
        %v2556 = vadd.f32 0.0, %v2555
        %v2557 = vpop.f32.mrf.mxu0
        %2558 = vdwg.mxu0
        %v2559 = vsel %vm792, %v2556, -inf
        %2560 = vmax.xlane.f32.xlu0 %v2559
        %v2561 = vpop.xlane.xlu0 %2560
        %v2562 = vsub.f32 %v2556, %v2561
        %v2563 = vmul.f32 %v2562, 1.442695
        %v2564 = vpow.pop %v2563
        %v2565 = vsel %vm792, %v2564, 0.0
        %2566 = vadd.xlane.f32.xlu0 %v2565
        %v2567 = vpop.xlane.xlu0 %2566
        %v2568 = vrcp.pop %v2567
        %v2569 = vmul.f32 %v2564, %v2568
        %v2570 = vpack.c.bf16 %v2569, %v2569
        %2571 = vrot.lane.b32.xlu0 %v2291, 80
        %v2572 = vpop.permute.xlu0 %2571
        %v2574 = vsel %vm792, %v2570, 0
        %v2577 = vsel %vm808, %v2572, 0
        %2579 = vmatpush.bf16.msra.mxu0 0
        %2580 = vmatpush.bf16.msra.mxu0 0
        %2581 = vmatpush.bf16.msra.mxu0 0
        %2582 = vmatpush.bf16.msra.mxu0 0
        %2583 = vmatpush.bf16.msra.mxu0 0
        %2584 = vmatpush.bf16.msra.mxu0 0
        %2585 = vmatpush.bf16.msra.mxu0 0
        %2586 = vmatpush.bf16.msra.mxu0 %v2577
        %2587 = vmatmul.bf16.gmra.mxu0 %v2574
        %v2588 = vpop.f32.mrf.mxu0
        %v2589 = vadd.f32 0.0, %v2588
        %v2590 = vpop.f32.mrf.mxu0
        %2591 = vdwg.mxu0
        %v2592 = vpack.c.bf16 %v2589, %v2589
        %s2593 = scalar_lea.vmem %s3, 88
        %v2594 = vld [vmem:[%s2593] sm:$0xf]
        %v2595 = vld [vmem:[%s2593 + $0x4] sm:$0xf]
        %v2598 = vunpack.c.l.b16 %v2594
        %v2599 = vunpack.c.l.b16 %v2595
        %v2600 = vpack.c.b16 %v2599, %v2598
        %v2603 = vsel %vm772, %v2592, 0
        %2605 = vmatpush.bf16.msra.mxu0 0
        %2606 = vmatpush.bf16.msra.mxu0 0
        %2607 = vmatpush.bf16.msra.mxu0 0
        %2608 = vmatpush.bf16.msra.mxu0 0
        %2609 = vmatpush.bf16.msra.mxu0 0
        %2610 = vmatpush.bf16.msra.mxu0 0
        %2611 = vmatpush.bf16.msra.mxu0 0
        %2612 = vmatpush.bf16.msra.mxu0 %v2600
        %2613 = vmatmul.bf16.gmra.mxu0 %v2603
        %v2614 = vpop.f32.mrf.mxu0
        %v2615 = vadd.f32 0.0, %v2614
        %v2616 = vpop.f32.mrf.mxu0
        %2617 = vdwg.mxu0
        %v2618 = vadd.f32 %v2535, %v2615
        %2619 = vrot.lane.b32.xlu0 %v2289, 64
        %v2620 = vpop.permute.xlu0 %2619
        %2621 = vrot.lane.b32.xlu0 %v2290, 64
        %v2622 = vpop.permute.xlu0 %2621
        %v2624 = vsel %vm772, %v2620, 0
        %v2627 = vsel %vm772, %v2622, 0
        %2629 = vmatpush.bf16.xpose.msra.mxu0 0
        %2630 = vmatpush.bf16.xpose.msra.mxu0 0
        %2631 = vmatpush.bf16.xpose.msra.mxu0 0
        %2632 = vmatpush.bf16.xpose.msra.mxu0 0
        %2633 = vmatpush.bf16.xpose.msra.mxu0 0
        %2634 = vmatpush.bf16.xpose.msra.mxu0 0
        %2635 = vmatpush.bf16.xpose.msra.mxu0 0
        %2636 = vmatpush.bf16.xpose.msra.mxu0 %v2627
        %2637 = vmatmul.bf16.gmra.mxu0 %v2624
        %v2638 = vpop.f32.mrf.mxu0
        %v2639 = vadd.f32 0.0, %v2638
        %v2640 = vpop.f32.mrf.mxu0
        %2641 = vdwg.mxu0
        %v2642 = vsel %vm792, %v2639, -inf
        %2643 = vmax.xlane.f32.xlu0 %v2642
        %v2644 = vpop.xlane.xlu0 %2643
        %v2645 = vsub.f32 %v2639, %v2644
        %v2646 = vmul.f32 %v2645, 1.442695
        %v2647 = vpow.pop %v2646
        %v2648 = vsel %vm792, %v2647, 0.0
        %2649 = vadd.xlane.f32.xlu0 %v2648
        %v2650 = vpop.xlane.xlu0 %2649
        %v2651 = vrcp.pop %v2650
        %v2652 = vmul.f32 %v2647, %v2651
        %v2653 = vpack.c.bf16 %v2652, %v2652
        %2654 = vrot.lane.b32.xlu0 %v2291, 64
        %v2655 = vpop.permute.xlu0 %2654
        %v2657 = vsel %vm792, %v2653, 0
        %v2660 = vsel %vm808, %v2655, 0
        %2662 = vmatpush.bf16.msra.mxu0 0
        %2663 = vmatpush.bf16.msra.mxu0 0
        %2664 = vmatpush.bf16.msra.mxu0 0
        %2665 = vmatpush.bf16.msra.mxu0 0
        %2666 = vmatpush.bf16.msra.mxu0 0
        %2667 = vmatpush.bf16.msra.mxu0 0
        %2668 = vmatpush.bf16.msra.mxu0 0
        %2669 = vmatpush.bf16.msra.mxu0 %v2660
        %2670 = vmatmul.bf16.gmra.mxu0 %v2657
        %v2671 = vpop.f32.mrf.mxu0
        %v2672 = vadd.f32 0.0, %v2671
        %v2673 = vpop.f32.mrf.mxu0
        %2674 = vdwg.mxu0
        %v2675 = vpack.c.bf16 %v2672, %v2672
        %s2676 = scalar_lea.vmem %s3, 96
        %v2677 = vld [vmem:[%s2676] sm:$0xf]
        %v2678 = vld [vmem:[%s2676 + $0x4] sm:$0xf]
        %v2681 = vunpack.c.l.b16 %v2677
        %v2682 = vunpack.c.l.b16 %v2678
        %v2683 = vpack.c.b16 %v2682, %v2681
        %v2686 = vsel %vm772, %v2675, 0
        %2688 = vmatpush.bf16.msra.mxu0 0
        %2689 = vmatpush.bf16.msra.mxu0 0
        %2690 = vmatpush.bf16.msra.mxu0 0
        %2691 = vmatpush.bf16.msra.mxu0 0
        %2692 = vmatpush.bf16.msra.mxu0 0
        %2693 = vmatpush.bf16.msra.mxu0 0
        %2694 = vmatpush.bf16.msra.mxu0 0
        %2695 = vmatpush.bf16.msra.mxu0 %v2683
        %2696 = vmatmul.bf16.gmra.mxu0 %v2686
        %v2697 = vpop.f32.mrf.mxu0
        %v2698 = vadd.f32 0.0, %v2697
        %v2699 = vpop.f32.mrf.mxu0
        %2700 = vdwg.mxu0
        %v2701 = vadd.f32 %v2618, %v2698
        %2702 = vrot.lane.b32.xlu0 %v2289, 48
        %v2703 = vpop.permute.xlu0 %2702
        %2704 = vrot.lane.b32.xlu0 %v2290, 48
        %v2705 = vpop.permute.xlu0 %2704
        %v2707 = vsel %vm772, %v2703, 0
        %v2710 = vsel %vm772, %v2705, 0
        %2712 = vmatpush.bf16.xpose.msra.mxu0 0
        %2713 = vmatpush.bf16.xpose.msra.mxu0 0
        %2714 = vmatpush.bf16.xpose.msra.mxu0 0
        %2715 = vmatpush.bf16.xpose.msra.mxu0 0
        %2716 = vmatpush.bf16.xpose.msra.mxu0 0
        %2717 = vmatpush.bf16.xpose.msra.mxu0 0
        %2718 = vmatpush.bf16.xpose.msra.mxu0 0
        %2719 = vmatpush.bf16.xpose.msra.mxu0 %v2710
        %2720 = vmatmul.bf16.gmra.mxu0 %v2707
        %v2721 = vpop.f32.mrf.mxu0
        %v2722 = vadd.f32 0.0, %v2721
        %v2723 = vpop.f32.mrf.mxu0
        %2724 = vdwg.mxu0
        %v2725 = vsel %vm792, %v2722, -inf
        %2726 = vmax.xlane.f32.xlu0 %v2725
        %v2727 = vpop.xlane.xlu0 %2726
        %v2728 = vsub.f32 %v2722, %v2727
        %v2729 = vmul.f32 %v2728, 1.442695
        %v2730 = vpow.pop %v2729
        %v2731 = vsel %vm792, %v2730, 0.0
        %2732 = vadd.xlane.f32.xlu0 %v2731
        %v2733 = vpop.xlane.xlu0 %2732
        %v2734 = vrcp.pop %v2733
        %v2735 = vmul.f32 %v2730, %v2734
        %v2736 = vpack.c.bf16 %v2735, %v2735
        %2737 = vrot.lane.b32.xlu0 %v2291, 48
        %v2738 = vpop.permute.xlu0 %2737
        %v2740 = vsel %vm792, %v2736, 0
        %v2743 = vsel %vm808, %v2738, 0
        %2745 = vmatpush.bf16.msra.mxu0 0
        %2746 = vmatpush.bf16.msra.mxu0 0
        %2747 = vmatpush.bf16.msra.mxu0 0
        %2748 = vmatpush.bf16.msra.mxu0 0
        %2749 = vmatpush.bf16.msra.mxu0 0
        %2750 = vmatpush.bf16.msra.mxu0 0
        %2751 = vmatpush.bf16.msra.mxu0 0
        %2752 = vmatpush.bf16.msra.mxu0 %v2743
        %2753 = vmatmul.bf16.gmra.mxu0 %v2740
        %v2754 = vpop.f32.mrf.mxu0
        %v2755 = vadd.f32 0.0, %v2754
        %v2756 = vpop.f32.mrf.mxu0
        %2757 = vdwg.mxu0
        %v2758 = vpack.c.bf16 %v2755, %v2755
        %s2759 = scalar_lea.vmem %s3, 104
        %v2760 = vld [vmem:[%s2759] sm:$0xf]
        %v2761 = vld [vmem:[%s2759 + $0x4] sm:$0xf]
        %v2764 = vunpack.c.l.b16 %v2760
        %v2765 = vunpack.c.l.b16 %v2761
        %v2766 = vpack.c.b16 %v2765, %v2764
        %v2769 = vsel %vm772, %v2758, 0
        %2771 = vmatpush.bf16.msra.mxu0 0
        %2772 = vmatpush.bf16.msra.mxu0 0
        %2773 = vmatpush.bf16.msra.mxu0 0
        %2774 = vmatpush.bf16.msra.mxu0 0
        %2775 = vmatpush.bf16.msra.mxu0 0
        %2776 = vmatpush.bf16.msra.mxu0 0
        %2777 = vmatpush.bf16.msra.mxu0 0
        %2778 = vmatpush.bf16.msra.mxu0 %v2766
        %2779 = vmatmul.bf16.gmra.mxu0 %v2769
        %v2780 = vpop.f32.mrf.mxu0
        %v2781 = vadd.f32 0.0, %v2780
        %v2782 = vpop.f32.mrf.mxu0
        %2783 = vdwg.mxu0
        %v2784 = vadd.f32 %v2701, %v2781
        %2785 = vrot.lane.b32.xlu0 %v2289, 32
        %v2786 = vpop.permute.xlu0 %2785
        %2787 = vrot.lane.b32.xlu0 %v2290, 32
        %v2788 = vpop.permute.xlu0 %2787
        %v2790 = vsel %vm772, %v2786, 0
        %v2793 = vsel %vm772, %v2788, 0
        %2795 = vmatpush.bf16.xpose.msra.mxu0 0
        %2796 = vmatpush.bf16.xpose.msra.mxu0 0
        %2797 = vmatpush.bf16.xpose.msra.mxu0 0
        %2798 = vmatpush.bf16.xpose.msra.mxu0 0
        %2799 = vmatpush.bf16.xpose.msra.mxu0 0
        %2800 = vmatpush.bf16.xpose.msra.mxu0 0
        %2801 = vmatpush.bf16.xpose.msra.mxu0 0
        %2802 = vmatpush.bf16.xpose.msra.mxu0 %v2793
        %2803 = vmatmul.bf16.gmra.mxu0 %v2790
        %v2804 = vpop.f32.mrf.mxu0
        %v2805 = vadd.f32 0.0, %v2804
        %v2806 = vpop.f32.mrf.mxu0
        %2807 = vdwg.mxu0
        %v2808 = vsel %vm792, %v2805, -inf
        %2809 = vmax.xlane.f32.xlu0 %v2808
        %v2810 = vpop.xlane.xlu0 %2809
        %v2811 = vsub.f32 %v2805, %v2810
        %v2812 = vmul.f32 %v2811, 1.442695
        %v2813 = vpow.pop %v2812
        %v2814 = vsel %vm792, %v2813, 0.0
        %2815 = vadd.xlane.f32.xlu0 %v2814
        %v2816 = vpop.xlane.xlu0 %2815
        %v2817 = vrcp.pop %v2816
        %v2818 = vmul.f32 %v2813, %v2817
        %v2819 = vpack.c.bf16 %v2818, %v2818
        %2820 = vrot.lane.b32.xlu0 %v2291, 32
        %v2821 = vpop.permute.xlu0 %2820
        %v2823 = vsel %vm792, %v2819, 0
        %v2826 = vsel %vm808, %v2821, 0
        %2828 = vmatpush.bf16.msra.mxu0 0
        %2829 = vmatpush.bf16.msra.mxu0 0
        %2830 = vmatpush.bf16.msra.mxu0 0
        %2831 = vmatpush.bf16.msra.mxu0 0
        %2832 = vmatpush.bf16.msra.mxu0 0
        %2833 = vmatpush.bf16.msra.mxu0 0
        %2834 = vmatpush.bf16.msra.mxu0 0
        %2835 = vmatpush.bf16.msra.mxu0 %v2826
        %2836 = vmatmul.bf16.gmra.mxu0 %v2823
        %v2837 = vpop.f32.mrf.mxu0
        %v2838 = vadd.f32 0.0, %v2837
        %v2839 = vpop.f32.mrf.mxu0
        %2840 = vdwg.mxu0
        %v2841 = vpack.c.bf16 %v2838, %v2838
        %s2842 = scalar_lea.vmem %s3, 112
        %v2843 = vld [vmem:[%s2842] sm:$0xf]
        %v2844 = vld [vmem:[%s2842 + $0x4] sm:$0xf]
        %v2847 = vunpack.c.l.b16 %v2843
        %v2848 = vunpack.c.l.b16 %v2844
        %v2849 = vpack.c.b16 %v2848, %v2847
        %v2852 = vsel %vm772, %v2841, 0
        %2854 = vmatpush.bf16.msra.mxu0 0
        %2855 = vmatpush.bf16.msra.mxu0 0
        %2856 = vmatpush.bf16.msra.mxu0 0
        %2857 = vmatpush.bf16.msra.mxu0 0
        %2858 = vmatpush.bf16.msra.mxu0 0
        %2859 = vmatpush.bf16.msra.mxu0 0
        %2860 = vmatpush.bf16.msra.mxu0 0
        %2861 = vmatpush.bf16.msra.mxu0 %v2849
        %2862 = vmatmul.bf16.gmra.mxu0 %v2852
        %v2863 = vpop.f32.mrf.mxu0
        %v2864 = vadd.f32 0.0, %v2863
        %v2865 = vpop.f32.mrf.mxu0
        %2866 = vdwg.mxu0
        %v2867 = vadd.f32 %v2784, %v2864
        %2868 = vrot.lane.b32.xlu0 %v2289, 16
        %v2869 = vpop.permute.xlu0 %2868
        %2870 = vrot.lane.b32.xlu0 %v2290, 16
        %v2871 = vpop.permute.xlu0 %2870
        %v2873 = vsel %vm772, %v2869, 0
        %v2876 = vsel %vm772, %v2871, 0
        %2878 = vmatpush.bf16.xpose.msra.mxu0 0
        %2879 = vmatpush.bf16.xpose.msra.mxu0 0
        %2880 = vmatpush.bf16.xpose.msra.mxu0 0
        %2881 = vmatpush.bf16.xpose.msra.mxu0 0
        %2882 = vmatpush.bf16.xpose.msra.mxu0 0
        %2883 = vmatpush.bf16.xpose.msra.mxu0 0
        %2884 = vmatpush.bf16.xpose.msra.mxu0 0
        %2885 = vmatpush.bf16.xpose.msra.mxu0 %v2876
        %2886 = vmatmul.bf16.gmra.mxu0 %v2873
        %v2887 = vpop.f32.mrf.mxu0
        %v2888 = vadd.f32 0.0, %v2887
        %v2889 = vpop.f32.mrf.mxu0
        %2890 = vdwg.mxu0
        %v2891 = vsel %vm792, %v2888, -inf
        %2892 = vmax.xlane.f32.xlu0 %v2891
        %v2893 = vpop.xlane.xlu0 %2892
        %v2894 = vsub.f32 %v2888, %v2893
        %v2895 = vmul.f32 %v2894, 1.442695
        %v2896 = vpow.pop %v2895
        %v2897 = vsel %vm792, %v2896, 0.0
        %2898 = vadd.xlane.f32.xlu0 %v2897
        %v2899 = vpop.xlane.xlu0 %2898
        %v2900 = vrcp.pop %v2899
        %v2901 = vmul.f32 %v2896, %v2900
        %v2902 = vpack.c.bf16 %v2901, %v2901
        %2903 = vrot.lane.b32.xlu0 %v2291, 16
        %v2904 = vpop.permute.xlu0 %2903
        %v2906 = vsel %vm792, %v2902, 0
        %v2909 = vsel %vm808, %v2904, 0
        %2911 = vmatpush.bf16.msra.mxu0 0
        %2912 = vmatpush.bf16.msra.mxu0 0
        %2913 = vmatpush.bf16.msra.mxu0 0
        %2914 = vmatpush.bf16.msra.mxu0 0
        %2915 = vmatpush.bf16.msra.mxu0 0
        %2916 = vmatpush.bf16.msra.mxu0 0
        %2917 = vmatpush.bf16.msra.mxu0 0
        %2918 = vmatpush.bf16.msra.mxu0 %v2909
        %2919 = vmatmul.bf16.gmra.mxu0 %v2906
        %v2920 = vpop.f32.mrf.mxu0
        %v2921 = vadd.f32 0.0, %v2920
        %v2922 = vpop.f32.mrf.mxu0
        %2923 = vdwg.mxu0
        %v2924 = vpack.c.bf16 %v2921, %v2921
        %s2925 = scalar_lea.vmem %s3, 120
        %v2926 = vld [vmem:[%s2925] sm:$0xf]
        %v2927 = vld [vmem:[%s2925 + $0x4] sm:$0xf]
        %v2930 = vunpack.c.l.b16 %v2926
        %v2931 = vunpack.c.l.b16 %v2927
        %v2932 = vpack.c.b16 %v2931, %v2930
        %v2935 = vsel %vm772, %v2924, 0
        %2937 = vmatpush.bf16.msra.mxu0 0
        %2938 = vmatpush.bf16.msra.mxu0 0
        %2939 = vmatpush.bf16.msra.mxu0 0
        %2940 = vmatpush.bf16.msra.mxu0 0
        %2941 = vmatpush.bf16.msra.mxu0 0
        %2942 = vmatpush.bf16.msra.mxu0 0
        %2943 = vmatpush.bf16.msra.mxu0 0
        %2944 = vmatpush.bf16.msra.mxu0 %v2932
        %2945 = vmatmul.bf16.gmra.mxu0 %v2935
        %v2946 = vpop.f32.mrf.mxu0
        %v2947 = vadd.f32 0.0, %v2946
        %v2948 = vpop.f32.mrf.mxu0
        %2949 = vdwg.mxu0
        %v2950 = vadd.f32 %v2867, %v2947
        %s2951 = scalar_lea.vmem %s4, 1
        %v2952 = vld [vmem:[%s2951] sm:$0x1]
        %v2954 = vperm.slane %v2952, 0
        %v2956 = vadd.f32 %v2950, %v2954
        %v2957 = vadd.f32 %v2956, %v2078
        %s2958 = scalar_lea.vmem %s5, 1
        %v2959 = vld [vmem:[%s2958] sm:$0x1]
        %s2960 = scalar_lea.vmem %s6, 1
        %v2961 = vld [vmem:[%s2960] sm:$0x1]
        %2962 = vadd.xlane.f32.xlu0 %v2957
        %v2963 = vpop.xlane.xlu0 %2962
        %v2964 = vmul.f32 %v2957, %v2957
        %2965 = vadd.xlane.f32.xlu0 %v2964
        %v2966 = vpop.xlane.xlu0 %2965
        %v2967 = vmul.f32 %v2963, 0.0078125
        %v2968 = vmul.f32 %v2966, 0.0078125
        %v2969 = vmul.f32 %v2967, %v2967
        %v2970 = vsub.f32 %v2968, %v2969
        %v2971 = vsub.f32 %v2957, %v2967
        %v2972 = vadd.f32 %v2970, 1e-05
        %v2973 = vrsqrt.pop %v2972
        %v2974 = vmul.f32 %v2973, %v2972
        %v2975 = vmul.f32 %v2974, %v2973
        %v2976 = vmul.f32 0.5, %v2975
        %v2977 = vsub.f32 1.5, %v2976
        %v2978 = vmul.f32 %v2973, %v2977
        %vm2979 = vweird.f32 %v2972
        %vm2980 = vweird.f32 %v2973
        %vm2981 = vmor %vm2979, %vm2980
        %v2982 = vsel %vm2981, %v2973, %v2978
        %v2983 = vmul.f32 %v2971, %v2982
        %v2985 = vperm.slane %v2959, 0
        %v2987 = vmul.f32 %v2983, %v2985
        %v2989 = vperm.slane %v2961, 0
        %v2991 = vadd.f32 %v2987, %v2989
        %v2992 = vpack.c.bf16 %v2991, %v2991
        %s2993 = scalar_lea.vmem [#allocation4], 256
        %v2994 = vld [vmem:[%s2993] sm:$0xff]
        %v2995 = vld [vmem:[%s2993 + $0x8] sm:$0xff]
        %v2996 = vld [vmem:[%s2993 + $0x10] sm:$0xff]
        %v2997 = vld [vmem:[%s2993 + $0x18] sm:$0xff]
        %v2998 = vld [vmem:[%s2993 + $0x20] sm:$0xff]
        %v2999 = vld [vmem:[%s2993 + $0x28] sm:$0xff]
        %v3000 = vld [vmem:[%s2993 + $0x30] sm:$0xff]
        %v3001 = vld [vmem:[%s2993 + $0x38] sm:$0xff]
        %v3002 = vld [vmem:[%s2993 + $0x40] sm:$0xff]
        %v3003 = vld [vmem:[%s2993 + $0x48] sm:$0xff]
        %v3004 = vld [vmem:[%s2993 + $0x50] sm:$0xff]
        %v3005 = vld [vmem:[%s2993 + $0x58] sm:$0xff]
        %v3006 = vld [vmem:[%s2993 + $0x60] sm:$0xff]
        %v3007 = vld [vmem:[%s2993 + $0x68] sm:$0xff]
        %v3008 = vld [vmem:[%s2993 + $0x70] sm:$0xff]
        %v3009 = vld [vmem:[%s2993 + $0x78] sm:$0xff]
        %v3010 = vld [vmem:[%s2993 + $0x80] sm:$0xff]
        %v3011 = vld [vmem:[%s2993 + $0x88] sm:$0xff]
        %v3012 = vld [vmem:[%s2993 + $0x90] sm:$0xff]
        %v3013 = vld [vmem:[%s2993 + $0x98] sm:$0xff]
        %v3014 = vld [vmem:[%s2993 + $0xa0] sm:$0xff]
        %v3015 = vld [vmem:[%s2993 + $0xa8] sm:$0xff]
        %v3016 = vld [vmem:[%s2993 + $0xb0] sm:$0xff]
        %v3017 = vld [vmem:[%s2993 + $0xb8] sm:$0xff]
        %v3018 = vld [vmem:[%s2993 + $0xc0] sm:$0xff]
        %v3019 = vld [vmem:[%s2993 + $0xc8] sm:$0xff]
        %v3020 = vld [vmem:[%s2993 + $0xd0] sm:$0xff]
        %v3021 = vld [vmem:[%s2993 + $0xd8] sm:$0xff]
        %v3022 = vld [vmem:[%s2993 + $0xe0] sm:$0xff]
        %v3023 = vld [vmem:[%s2993 + $0xe8] sm:$0xff]
        %v3024 = vld [vmem:[%s2993 + $0xf0] sm:$0xff]
        %v3025 = vld [vmem:[%s2993 + $0xf8] sm:$0xff]
        %s3026 = scalar_lea.vmem %s8, 4
        %v3027 = vld [vmem:[%s3026] sm:$0xf]
        %v3029 = vperm.slane %v3027, 0
        %v3030 = vperm.slane %v3027, 1
        %v3031 = vperm.slane %v3027, 2
        %v3032 = vperm.slane %v3027, 3
        %v3069 = vunpack.c.l.b16 %v2994
        %v3070 = vunpack.c.h.b16 %v2994
        %v3071 = vunpack.c.l.b16 %v2995
        %v3072 = vunpack.c.h.b16 %v2995
        %v3073 = vunpack.c.l.b16 %v2996
        %v3074 = vunpack.c.h.b16 %v2996
        %v3075 = vunpack.c.l.b16 %v2997
        %v3076 = vunpack.c.h.b16 %v2997
        %v3077 = vunpack.c.l.b16 %v2998
        %v3078 = vunpack.c.h.b16 %v2998
        %v3079 = vunpack.c.l.b16 %v2999
        %v3080 = vunpack.c.h.b16 %v2999
        %v3081 = vunpack.c.l.b16 %v3000
        %v3082 = vunpack.c.h.b16 %v3000
        %v3083 = vunpack.c.l.b16 %v3001
        %v3084 = vunpack.c.h.b16 %v3001
        %v3085 = vunpack.c.l.b16 %v3002
        %v3086 = vunpack.c.h.b16 %v3002
        %v3087 = vunpack.c.l.b16 %v3003
        %v3088 = vunpack.c.h.b16 %v3003
        %v3089 = vunpack.c.l.b16 %v3004
        %v3090 = vunpack.c.h.b16 %v3004
        %v3091 = vunpack.c.l.b16 %v3005
        %v3092 = vunpack.c.h.b16 %v3005
        %v3093 = vunpack.c.l.b16 %v3006
        %v3094 = vunpack.c.h.b16 %v3006
        %v3095 = vunpack.c.l.b16 %v3007
        %v3096 = vunpack.c.h.b16 %v3007
        %v3097 = vunpack.c.l.b16 %v3008
        %v3098 = vunpack.c.h.b16 %v3008
        %v3099 = vunpack.c.l.b16 %v3009
        %v3100 = vunpack.c.h.b16 %v3009
        %v3101 = vunpack.c.l.b16 %v3010
        %v3102 = vunpack.c.h.b16 %v3010
        %v3103 = vunpack.c.l.b16 %v3011
        %v3104 = vunpack.c.h.b16 %v3011
        %v3105 = vunpack.c.l.b16 %v3012
        %v3106 = vunpack.c.h.b16 %v3012
        %v3107 = vunpack.c.l.b16 %v3013
        %v3108 = vunpack.c.h.b16 %v3013
        %v3109 = vunpack.c.l.b16 %v3014
        %v3110 = vunpack.c.h.b16 %v3014
        %v3111 = vunpack.c.l.b16 %v3015
        %v3112 = vunpack.c.h.b16 %v3015
        %v3113 = vunpack.c.l.b16 %v3016
        %v3114 = vunpack.c.h.b16 %v3016
        %v3115 = vunpack.c.l.b16 %v3017
        %v3116 = vunpack.c.h.b16 %v3017
        %v3117 = vunpack.c.l.b16 %v3018
        %v3118 = vunpack.c.h.b16 %v3018
        %v3119 = vunpack.c.l.b16 %v3019
        %v3120 = vunpack.c.h.b16 %v3019
        %v3121 = vunpack.c.l.b16 %v3020
        %v3122 = vunpack.c.h.b16 %v3020
        %v3123 = vunpack.c.l.b16 %v3021
        %v3124 = vunpack.c.h.b16 %v3021
        %v3125 = vunpack.c.l.b16 %v3022
        %v3126 = vunpack.c.h.b16 %v3022
        %v3127 = vunpack.c.l.b16 %v3023
        %v3128 = vunpack.c.h.b16 %v3023
        %v3129 = vunpack.c.l.b16 %v3024
        %v3130 = vunpack.c.h.b16 %v3024
        %v3131 = vunpack.c.l.b16 %v3025
        %v3132 = vunpack.c.h.b16 %v3025
        %v3133 = vpack.c.b16 %v3073, %v3069
        %v3134 = vpack.c.b16 %v3074, %v3070
        %v3135 = vpack.c.b16 %v3075, %v3071
        %v3136 = vpack.c.b16 %v3076, %v3072
        %v3137 = vpack.c.b16 %v3081, %v3077
        %v3138 = vpack.c.b16 %v3082, %v3078
        %v3139 = vpack.c.b16 %v3083, %v3079
        %v3140 = vpack.c.b16 %v3084, %v3080
        %v3141 = vpack.c.b16 %v3089, %v3085
        %v3142 = vpack.c.b16 %v3090, %v3086
        %v3143 = vpack.c.b16 %v3091, %v3087
        %v3144 = vpack.c.b16 %v3092, %v3088
        %v3145 = vpack.c.b16 %v3097, %v3093
        %v3146 = vpack.c.b16 %v3098, %v3094
        %v3147 = vpack.c.b16 %v3099, %v3095
        %v3148 = vpack.c.b16 %v3100, %v3096
        %v3149 = vpack.c.b16 %v3105, %v3101
        %v3150 = vpack.c.b16 %v3106, %v3102
        %v3151 = vpack.c.b16 %v3107, %v3103
        %v3152 = vpack.c.b16 %v3108, %v3104
        %v3153 = vpack.c.b16 %v3113, %v3109
        %v3154 = vpack.c.b16 %v3114, %v3110
        %v3155 = vpack.c.b16 %v3115, %v3111
        %v3156 = vpack.c.b16 %v3116, %v3112
        %v3157 = vpack.c.b16 %v3121, %v3117
        %v3158 = vpack.c.b16 %v3122, %v3118
        %v3159 = vpack.c.b16 %v3123, %v3119
        %v3160 = vpack.c.b16 %v3124, %v3120
        %v3161 = vpack.c.b16 %v3129, %v3125
        %v3162 = vpack.c.b16 %v3130, %v3126
        %v3163 = vpack.c.b16 %v3131, %v3127
        %v3164 = vpack.c.b16 %v3132, %v3128
        %3197 = vmatpush.bf16.msra.mxu0 %v3161
        %3198 = vmatpush.bf16.msra.mxu0 %v3157
        %3199 = vmatpush.bf16.msra.mxu0 %v3153
        %3200 = vmatpush.bf16.msra.mxu0 %v3149
        %3201 = vmatpush.bf16.msra.mxu0 %v3145
        %3202 = vmatpush.bf16.msra.mxu0 %v3141
        %3203 = vmatpush.bf16.msra.mxu0 %v3137
        %3204 = vmatpush.bf16.msra.mxu0 %v3133
        %3205 = vmatmul.bf16.gmra.mxu0 %v2992
        %v3206 = vpop.f32.mrf.mxu0
        %v3207 = vadd.f32 %v3029, %v3206
        %v3208 = vpop.f32.mrf.mxu0
        %3209 = vdwg.mxu0
        %3210 = vmatpush.bf16.msra.mxu0 %v3162
        %3211 = vmatpush.bf16.msra.mxu0 %v3158
        %3212 = vmatpush.bf16.msra.mxu0 %v3154
        %3213 = vmatpush.bf16.msra.mxu0 %v3150
        %3214 = vmatpush.bf16.msra.mxu0 %v3146
        %3215 = vmatpush.bf16.msra.mxu0 %v3142
        %3216 = vmatpush.bf16.msra.mxu0 %v3138
        %3217 = vmatpush.bf16.msra.mxu0 %v3134
        %3218 = vmatmul.bf16.gmra.mxu0 %v2992
        %v3219 = vpop.f32.mrf.mxu0
        %v3220 = vadd.f32 %v3030, %v3219
        %v3221 = vpop.f32.mrf.mxu0
        %3222 = vdwg.mxu0
        %3223 = vmatpush.bf16.msra.mxu0 %v3163
        %3224 = vmatpush.bf16.msra.mxu0 %v3159
        %3225 = vmatpush.bf16.msra.mxu0 %v3155
        %3226 = vmatpush.bf16.msra.mxu0 %v3151
        %3227 = vmatpush.bf16.msra.mxu0 %v3147
        %3228 = vmatpush.bf16.msra.mxu0 %v3143
        %3229 = vmatpush.bf16.msra.mxu0 %v3139
        %3230 = vmatpush.bf16.msra.mxu0 %v3135
        %3231 = vmatmul.bf16.gmra.mxu0 %v2992
        %v3232 = vpop.f32.mrf.mxu0
        %v3233 = vadd.f32 %v3031, %v3232
        %v3234 = vpop.f32.mrf.mxu0
        %3235 = vdwg.mxu0
        %3236 = vmatpush.bf16.msra.mxu0 %v3164
        %3237 = vmatpush.bf16.msra.mxu0 %v3160
        %3238 = vmatpush.bf16.msra.mxu0 %v3156
        %3239 = vmatpush.bf16.msra.mxu0 %v3152
        %3240 = vmatpush.bf16.msra.mxu0 %v3148
        %3241 = vmatpush.bf16.msra.mxu0 %v3144
        %3242 = vmatpush.bf16.msra.mxu0 %v3140
        %3243 = vmatpush.bf16.msra.mxu0 %v3136
        %3244 = vmatmul.bf16.gmra.mxu0 %v2992
        %v3245 = vpop.f32.mrf.mxu0
        %v3246 = vadd.f32 %v3032, %v3245
        %v3247 = vpop.f32.mrf.mxu0
        %3248 = vdwg.mxu0
        %v3249 = vmax.f32 %v3207, 0.0
        %v3250 = vmax.f32 %v3220, 0.0
        %v3251 = vmax.f32 %v3233, 0.0
        %v3252 = vmax.f32 %v3246, 0.0
        %v3253 = vpack.c.bf16 %v3249, %v3249
        %v3254 = vpack.c.bf16 %v3250, %v3250
        %v3255 = vpack.c.bf16 %v3251, %v3251
        %v3256 = vpack.c.bf16 %v3252, %v3252
        %s3257 = scalar_lea.vmem [#allocation6], 256
        %v3258 = vld [vmem:[%s3257] sm:$0xf]
        %v3259 = vld [vmem:[%s3257 + $0x4] sm:$0xf]
        %v3260 = vld [vmem:[%s3257 + $0x8] sm:$0xf]
        %v3261 = vld [vmem:[%s3257 + $0xc] sm:$0xf]
        %v3262 = vld [vmem:[%s3257 + $0x10] sm:$0xf]
        %v3263 = vld [vmem:[%s3257 + $0x14] sm:$0xf]
        %v3264 = vld [vmem:[%s3257 + $0x18] sm:$0xf]
        %v3265 = vld [vmem:[%s3257 + $0x1c] sm:$0xf]
        %v3266 = vld [vmem:[%s3257 + $0x20] sm:$0xf]
        %v3267 = vld [vmem:[%s3257 + $0x24] sm:$0xf]
        %v3268 = vld [vmem:[%s3257 + $0x28] sm:$0xf]
        %v3269 = vld [vmem:[%s3257 + $0x2c] sm:$0xf]
        %v3270 = vld [vmem:[%s3257 + $0x30] sm:$0xf]
        %v3271 = vld [vmem:[%s3257 + $0x34] sm:$0xf]
        %v3272 = vld [vmem:[%s3257 + $0x38] sm:$0xf]
        %v3273 = vld [vmem:[%s3257 + $0x3c] sm:$0xf]
        %v3274 = vld [vmem:[%s3257 + $0x40] sm:$0xf]
        %v3275 = vld [vmem:[%s3257 + $0x44] sm:$0xf]
        %v3276 = vld [vmem:[%s3257 + $0x48] sm:$0xf]
        %v3277 = vld [vmem:[%s3257 + $0x4c] sm:$0xf]
        %v3278 = vld [vmem:[%s3257 + $0x50] sm:$0xf]
        %v3279 = vld [vmem:[%s3257 + $0x54] sm:$0xf]
        %v3280 = vld [vmem:[%s3257 + $0x58] sm:$0xf]
        %v3281 = vld [vmem:[%s3257 + $0x5c] sm:$0xf]
        %v3282 = vld [vmem:[%s3257 + $0x60] sm:$0xf]
        %v3283 = vld [vmem:[%s3257 + $0x64] sm:$0xf]
        %v3284 = vld [vmem:[%s3257 + $0x68] sm:$0xf]
        %v3285 = vld [vmem:[%s3257 + $0x6c] sm:$0xf]
        %v3286 = vld [vmem:[%s3257 + $0x70] sm:$0xf]
        %v3287 = vld [vmem:[%s3257 + $0x74] sm:$0xf]
        %v3288 = vld [vmem:[%s3257 + $0x78] sm:$0xf]
        %v3289 = vld [vmem:[%s3257 + $0x7c] sm:$0xf]
        %v3290 = vld [vmem:[%s3257 + $0x80] sm:$0xf]
        %v3291 = vld [vmem:[%s3257 + $0x84] sm:$0xf]
        %v3292 = vld [vmem:[%s3257 + $0x88] sm:$0xf]
        %v3293 = vld [vmem:[%s3257 + $0x8c] sm:$0xf]
        %v3294 = vld [vmem:[%s3257 + $0x90] sm:$0xf]
        %v3295 = vld [vmem:[%s3257 + $0x94] sm:$0xf]
        %v3296 = vld [vmem:[%s3257 + $0x98] sm:$0xf]
        %v3297 = vld [vmem:[%s3257 + $0x9c] sm:$0xf]
        %v3298 = vld [vmem:[%s3257 + $0xa0] sm:$0xf]
        %v3299 = vld [vmem:[%s3257 + $0xa4] sm:$0xf]
        %v3300 = vld [vmem:[%s3257 + $0xa8] sm:$0xf]
        %v3301 = vld [vmem:[%s3257 + $0xac] sm:$0xf]
        %v3302 = vld [vmem:[%s3257 + $0xb0] sm:$0xf]
        %v3303 = vld [vmem:[%s3257 + $0xb4] sm:$0xf]
        %v3304 = vld [vmem:[%s3257 + $0xb8] sm:$0xf]
        %v3305 = vld [vmem:[%s3257 + $0xbc] sm:$0xf]
        %v3306 = vld [vmem:[%s3257 + $0xc0] sm:$0xf]
        %v3307 = vld [vmem:[%s3257 + $0xc4] sm:$0xf]
        %v3308 = vld [vmem:[%s3257 + $0xc8] sm:$0xf]
        %v3309 = vld [vmem:[%s3257 + $0xcc] sm:$0xf]
        %v3310 = vld [vmem:[%s3257 + $0xd0] sm:$0xf]
        %v3311 = vld [vmem:[%s3257 + $0xd4] sm:$0xf]
        %v3312 = vld [vmem:[%s3257 + $0xd8] sm:$0xf]
        %v3313 = vld [vmem:[%s3257 + $0xdc] sm:$0xf]
        %v3314 = vld [vmem:[%s3257 + $0xe0] sm:$0xf]
        %v3315 = vld [vmem:[%s3257 + $0xe4] sm:$0xf]
        %v3316 = vld [vmem:[%s3257 + $0xe8] sm:$0xf]
        %v3317 = vld [vmem:[%s3257 + $0xec] sm:$0xf]
        %v3318 = vld [vmem:[%s3257 + $0xf0] sm:$0xf]
        %v3319 = vld [vmem:[%s3257 + $0xf4] sm:$0xf]
        %v3320 = vld [vmem:[%s3257 + $0xf8] sm:$0xf]
        %v3321 = vld [vmem:[%s3257 + $0xfc] sm:$0xf]
        %s3322 = scalar_lea.vmem %s10, 1
        %v3323 = vld [vmem:[%s3322] sm:$0x1]
        %v3325 = vperm.slane %v3323, 0
        %v3391 = vunpack.c.l.b16 %v3258
        %v3392 = vunpack.c.l.b16 %v3259
        %v3393 = vunpack.c.l.b16 %v3260
        %v3394 = vunpack.c.l.b16 %v3261
        %v3395 = vunpack.c.l.b16 %v3262
        %v3396 = vunpack.c.l.b16 %v3263
        %v3397 = vunpack.c.l.b16 %v3264
        %v3398 = vunpack.c.l.b16 %v3265
        %v3399 = vunpack.c.l.b16 %v3266
        %v3400 = vunpack.c.l.b16 %v3267
        %v3401 = vunpack.c.l.b16 %v3268
        %v3402 = vunpack.c.l.b16 %v3269
        %v3403 = vunpack.c.l.b16 %v3270
        %v3404 = vunpack.c.l.b16 %v3271
        %v3405 = vunpack.c.l.b16 %v3272
        %v3406 = vunpack.c.l.b16 %v3273
        %v3407 = vunpack.c.l.b16 %v3274
        %v3408 = vunpack.c.l.b16 %v3275
        %v3409 = vunpack.c.l.b16 %v3276
        %v3410 = vunpack.c.l.b16 %v3277
        %v3411 = vunpack.c.l.b16 %v3278
        %v3412 = vunpack.c.l.b16 %v3279
        %v3413 = vunpack.c.l.b16 %v3280
        %v3414 = vunpack.c.l.b16 %v3281
        %v3415 = vunpack.c.l.b16 %v3282
        %v3416 = vunpack.c.l.b16 %v3283
        %v3417 = vunpack.c.l.b16 %v3284
        %v3418 = vunpack.c.l.b16 %v3285
        %v3419 = vunpack.c.l.b16 %v3286
        %v3420 = vunpack.c.l.b16 %v3287
        %v3421 = vunpack.c.l.b16 %v3288
        %v3422 = vunpack.c.l.b16 %v3289
        %v3423 = vunpack.c.l.b16 %v3290
        %v3424 = vunpack.c.l.b16 %v3291
        %v3425 = vunpack.c.l.b16 %v3292
        %v3426 = vunpack.c.l.b16 %v3293
        %v3427 = vunpack.c.l.b16 %v3294
        %v3428 = vunpack.c.l.b16 %v3295
        %v3429 = vunpack.c.l.b16 %v3296
        %v3430 = vunpack.c.l.b16 %v3297
        %v3431 = vunpack.c.l.b16 %v3298
        %v3432 = vunpack.c.l.b16 %v3299
        %v3433 = vunpack.c.l.b16 %v3300
        %v3434 = vunpack.c.l.b16 %v3301
        %v3435 = vunpack.c.l.b16 %v3302
        %v3436 = vunpack.c.l.b16 %v3303
        %v3437 = vunpack.c.l.b16 %v3304
        %v3438 = vunpack.c.l.b16 %v3305
        %v3439 = vunpack.c.l.b16 %v3306
        %v3440 = vunpack.c.l.b16 %v3307
        %v3441 = vunpack.c.l.b16 %v3308
        %v3442 = vunpack.c.l.b16 %v3309
        %v3443 = vunpack.c.l.b16 %v3310
        %v3444 = vunpack.c.l.b16 %v3311
        %v3445 = vunpack.c.l.b16 %v3312
        %v3446 = vunpack.c.l.b16 %v3313
        %v3447 = vunpack.c.l.b16 %v3314
        %v3448 = vunpack.c.l.b16 %v3315
        %v3449 = vunpack.c.l.b16 %v3316
        %v3450 = vunpack.c.l.b16 %v3317
        %v3451 = vunpack.c.l.b16 %v3318
        %v3452 = vunpack.c.l.b16 %v3319
        %v3453 = vunpack.c.l.b16 %v3320
        %v3454 = vunpack.c.l.b16 %v3321
        %v3455 = vpack.c.b16 %v3392, %v3391
        %v3456 = vpack.c.b16 %v3394, %v3393
        %v3457 = vpack.c.b16 %v3396, %v3395
        %v3458 = vpack.c.b16 %v3398, %v3397
        %v3459 = vpack.c.b16 %v3400, %v3399
        %v3460 = vpack.c.b16 %v3402, %v3401
        %v3461 = vpack.c.b16 %v3404, %v3403
        %v3462 = vpack.c.b16 %v3406, %v3405
        %v3463 = vpack.c.b16 %v3408, %v3407
        %v3464 = vpack.c.b16 %v3410, %v3409
        %v3465 = vpack.c.b16 %v3412, %v3411
        %v3466 = vpack.c.b16 %v3414, %v3413
        %v3467 = vpack.c.b16 %v3416, %v3415
        %v3468 = vpack.c.b16 %v3418, %v3417
        %v3469 = vpack.c.b16 %v3420, %v3419
        %v3470 = vpack.c.b16 %v3422, %v3421
        %v3471 = vpack.c.b16 %v3424, %v3423
        %v3472 = vpack.c.b16 %v3426, %v3425
        %v3473 = vpack.c.b16 %v3428, %v3427
        %v3474 = vpack.c.b16 %v3430, %v3429
        %v3475 = vpack.c.b16 %v3432, %v3431
        %v3476 = vpack.c.b16 %v3434, %v3433
        %v3477 = vpack.c.b16 %v3436, %v3435
        %v3478 = vpack.c.b16 %v3438, %v3437
        %v3479 = vpack.c.b16 %v3440, %v3439
        %v3480 = vpack.c.b16 %v3442, %v3441
        %v3481 = vpack.c.b16 %v3444, %v3443
        %v3482 = vpack.c.b16 %v3446, %v3445
        %v3483 = vpack.c.b16 %v3448, %v3447
        %v3484 = vpack.c.b16 %v3450, %v3449
        %v3485 = vpack.c.b16 %v3452, %v3451
        %v3486 = vpack.c.b16 %v3454, %v3453
        %3519 = vmatpush.bf16.msra.mxu0 %v3462
        %3520 = vmatpush.bf16.msra.mxu0 %v3461
        %3521 = vmatpush.bf16.msra.mxu0 %v3460
        %3522 = vmatpush.bf16.msra.mxu0 %v3459
        %3523 = vmatpush.bf16.msra.mxu0 %v3458
        %3524 = vmatpush.bf16.msra.mxu0 %v3457
        %3525 = vmatpush.bf16.msra.mxu0 %v3456
        %3526 = vmatpush.bf16.msra.mxu0 %v3455
        %3527 = vmatmul.bf16.gmra.mxu0 %v3253
        %v3528 = vpop.f32.mrf.mxu0
        %v3529 = vadd.f32 %v3325, %v3528
        %v3530 = vpop.f32.mrf.mxu0
        %3531 = vdwg.mxu0
        %3532 = vmatpush.bf16.msra.mxu0 %v3470
        %3533 = vmatpush.bf16.msra.mxu0 %v3469
        %3534 = vmatpush.bf16.msra.mxu0 %v3468
        %3535 = vmatpush.bf16.msra.mxu0 %v3467
        %3536 = vmatpush.bf16.msra.mxu0 %v3466
        %3537 = vmatpush.bf16.msra.mxu0 %v3465
        %3538 = vmatpush.bf16.msra.mxu0 %v3464
        %3539 = vmatpush.bf16.msra.mxu0 %v3463
        %3540 = vmatmul.bf16.gmra.mxu0 %v3254
        %v3541 = vpop.f32.mrf.mxu0
        %v3542 = vadd.f32 %v3529, %v3541
        %v3543 = vpop.f32.mrf.mxu0
        %3544 = vdwg.mxu0
        %3545 = vmatpush.bf16.msra.mxu0 %v3478
        %3546 = vmatpush.bf16.msra.mxu0 %v3477
        %3547 = vmatpush.bf16.msra.mxu0 %v3476
        %3548 = vmatpush.bf16.msra.mxu0 %v3475
        %3549 = vmatpush.bf16.msra.mxu0 %v3474
        %3550 = vmatpush.bf16.msra.mxu0 %v3473
        %3551 = vmatpush.bf16.msra.mxu0 %v3472
        %3552 = vmatpush.bf16.msra.mxu0 %v3471
        %3553 = vmatmul.bf16.gmra.mxu0 %v3255
        %v3554 = vpop.f32.mrf.mxu0
        %v3555 = vadd.f32 %v3542, %v3554
        %v3556 = vpop.f32.mrf.mxu0
        %3557 = vdwg.mxu0
        %3558 = vmatpush.bf16.msra.mxu0 %v3486
        %3559 = vmatpush.bf16.msra.mxu0 %v3485
        %3560 = vmatpush.bf16.msra.mxu0 %v3484
        %3561 = vmatpush.bf16.msra.mxu0 %v3483
        %3562 = vmatpush.bf16.msra.mxu0 %v3482
        %3563 = vmatpush.bf16.msra.mxu0 %v3481
        %3564 = vmatpush.bf16.msra.mxu0 %v3480
        %3565 = vmatpush.bf16.msra.mxu0 %v3479
        %3566 = vmatmul.bf16.gmra.mxu0 %v3256
        %v3567 = vpop.f32.mrf.mxu0
        %v3568 = vadd.f32 %v3555, %v3567
        %v3569 = vpop.f32.mrf.mxu0
        %3570 = vdwg.mxu0
        %v3571 = vadd.f32 %v3568, %v2991
        %s3572 = scalar_lea.vmem %s11, 1
        %v3573 = vld [vmem:[%s3572] sm:$0x1]
        %s3574 = scalar_lea.vmem %s12, 1
        %v3575 = vld [vmem:[%s3574] sm:$0x1]
        %3576 = vadd.xlane.f32.xlu0 %v3571
        %v3577 = vpop.xlane.xlu0 %3576
        %v3578 = vmul.f32 %v3571, %v3571
        %3579 = vadd.xlane.f32.xlu0 %v3578
        %v3580 = vpop.xlane.xlu0 %3579
        %v3581 = vmul.f32 %v3577, 0.0078125
        %v3582 = vmul.f32 %v3580, 0.0078125
        %v3583 = vmul.f32 %v3581, %v3581
        %v3584 = vsub.f32 %v3582, %v3583
        %v3585 = vsub.f32 %v3571, %v3581
        %v3586 = vadd.f32 %v3584, 1e-05
        %v3587 = vrsqrt.pop %v3586
        %v3588 = vmul.f32 %v3587, %v3586
        %v3589 = vmul.f32 %v3588, %v3587
        %v3590 = vmul.f32 0.5, %v3589
        %v3591 = vsub.f32 1.5, %v3590
        %v3592 = vmul.f32 %v3587, %v3591
        %vm3593 = vweird.f32 %v3586
        %vm3594 = vweird.f32 %v3587
        %vm3595 = vmor %vm3593, %vm3594
        %v3596 = vsel %vm3595, %v3587, %v3592
        %v3597 = vmul.f32 %v3585, %v3596
        %v3599 = vperm.slane %v3573, 0
        %v3601 = vmul.f32 %v3597, %v3599
        %v3603 = vperm.slane %v3575, 0
        %v3605 = vadd.f32 %v3601, %v3603
        %v3606 = vpack.c.bf16 %v3605, %v3605
        %v3607 = vld [vmem:[#allocation7] sm:$0xff]
        %v3608 = vld [vmem:[#allocation7 + $0x8] sm:$0xff]
        %v3609 = vld [vmem:[#allocation7 + $0x10] sm:$0xff]
        %v3610 = vld [vmem:[#allocation7 + $0x18] sm:$0xff]
        %v3611 = vld [vmem:[#allocation7 + $0x20] sm:$0xff]
        %v3612 = vld [vmem:[#allocation7 + $0x28] sm:$0xff]
        %v3613 = vld [vmem:[#allocation7 + $0x30] sm:$0xff]
        %v3614 = vld [vmem:[#allocation7 + $0x38] sm:$0xff]
        %v3615 = vld [vmem:[#allocation7 + $0x40] sm:$0xff]
        %v3616 = vld [vmem:[#allocation7 + $0x48] sm:$0xff]
        %v3617 = vld [vmem:[#allocation7 + $0x50] sm:$0xff]
        %v3618 = vld [vmem:[#allocation7 + $0x58] sm:$0xff]
        %v3619 = vld [vmem:[#allocation7 + $0x60] sm:$0xff]
        %v3620 = vld [vmem:[#allocation7 + $0x68] sm:$0xff]
        %v3621 = vld [vmem:[#allocation7 + $0x70] sm:$0xff]
        %v3622 = vld [vmem:[#allocation7 + $0x78] sm:$0xff]
        %v3623 = vld [vmem:[#allocation7 + $0x80] sm:$0xff]
        %v3624 = vld [vmem:[#allocation7 + $0x88] sm:$0xff]
        %v3625 = vld [vmem:[#allocation7 + $0x90] sm:$0xff]
        %v3626 = vld [vmem:[#allocation7 + $0x98] sm:$0xff]
        %v3627 = vld [vmem:[#allocation7 + $0xa0] sm:$0xff]
        %v3628 = vld [vmem:[#allocation7 + $0xa8] sm:$0xff]
        %v3629 = vld [vmem:[#allocation7 + $0xb0] sm:$0xff]
        %v3630 = vld [vmem:[#allocation7 + $0xb8] sm:$0xff]
        %v3631 = vld [vmem:[#allocation7 + $0xc0] sm:$0xff]
        %v3632 = vld [vmem:[#allocation7 + $0xc8] sm:$0xff]
        %v3633 = vld [vmem:[#allocation7 + $0xd0] sm:$0xff]
        %v3634 = vld [vmem:[#allocation7 + $0xd8] sm:$0xff]
        %v3635 = vld [vmem:[#allocation7 + $0xe0] sm:$0xff]
        %v3636 = vld [vmem:[#allocation7 + $0xe8] sm:$0xff]
        %v3637 = vld [vmem:[#allocation7 + $0xf0] sm:$0xff]
        %v3638 = vld [vmem:[#allocation7 + $0xf8] sm:$0xff]
        %v3639 = vld [vmem:[#allocation7 + $0x100] sm:$0xff]
        %v3640 = vld [vmem:[#allocation7 + $0x108] sm:$0xff]
        %v3641 = vld [vmem:[#allocation7 + $0x110] sm:$0xff]
        %v3642 = vld [vmem:[#allocation7 + $0x118] sm:$0xff]
        %v3643 = vld [vmem:[#allocation7 + $0x120] sm:$0xff]
        %v3644 = vld [vmem:[#allocation7 + $0x128] sm:$0xff]
        %v3645 = vld [vmem:[#allocation7 + $0x130] sm:$0xff]
        %v3646 = vld [vmem:[#allocation7 + $0x138] sm:$0xff]
        %v3647 = vld [vmem:[#allocation7 + $0x140] sm:$0xff]
        %v3648 = vld [vmem:[#allocation7 + $0x148] sm:$0xff]
        %v3649 = vld [vmem:[#allocation7 + $0x150] sm:$0xff]
        %v3650 = vld [vmem:[#allocation7 + $0x158] sm:$0xff]
        %v3651 = vld [vmem:[#allocation7 + $0x160] sm:$0xff]
        %v3652 = vld [vmem:[#allocation7 + $0x168] sm:$0xff]
        %v3653 = vld [vmem:[#allocation7 + $0x170] sm:$0xff]
        %v3654 = vld [vmem:[#allocation7 + $0x178] sm:$0xff]
        %v3655 = vld [vmem:[#allocation7 + $0x180] sm:$0xff]
        %v3656 = vld [vmem:[#allocation7 + $0x188] sm:$0xff]
        %v3657 = vld [vmem:[#allocation7 + $0x190] sm:$0xff]
        %v3658 = vld [vmem:[#allocation7 + $0x198] sm:$0xff]
        %v3659 = vld [vmem:[#allocation7 + $0x1a0] sm:$0xff]
        %v3660 = vld [vmem:[#allocation7 + $0x1a8] sm:$0xff]
        %v3661 = vld [vmem:[#allocation7 + $0x1b0] sm:$0xff]
        %v3662 = vld [vmem:[#allocation7 + $0x1b8] sm:$0xff]
        %v3663 = vld [vmem:[#allocation7 + $0x1c0] sm:$0xff]
        %v3664 = vld [vmem:[#allocation7 + $0x1c8] sm:$0xff]
        %v3665 = vld [vmem:[#allocation7 + $0x1d0] sm:$0xff]
        %v3666 = vld [vmem:[#allocation7 + $0x1d8] sm:$0xff]
        %v3667 = vld [vmem:[#allocation7 + $0x1e0] sm:$0xff]
        %v3668 = vld [vmem:[#allocation7 + $0x1e8] sm:$0xff]
        %v3669 = vld [vmem:[#allocation7 + $0x1f0] sm:$0xff]
        %v3670 = vld [vmem:[#allocation7 + $0x1f8] sm:$0xff]
        %v3671 = vld [vmem:[#allocation7 + $0x200] sm:$0xff]
        %v3672 = vld [vmem:[#allocation7 + $0x208] sm:$0xff]
        %v3673 = vld [vmem:[#allocation7 + $0x210] sm:$0xff]
        %v3674 = vld [vmem:[#allocation7 + $0x218] sm:$0xff]
        %v3675 = vld [vmem:[#allocation7 + $0x220] sm:$0xff]
        %v3676 = vld [vmem:[#allocation7 + $0x228] sm:$0xff]
        %v3677 = vld [vmem:[#allocation7 + $0x230] sm:$0xff]
        %v3678 = vld [vmem:[#allocation7 + $0x238] sm:$0xff]
        %v3679 = vld [vmem:[#allocation7 + $0x240] sm:$0xff]
        %v3680 = vld [vmem:[#allocation7 + $0x248] sm:$0xff]
        %v3681 = vld [vmem:[#allocation7 + $0x250] sm:$0xff]
        %v3682 = vld [vmem:[#allocation7 + $0x258] sm:$0xff]
        %v3683 = vld [vmem:[#allocation7 + $0x260] sm:$0xff]
        %v3684 = vld [vmem:[#allocation7 + $0x268] sm:$0xff]
        %v3685 = vld [vmem:[#allocation7 + $0x270] sm:$0xff]
        %v3686 = vld [vmem:[#allocation7 + $0x278] sm:$0xff]
        %v3687 = vld [vmem:[#allocation7 + $0x280] sm:$0xff]
        %v3688 = vld [vmem:[#allocation7 + $0x288] sm:$0xff]
        %v3689 = vld [vmem:[#allocation7 + $0x290] sm:$0xff]
        %v3690 = vld [vmem:[#allocation7 + $0x298] sm:$0xff]
        %v3691 = vld [vmem:[#allocation7 + $0x2a0] sm:$0xff]
        %v3692 = vld [vmem:[#allocation7 + $0x2a8] sm:$0xff]
        %v3693 = vld [vmem:[#allocation7 + $0x2b0] sm:$0xff]
        %v3694 = vld [vmem:[#allocation7 + $0x2b8] sm:$0xff]
        %v3695 = vld [vmem:[#allocation7 + $0x2c0] sm:$0xff]
        %v3696 = vld [vmem:[#allocation7 + $0x2c8] sm:$0xff]
        %v3697 = vld [vmem:[#allocation7 + $0x2d0] sm:$0xff]
        %v3698 = vld [vmem:[#allocation7 + $0x2d8] sm:$0xff]
        %v3699 = vld [vmem:[#allocation7 + $0x2e0] sm:$0xff]
        %v3700 = vld [vmem:[#allocation7 + $0x2e8] sm:$0xff]
        %v3701 = vld [vmem:[#allocation7 + $0x2f0] sm:$0xff]
        %v3702 = vld [vmem:[#allocation7 + $0x2f8] sm:$0xff]
        %v3703 = vld [vmem:[#allocation7 + $0x300] sm:$0xff]
        %v3704 = vld [vmem:[#allocation7 + $0x308] sm:$0xff]
        %v3705 = vld [vmem:[#allocation7 + $0x310] sm:$0xff]
        %v3706 = vld [vmem:[#allocation7 + $0x318] sm:$0xff]
        %v3707 = vld [vmem:[#allocation7 + $0x320] sm:$0xff]
        %v3708 = vld [vmem:[#allocation7 + $0x328] sm:$0xff]
        %v3709 = vld [vmem:[#allocation7 + $0x330] sm:$0xff]
        %v3710 = vld [vmem:[#allocation7 + $0x338] sm:$0xff]
        %v3711 = vld [vmem:[#allocation7 + $0x340] sm:$0xff]
        %v3712 = vld [vmem:[#allocation7 + $0x348] sm:$0xff]
        %v3713 = vld [vmem:[#allocation7 + $0x350] sm:$0xff]
        %v3714 = vld [vmem:[#allocation7 + $0x358] sm:$0xff]
        %v3715 = vld [vmem:[#allocation7 + $0x360] sm:$0xff]
        %v3716 = vld [vmem:[#allocation7 + $0x368] sm:$0xff]
        %v3717 = vld [vmem:[#allocation7 + $0x370] sm:$0xff]
        %v3718 = vld [vmem:[#allocation7 + $0x378] sm:$0xff]
        %v3719 = vld [vmem:[#allocation7 + $0x380] sm:$0xff]
        %v3720 = vld [vmem:[#allocation7 + $0x388] sm:$0xff]
        %v3721 = vld [vmem:[#allocation7 + $0x390] sm:$0xff]
        %v3722 = vld [vmem:[#allocation7 + $0x398] sm:$0xff]
        %v3723 = vld [vmem:[#allocation7 + $0x3a0] sm:$0xff]
        %v3724 = vld [vmem:[#allocation7 + $0x3a8] sm:$0xff]
        %v3725 = vld [vmem:[#allocation7 + $0x3b0] sm:$0xff]
        %v3726 = vld [vmem:[#allocation7 + $0x3b8] sm:$0xff]
        %v3727 = vld [vmem:[#allocation7 + $0x3c0] sm:$0xff]
        %v3728 = vld [vmem:[#allocation7 + $0x3c8] sm:$0xff]
        %v3729 = vld [vmem:[#allocation7 + $0x3d0] sm:$0xff]
        %v3730 = vld [vmem:[#allocation7 + $0x3d8] sm:$0xff]
        %v3731 = vld [vmem:[#allocation7 + $0x3e0] sm:$0xff]
        %v3732 = vld [vmem:[#allocation7 + $0x3e8] sm:$0xff]
        %v3733 = vld [vmem:[#allocation7 + $0x3f0] sm:$0xff]
        %v3734 = vld [vmem:[#allocation7 + $0x3f8] sm:$0xff]
        %v3735 = vld [vmem:[%s14] sm:$0xff]
        %v3736 = vld [vmem:[%s14 + $0x8] sm:$0xff]
        %v3739 = vperm.slane %v3735, 0
        %v3740 = vperm.slane %v3735, 1
        %v3741 = vperm.slane %v3735, 2
        %v3742 = vperm.slane %v3735, 3
        %v3743 = vperm.slane %v3735, 4
        %v3744 = vperm.slane %v3735, 5
        %v3745 = vperm.slane %v3735, 6
        %v3746 = vperm.slane %v3735, 7
        %v3747 = vperm.slane %v3736, 0
        %v3748 = vperm.slane %v3736, 1
        %v3749 = vperm.slane %v3736, 2
        %v3750 = vperm.slane %v3736, 3
        %v3751 = vperm.slane %v3736, 4
        %v3752 = vperm.slane %v3736, 5
        %v3753 = vperm.slane %v3736, 6
        %v3754 = vperm.slane %v3736, 7
        %v3899 = vunpack.c.l.b16 %v3607
        %v3900 = vunpack.c.h.b16 %v3607
        %v3901 = vunpack.c.l.b16 %v3608
        %v3902 = vunpack.c.h.b16 %v3608
        %v3903 = vunpack.c.l.b16 %v3609
        %v3904 = vunpack.c.h.b16 %v3609
        %v3905 = vunpack.c.l.b16 %v3610
        %v3906 = vunpack.c.h.b16 %v3610
        %v3907 = vunpack.c.l.b16 %v3611
        %v3908 = vunpack.c.h.b16 %v3611
        %v3909 = vunpack.c.l.b16 %v3612
        %v3910 = vunpack.c.h.b16 %v3612
        %v3911 = vunpack.c.l.b16 %v3613
        %v3912 = vunpack.c.h.b16 %v3613
        %v3913 = vunpack.c.l.b16 %v3614
        %v3914 = vunpack.c.h.b16 %v3614
        %v3915 = vunpack.c.l.b16 %v3615
        %v3916 = vunpack.c.h.b16 %v3615
        %v3917 = vunpack.c.l.b16 %v3616
        %v3918 = vunpack.c.h.b16 %v3616
        %v3919 = vunpack.c.l.b16 %v3617
        %v3920 = vunpack.c.h.b16 %v3617
        %v3921 = vunpack.c.l.b16 %v3618
        %v3922 = vunpack.c.h.b16 %v3618
        %v3923 = vunpack.c.l.b16 %v3619
        %v3924 = vunpack.c.h.b16 %v3619
        %v3925 = vunpack.c.l.b16 %v3620
        %v3926 = vunpack.c.h.b16 %v3620
        %v3927 = vunpack.c.l.b16 %v3621
        %v3928 = vunpack.c.h.b16 %v3621
        %v3929 = vunpack.c.l.b16 %v3622
        %v3930 = vunpack.c.h.b16 %v3622
        %v3931 = vunpack.c.l.b16 %v3623
        %v3932 = vunpack.c.h.b16 %v3623
        %v3933 = vunpack.c.l.b16 %v3624
        %v3934 = vunpack.c.h.b16 %v3624
        %v3935 = vunpack.c.l.b16 %v3625
        %v3936 = vunpack.c.h.b16 %v3625
        %v3937 = vunpack.c.l.b16 %v3626
        %v3938 = vunpack.c.h.b16 %v3626
        %v3939 = vunpack.c.l.b16 %v3627
        %v3940 = vunpack.c.h.b16 %v3627
        %v3941 = vunpack.c.l.b16 %v3628
        %v3942 = vunpack.c.h.b16 %v3628
        %v3943 = vunpack.c.l.b16 %v3629
        %v3944 = vunpack.c.h.b16 %v3629
        %v3945 = vunpack.c.l.b16 %v3630
        %v3946 = vunpack.c.h.b16 %v3630
        %v3947 = vunpack.c.l.b16 %v3631
        %v3948 = vunpack.c.h.b16 %v3631
        %v3949 = vunpack.c.l.b16 %v3632
        %v3950 = vunpack.c.h.b16 %v3632
        %v3951 = vunpack.c.l.b16 %v3633
        %v3952 = vunpack.c.h.b16 %v3633
        %v3953 = vunpack.c.l.b16 %v3634
        %v3954 = vunpack.c.h.b16 %v3634
        %v3955 = vunpack.c.l.b16 %v3635
        %v3956 = vunpack.c.h.b16 %v3635
        %v3957 = vunpack.c.l.b16 %v3636
        %v3958 = vunpack.c.h.b16 %v3636
        %v3959 = vunpack.c.l.b16 %v3637
        %v3960 = vunpack.c.h.b16 %v3637
        %v3961 = vunpack.c.l.b16 %v3638
        %v3962 = vunpack.c.h.b16 %v3638
        %v3963 = vunpack.c.l.b16 %v3639
        %v3964 = vunpack.c.h.b16 %v3639
        %v3965 = vunpack.c.l.b16 %v3640
        %v3966 = vunpack.c.h.b16 %v3640
        %v3967 = vunpack.c.l.b16 %v3641
        %v3968 = vunpack.c.h.b16 %v3641
        %v3969 = vunpack.c.l.b16 %v3642
        %v3970 = vunpack.c.h.b16 %v3642
        %v3971 = vunpack.c.l.b16 %v3643
        %v3972 = vunpack.c.h.b16 %v3643
        %v3973 = vunpack.c.l.b16 %v3644
        %v3974 = vunpack.c.h.b16 %v3644
        %v3975 = vunpack.c.l.b16 %v3645
        %v3976 = vunpack.c.h.b16 %v3645
        %v3977 = vunpack.c.l.b16 %v3646
        %v3978 = vunpack.c.h.b16 %v3646
        %v3979 = vunpack.c.l.b16 %v3647
        %v3980 = vunpack.c.h.b16 %v3647
        %v3981 = vunpack.c.l.b16 %v3648
        %v3982 = vunpack.c.h.b16 %v3648
        %v3983 = vunpack.c.l.b16 %v3649
        %v3984 = vunpack.c.h.b16 %v3649
        %v3985 = vunpack.c.l.b16 %v3650
        %v3986 = vunpack.c.h.b16 %v3650
        %v3987 = vunpack.c.l.b16 %v3651
        %v3988 = vunpack.c.h.b16 %v3651
        %v3989 = vunpack.c.l.b16 %v3652
        %v3990 = vunpack.c.h.b16 %v3652
        %v3991 = vunpack.c.l.b16 %v3653
        %v3992 = vunpack.c.h.b16 %v3653
        %v3993 = vunpack.c.l.b16 %v3654
        %v3994 = vunpack.c.h.b16 %v3654
        %v3995 = vunpack.c.l.b16 %v3655
        %v3996 = vunpack.c.h.b16 %v3655
        %v3997 = vunpack.c.l.b16 %v3656
        %v3998 = vunpack.c.h.b16 %v3656
        %v3999 = vunpack.c.l.b16 %v3657
        %v4000 = vunpack.c.h.b16 %v3657
        %v4001 = vunpack.c.l.b16 %v3658
        %v4002 = vunpack.c.h.b16 %v3658
        %v4003 = vunpack.c.l.b16 %v3659
        %v4004 = vunpack.c.h.b16 %v3659
        %v4005 = vunpack.c.l.b16 %v3660
        %v4006 = vunpack.c.h.b16 %v3660
        %v4007 = vunpack.c.l.b16 %v3661
        %v4008 = vunpack.c.h.b16 %v3661
        %v4009 = vunpack.c.l.b16 %v3662
        %v4010 = vunpack.c.h.b16 %v3662
        %v4011 = vunpack.c.l.b16 %v3663
        %v4012 = vunpack.c.h.b16 %v3663
        %v4013 = vunpack.c.l.b16 %v3664
        %v4014 = vunpack.c.h.b16 %v3664
        %v4015 = vunpack.c.l.b16 %v3665
        %v4016 = vunpack.c.h.b16 %v3665
        %v4017 = vunpack.c.l.b16 %v3666
        %v4018 = vunpack.c.h.b16 %v3666
        %v4019 = vunpack.c.l.b16 %v3667
        %v4020 = vunpack.c.h.b16 %v3667
        %v4021 = vunpack.c.l.b16 %v3668
        %v4022 = vunpack.c.h.b16 %v3668
        %v4023 = vunpack.c.l.b16 %v3669
        %v4024 = vunpack.c.h.b16 %v3669
        %v4025 = vunpack.c.l.b16 %v3670
        %v4026 = vunpack.c.h.b16 %v3670
        %v4027 = vunpack.c.l.b16 %v3671
        %v4028 = vunpack.c.h.b16 %v3671
        %v4029 = vunpack.c.l.b16 %v3672
        %v4030 = vunpack.c.h.b16 %v3672
        %v4031 = vunpack.c.l.b16 %v3673
        %v4032 = vunpack.c.h.b16 %v3673
        %v4033 = vunpack.c.l.b16 %v3674
        %v4034 = vunpack.c.h.b16 %v3674
        %v4035 = vunpack.c.l.b16 %v3675
        %v4036 = vunpack.c.h.b16 %v3675
        %v4037 = vunpack.c.l.b16 %v3676
        %v4038 = vunpack.c.h.b16 %v3676
        %v4039 = vunpack.c.l.b16 %v3677
        %v4040 = vunpack.c.h.b16 %v3677
        %v4041 = vunpack.c.l.b16 %v3678
        %v4042 = vunpack.c.h.b16 %v3678
        %v4043 = vunpack.c.l.b16 %v3679
        %v4044 = vunpack.c.h.b16 %v3679
        %v4045 = vunpack.c.l.b16 %v3680
        %v4046 = vunpack.c.h.b16 %v3680
        %v4047 = vunpack.c.l.b16 %v3681
        %v4048 = vunpack.c.h.b16 %v3681
        %v4049 = vunpack.c.l.b16 %v3682
        %v4050 = vunpack.c.h.b16 %v3682
        %v4051 = vunpack.c.l.b16 %v3683
        %v4052 = vunpack.c.h.b16 %v3683
        %v4053 = vunpack.c.l.b16 %v3684
        %v4054 = vunpack.c.h.b16 %v3684
        %v4055 = vunpack.c.l.b16 %v3685
        %v4056 = vunpack.c.h.b16 %v3685
        %v4057 = vunpack.c.l.b16 %v3686
        %v4058 = vunpack.c.h.b16 %v3686
        %v4059 = vunpack.c.l.b16 %v3687
        %v4060 = vunpack.c.h.b16 %v3687
        %v4061 = vunpack.c.l.b16 %v3688
        %v4062 = vunpack.c.h.b16 %v3688
        %v4063 = vunpack.c.l.b16 %v3689
        %v4064 = vunpack.c.h.b16 %v3689
        %v4065 = vunpack.c.l.b16 %v3690
        %v4066 = vunpack.c.h.b16 %v3690
        %v4067 = vunpack.c.l.b16 %v3691
        %v4068 = vunpack.c.h.b16 %v3691
        %v4069 = vunpack.c.l.b16 %v3692
        %v4070 = vunpack.c.h.b16 %v3692
        %v4071 = vunpack.c.l.b16 %v3693
        %v4072 = vunpack.c.h.b16 %v3693
        %v4073 = vunpack.c.l.b16 %v3694
        %v4074 = vunpack.c.h.b16 %v3694
        %v4075 = vunpack.c.l.b16 %v3695
        %v4076 = vunpack.c.h.b16 %v3695
        %v4077 = vunpack.c.l.b16 %v3696
        %v4078 = vunpack.c.h.b16 %v3696
        %v4079 = vunpack.c.l.b16 %v3697
        %v4080 = vunpack.c.h.b16 %v3697
        %v4081 = vunpack.c.l.b16 %v3698
        %v4082 = vunpack.c.h.b16 %v3698
        %v4083 = vunpack.c.l.b16 %v3699
        %v4084 = vunpack.c.h.b16 %v3699
        %v4085 = vunpack.c.l.b16 %v3700
        %v4086 = vunpack.c.h.b16 %v3700
        %v4087 = vunpack.c.l.b16 %v3701
        %v4088 = vunpack.c.h.b16 %v3701
        %v4089 = vunpack.c.l.b16 %v3702
        %v4090 = vunpack.c.h.b16 %v3702
        %v4091 = vunpack.c.l.b16 %v3703
        %v4092 = vunpack.c.h.b16 %v3703
        %v4093 = vunpack.c.l.b16 %v3704
        %v4094 = vunpack.c.h.b16 %v3704
        %v4095 = vunpack.c.l.b16 %v3705
        %v4096 = vunpack.c.h.b16 %v3705
        %v4097 = vunpack.c.l.b16 %v3706
        %v4098 = vunpack.c.h.b16 %v3706
        %v4099 = vunpack.c.l.b16 %v3707
        %v4100 = vunpack.c.h.b16 %v3707
        %v4101 = vunpack.c.l.b16 %v3708
        %v4102 = vunpack.c.h.b16 %v3708
        %v4103 = vunpack.c.l.b16 %v3709
        %v4104 = vunpack.c.h.b16 %v3709
        %v4105 = vunpack.c.l.b16 %v3710
        %v4106 = vunpack.c.h.b16 %v3710
        %v4107 = vunpack.c.l.b16 %v3711
        %v4108 = vunpack.c.h.b16 %v3711
        %v4109 = vunpack.c.l.b16 %v3712
        %v4110 = vunpack.c.h.b16 %v3712
        %v4111 = vunpack.c.l.b16 %v3713
        %v4112 = vunpack.c.h.b16 %v3713
        %v4113 = vunpack.c.l.b16 %v3714
        %v4114 = vunpack.c.h.b16 %v3714
        %v4115 = vunpack.c.l.b16 %v3715
        %v4116 = vunpack.c.h.b16 %v3715
        %v4117 = vunpack.c.l.b16 %v3716
        %v4118 = vunpack.c.h.b16 %v3716
        %v4119 = vunpack.c.l.b16 %v3717
        %v4120 = vunpack.c.h.b16 %v3717
        %v4121 = vunpack.c.l.b16 %v3718
        %v4122 = vunpack.c.h.b16 %v3718
        %v4123 = vunpack.c.l.b16 %v3719
        %v4124 = vunpack.c.h.b16 %v3719
        %v4125 = vunpack.c.l.b16 %v3720
        %v4126 = vunpack.c.h.b16 %v3720
        %v4127 = vunpack.c.l.b16 %v3721
        %v4128 = vunpack.c.h.b16 %v3721
        %v4129 = vunpack.c.l.b16 %v3722
        %v4130 = vunpack.c.h.b16 %v3722
        %v4131 = vunpack.c.l.b16 %v3723
        %v4132 = vunpack.c.h.b16 %v3723
        %v4133 = vunpack.c.l.b16 %v3724
        %v4134 = vunpack.c.h.b16 %v3724
        %v4135 = vunpack.c.l.b16 %v3725
        %v4136 = vunpack.c.h.b16 %v3725
        %v4137 = vunpack.c.l.b16 %v3726
        %v4138 = vunpack.c.h.b16 %v3726
        %v4139 = vunpack.c.l.b16 %v3727
        %v4140 = vunpack.c.h.b16 %v3727
        %v4141 = vunpack.c.l.b16 %v3728
        %v4142 = vunpack.c.h.b16 %v3728
        %v4143 = vunpack.c.l.b16 %v3729
        %v4144 = vunpack.c.h.b16 %v3729
        %v4145 = vunpack.c.l.b16 %v3730
        %v4146 = vunpack.c.h.b16 %v3730
        %v4147 = vunpack.c.l.b16 %v3731
        %v4148 = vunpack.c.h.b16 %v3731
        %v4149 = vunpack.c.l.b16 %v3732
        %v4150 = vunpack.c.h.b16 %v3732
        %v4151 = vunpack.c.l.b16 %v3733
        %v4152 = vunpack.c.h.b16 %v3733
        %v4153 = vunpack.c.l.b16 %v3734
        %v4154 = vunpack.c.h.b16 %v3734
        %v4155 = vpack.c.b16 %v3915, %v3899
        %v4156 = vpack.c.b16 %v3916, %v3900
        %v4157 = vpack.c.b16 %v3917, %v3901
        %v4158 = vpack.c.b16 %v3918, %v3902
        %v4159 = vpack.c.b16 %v3919, %v3903
        %v4160 = vpack.c.b16 %v3920, %v3904
        %v4161 = vpack.c.b16 %v3921, %v3905
        %v4162 = vpack.c.b16 %v3922, %v3906
        %v4163 = vpack.c.b16 %v3923, %v3907
        %v4164 = vpack.c.b16 %v3924, %v3908
        %v4165 = vpack.c.b16 %v3925, %v3909
        %v4166 = vpack.c.b16 %v3926, %v3910
        %v4167 = vpack.c.b16 %v3927, %v3911
        %v4168 = vpack.c.b16 %v3928, %v3912
        %v4169 = vpack.c.b16 %v3929, %v3913
        %v4170 = vpack.c.b16 %v3930, %v3914
        %v4171 = vpack.c.b16 %v3947, %v3931
        %v4172 = vpack.c.b16 %v3948, %v3932
        %v4173 = vpack.c.b16 %v3949, %v3933
        %v4174 = vpack.c.b16 %v3950, %v3934
        %v4175 = vpack.c.b16 %v3951, %v3935
        %v4176 = vpack.c.b16 %v3952, %v3936
        %v4177 = vpack.c.b16 %v3953, %v3937
        %v4178 = vpack.c.b16 %v3954, %v3938
        %v4179 = vpack.c.b16 %v3955, %v3939
        %v4180 = vpack.c.b16 %v3956, %v3940
        %v4181 = vpack.c.b16 %v3957, %v3941
        %v4182 = vpack.c.b16 %v3958, %v3942
        %v4183 = vpack.c.b16 %v3959, %v3943
        %v4184 = vpack.c.b16 %v3960, %v3944
        %v4185 = vpack.c.b16 %v3961, %v3945
        %v4186 = vpack.c.b16 %v3962, %v3946
        %v4187 = vpack.c.b16 %v3979, %v3963
        %v4188 = vpack.c.b16 %v3980, %v3964
        %v4189 = vpack.c.b16 %v3981, %v3965
        %v4190 = vpack.c.b16 %v3982, %v3966
        %v4191 = vpack.c.b16 %v3983, %v3967
        %v4192 = vpack.c.b16 %v3984, %v3968
        %v4193 = vpack.c.b16 %v3985, %v3969
        %v4194 = vpack.c.b16 %v3986, %v3970
        %v4195 = vpack.c.b16 %v3987, %v3971
        %v4196 = vpack.c.b16 %v3988, %v3972
        %v4197 = vpack.c.b16 %v3989, %v3973
        %v4198 = vpack.c.b16 %v3990, %v3974
        %v4199 = vpack.c.b16 %v3991, %v3975
        %v4200 = vpack.c.b16 %v3992, %v3976
        %v4201 = vpack.c.b16 %v3993, %v3977
        %v4202 = vpack.c.b16 %v3994, %v3978
        %v4203 = vpack.c.b16 %v4011, %v3995
        %v4204 = vpack.c.b16 %v4012, %v3996
        %v4205 = vpack.c.b16 %v4013, %v3997
        %v4206 = vpack.c.b16 %v4014, %v3998
        %v4207 = vpack.c.b16 %v4015, %v3999
        %v4208 = vpack.c.b16 %v4016, %v4000
        %v4209 = vpack.c.b16 %v4017, %v4001
        %v4210 = vpack.c.b16 %v4018, %v4002
        %v4211 = vpack.c.b16 %v4019, %v4003
        %v4212 = vpack.c.b16 %v4020, %v4004
        %v4213 = vpack.c.b16 %v4021, %v4005
        %v4214 = vpack.c.b16 %v4022, %v4006
        %v4215 = vpack.c.b16 %v4023, %v4007
        %v4216 = vpack.c.b16 %v4024, %v4008
        %v4217 = vpack.c.b16 %v4025, %v4009
        %v4218 = vpack.c.b16 %v4026, %v4010
        %v4219 = vpack.c.b16 %v4043, %v4027
        %v4220 = vpack.c.b16 %v4044, %v4028
        %v4221 = vpack.c.b16 %v4045, %v4029
        %v4222 = vpack.c.b16 %v4046, %v4030
        %v4223 = vpack.c.b16 %v4047, %v4031
        %v4224 = vpack.c.b16 %v4048, %v4032
        %v4225 = vpack.c.b16 %v4049, %v4033
        %v4226 = vpack.c.b16 %v4050, %v4034
        %v4227 = vpack.c.b16 %v4051, %v4035
        %v4228 = vpack.c.b16 %v4052, %v4036
        %v4229 = vpack.c.b16 %v4053, %v4037
        %v4230 = vpack.c.b16 %v4054, %v4038
        %v4231 = vpack.c.b16 %v4055, %v4039
        %v4232 = vpack.c.b16 %v4056, %v4040
        %v4233 = vpack.c.b16 %v4057, %v4041
        %v4234 = vpack.c.b16 %v4058, %v4042
        %v4235 = vpack.c.b16 %v4075, %v4059
        %v4236 = vpack.c.b16 %v4076, %v4060
        %v4237 = vpack.c.b16 %v4077, %v4061
        %v4238 = vpack.c.b16 %v4078, %v4062
        %v4239 = vpack.c.b16 %v4079, %v4063
        %v4240 = vpack.c.b16 %v4080, %v4064
        %v4241 = vpack.c.b16 %v4081, %v4065
        %v4242 = vpack.c.b16 %v4082, %v4066
        %v4243 = vpack.c.b16 %v4083, %v4067
        %v4244 = vpack.c.b16 %v4084, %v4068
        %v4245 = vpack.c.b16 %v4085, %v4069
        %v4246 = vpack.c.b16 %v4086, %v4070
        %v4247 = vpack.c.b16 %v4087, %v4071
        %v4248 = vpack.c.b16 %v4088, %v4072
        %v4249 = vpack.c.b16 %v4089, %v4073
        %v4250 = vpack.c.b16 %v4090, %v4074
        %v4251 = vpack.c.b16 %v4107, %v4091
        %v4252 = vpack.c.b16 %v4108, %v4092
        %v4253 = vpack.c.b16 %v4109, %v4093
        %v4254 = vpack.c.b16 %v4110, %v4094
        %v4255 = vpack.c.b16 %v4111, %v4095
        %v4256 = vpack.c.b16 %v4112, %v4096
        %v4257 = vpack.c.b16 %v4113, %v4097
        %v4258 = vpack.c.b16 %v4114, %v4098
        %v4259 = vpack.c.b16 %v4115, %v4099
        %v4260 = vpack.c.b16 %v4116, %v4100
        %v4261 = vpack.c.b16 %v4117, %v4101
        %v4262 = vpack.c.b16 %v4118, %v4102
        %v4263 = vpack.c.b16 %v4119, %v4103
        %v4264 = vpack.c.b16 %v4120, %v4104
        %v4265 = vpack.c.b16 %v4121, %v4105
        %v4266 = vpack.c.b16 %v4122, %v4106
        %v4267 = vpack.c.b16 %v4139, %v4123
        %v4268 = vpack.c.b16 %v4140, %v4124
        %v4269 = vpack.c.b16 %v4141, %v4125
        %v4270 = vpack.c.b16 %v4142, %v4126
        %v4271 = vpack.c.b16 %v4143, %v4127
        %v4272 = vpack.c.b16 %v4144, %v4128
        %v4273 = vpack.c.b16 %v4145, %v4129
        %v4274 = vpack.c.b16 %v4146, %v4130
        %v4275 = vpack.c.b16 %v4147, %v4131
        %v4276 = vpack.c.b16 %v4148, %v4132
        %v4277 = vpack.c.b16 %v4149, %v4133
        %v4278 = vpack.c.b16 %v4150, %v4134
        %v4279 = vpack.c.b16 %v4151, %v4135
        %v4280 = vpack.c.b16 %v4152, %v4136
        %v4281 = vpack.c.b16 %v4153, %v4137
        %v4282 = vpack.c.b16 %v4154, %v4138
        %4411 = vmatpush.bf16.msra.mxu0 %v4267
        %4412 = vmatpush.bf16.msra.mxu0 %v4251
        %4413 = vmatpush.bf16.msra.mxu0 %v4235
        %4414 = vmatpush.bf16.msra.mxu0 %v4219
        %4415 = vmatpush.bf16.msra.mxu0 %v4203
        %4416 = vmatpush.bf16.msra.mxu0 %v4187
        %4417 = vmatpush.bf16.msra.mxu0 %v4171
        %4418 = vmatpush.bf16.msra.mxu0 %v4155
        %4419 = vmatmul.bf16.gmra.mxu0 %v3606
        %v4420 = vpop.f32.mrf.mxu0
        %v4421 = vadd.f32 %v3739, %v4420
        %v4422 = vpop.f32.mrf.mxu0
        %4423 = vdwg.mxu0
        %4424 = vmatpush.bf16.msra.mxu0 %v4268
        %4425 = vmatpush.bf16.msra.mxu0 %v4252
        %4426 = vmatpush.bf16.msra.mxu0 %v4236
        %4427 = vmatpush.bf16.msra.mxu0 %v4220
        %4428 = vmatpush.bf16.msra.mxu0 %v4204
        %4429 = vmatpush.bf16.msra.mxu0 %v4188
        %4430 = vmatpush.bf16.msra.mxu0 %v4172
        %4431 = vmatpush.bf16.msra.mxu0 %v4156
        %4432 = vmatmul.bf16.gmra.mxu0 %v3606
        %v4433 = vpop.f32.mrf.mxu0
        %v4434 = vadd.f32 %v3740, %v4433
        %v4435 = vpop.f32.mrf.mxu0
        %4436 = vdwg.mxu0
        %4437 = vmatpush.bf16.msra.mxu0 %v4269
        %4438 = vmatpush.bf16.msra.mxu0 %v4253
        %4439 = vmatpush.bf16.msra.mxu0 %v4237
        %4440 = vmatpush.bf16.msra.mxu0 %v4221
        %4441 = vmatpush.bf16.msra.mxu0 %v4205
        %4442 = vmatpush.bf16.msra.mxu0 %v4189
        %4443 = vmatpush.bf16.msra.mxu0 %v4173
        %4444 = vmatpush.bf16.msra.mxu0 %v4157
        %4445 = vmatmul.bf16.gmra.mxu0 %v3606
        %v4446 = vpop.f32.mrf.mxu0
        %v4447 = vadd.f32 %v3741, %v4446
        %v4448 = vpop.f32.mrf.mxu0
        %4449 = vdwg.mxu0
        %4450 = vmatpush.bf16.msra.mxu0 %v4270
        %4451 = vmatpush.bf16.msra.mxu0 %v4254
        %4452 = vmatpush.bf16.msra.mxu0 %v4238
        %4453 = vmatpush.bf16.msra.mxu0 %v4222
        %4454 = vmatpush.bf16.msra.mxu0 %v4206
        %4455 = vmatpush.bf16.msra.mxu0 %v4190
        %4456 = vmatpush.bf16.msra.mxu0 %v4174
        %4457 = vmatpush.bf16.msra.mxu0 %v4158
        %4458 = vmatmul.bf16.gmra.mxu0 %v3606
        %v4459 = vpop.f32.mrf.mxu0
        %v4460 = vadd.f32 %v3742, %v4459
        %v4461 = vpop.f32.mrf.mxu0
        %4462 = vdwg.mxu0
        %4463 = vmatpush.bf16.msra.mxu0 %v4271
        %4464 = vmatpush.bf16.msra.mxu0 %v4255
        %4465 = vmatpush.bf16.msra.mxu0 %v4239
        %4466 = vmatpush.bf16.msra.mxu0 %v4223
        %4467 = vmatpush.bf16.msra.mxu0 %v4207
        %4468 = vmatpush.bf16.msra.mxu0 %v4191
        %4469 = vmatpush.bf16.msra.mxu0 %v4175
        %4470 = vmatpush.bf16.msra.mxu0 %v4159
        %4471 = vmatmul.bf16.gmra.mxu0 %v3606
        %v4472 = vpop.f32.mrf.mxu0
        %v4473 = vadd.f32 %v3743, %v4472
        %v4474 = vpop.f32.mrf.mxu0
        %4475 = vdwg.mxu0
        %4476 = vmatpush.bf16.msra.mxu0 %v4272
        %4477 = vmatpush.bf16.msra.mxu0 %v4256
        %4478 = vmatpush.bf16.msra.mxu0 %v4240
        %4479 = vmatpush.bf16.msra.mxu0 %v4224
        %4480 = vmatpush.bf16.msra.mxu0 %v4208
        %4481 = vmatpush.bf16.msra.mxu0 %v4192
        %4482 = vmatpush.bf16.msra.mxu0 %v4176
        %4483 = vmatpush.bf16.msra.mxu0 %v4160
        %4484 = vmatmul.bf16.gmra.mxu0 %v3606
        %v4485 = vpop.f32.mrf.mxu0
        %v4486 = vadd.f32 %v3744, %v4485
        %v4487 = vpop.f32.mrf.mxu0
        %4488 = vdwg.mxu0
        %4489 = vmatpush.bf16.msra.mxu0 %v4273
        %4490 = vmatpush.bf16.msra.mxu0 %v4257
        %4491 = vmatpush.bf16.msra.mxu0 %v4241
        %4492 = vmatpush.bf16.msra.mxu0 %v4225
        %4493 = vmatpush.bf16.msra.mxu0 %v4209
        %4494 = vmatpush.bf16.msra.mxu0 %v4193
        %4495 = vmatpush.bf16.msra.mxu0 %v4177
        %4496 = vmatpush.bf16.msra.mxu0 %v4161
        %4497 = vmatmul.bf16.gmra.mxu0 %v3606
        %v4498 = vpop.f32.mrf.mxu0
        %v4499 = vadd.f32 %v3745, %v4498
        %v4500 = vpop.f32.mrf.mxu0
        %4501 = vdwg.mxu0
        %4502 = vmatpush.bf16.msra.mxu0 %v4274
        %4503 = vmatpush.bf16.msra.mxu0 %v4258
        %4504 = vmatpush.bf16.msra.mxu0 %v4242
        %4505 = vmatpush.bf16.msra.mxu0 %v4226
        %4506 = vmatpush.bf16.msra.mxu0 %v4210
        %4507 = vmatpush.bf16.msra.mxu0 %v4194
        %4508 = vmatpush.bf16.msra.mxu0 %v4178
        %4509 = vmatpush.bf16.msra.mxu0 %v4162
        %4510 = vmatmul.bf16.gmra.mxu0 %v3606
        %v4511 = vpop.f32.mrf.mxu0
        %v4512 = vadd.f32 %v3746, %v4511
        %v4513 = vpop.f32.mrf.mxu0
        %4514 = vdwg.mxu0
        %4515 = vmatpush.bf16.msra.mxu0 %v4275
        %4516 = vmatpush.bf16.msra.mxu0 %v4259
        %4517 = vmatpush.bf16.msra.mxu0 %v4243
        %4518 = vmatpush.bf16.msra.mxu0 %v4227
        %4519 = vmatpush.bf16.msra.mxu0 %v4211
        %4520 = vmatpush.bf16.msra.mxu0 %v4195
        %4521 = vmatpush.bf16.msra.mxu0 %v4179
        %4522 = vmatpush.bf16.msra.mxu0 %v4163
        %4523 = vmatmul.bf16.gmra.mxu0 %v3606
        %v4524 = vpop.f32.mrf.mxu0
        %v4525 = vadd.f32 %v3747, %v4524
        %v4526 = vpop.f32.mrf.mxu0
        %4527 = vdwg.mxu0
        %4528 = vmatpush.bf16.msra.mxu0 %v4276
        %4529 = vmatpush.bf16.msra.mxu0 %v4260
        %4530 = vmatpush.bf16.msra.mxu0 %v4244
        %4531 = vmatpush.bf16.msra.mxu0 %v4228
        %4532 = vmatpush.bf16.msra.mxu0 %v4212
        %4533 = vmatpush.bf16.msra.mxu0 %v4196
        %4534 = vmatpush.bf16.msra.mxu0 %v4180
        %4535 = vmatpush.bf16.msra.mxu0 %v4164
        %4536 = vmatmul.bf16.gmra.mxu0 %v3606
        %v4537 = vpop.f32.mrf.mxu0
        %v4538 = vadd.f32 %v3748, %v4537
        %v4539 = vpop.f32.mrf.mxu0
        %4540 = vdwg.mxu0
        %4541 = vmatpush.bf16.msra.mxu0 %v4277
        %4542 = vmatpush.bf16.msra.mxu0 %v4261
        %4543 = vmatpush.bf16.msra.mxu0 %v4245
        %4544 = vmatpush.bf16.msra.mxu0 %v4229
        %4545 = vmatpush.bf16.msra.mxu0 %v4213
        %4546 = vmatpush.bf16.msra.mxu0 %v4197
        %4547 = vmatpush.bf16.msra.mxu0 %v4181
        %4548 = vmatpush.bf16.msra.mxu0 %v4165
        %4549 = vmatmul.bf16.gmra.mxu0 %v3606
        %v4550 = vpop.f32.mrf.mxu0
        %v4551 = vadd.f32 %v3749, %v4550
        %v4552 = vpop.f32.mrf.mxu0
        %4553 = vdwg.mxu0
        %4554 = vmatpush.bf16.msra.mxu0 %v4278
        %4555 = vmatpush.bf16.msra.mxu0 %v4262
        %4556 = vmatpush.bf16.msra.mxu0 %v4246
        %4557 = vmatpush.bf16.msra.mxu0 %v4230
        %4558 = vmatpush.bf16.msra.mxu0 %v4214
        %4559 = vmatpush.bf16.msra.mxu0 %v4198
        %4560 = vmatpush.bf16.msra.mxu0 %v4182
        %4561 = vmatpush.bf16.msra.mxu0 %v4166
        %4562 = vmatmul.bf16.gmra.mxu0 %v3606
        %v4563 = vpop.f32.mrf.mxu0
        %v4564 = vadd.f32 %v3750, %v4563
        %v4565 = vpop.f32.mrf.mxu0
        %4566 = vdwg.mxu0
        %4567 = vmatpush.bf16.msra.mxu0 %v4279
        %4568 = vmatpush.bf16.msra.mxu0 %v4263
        %4569 = vmatpush.bf16.msra.mxu0 %v4247
        %4570 = vmatpush.bf16.msra.mxu0 %v4231
        %4571 = vmatpush.bf16.msra.mxu0 %v4215
        %4572 = vmatpush.bf16.msra.mxu0 %v4199
        %4573 = vmatpush.bf16.msra.mxu0 %v4183
        %4574 = vmatpush.bf16.msra.mxu0 %v4167
        %4575 = vmatmul.bf16.gmra.mxu0 %v3606
        %v4576 = vpop.f32.mrf.mxu0
        %v4577 = vadd.f32 %v3751, %v4576
        %v4578 = vpop.f32.mrf.mxu0
        %4579 = vdwg.mxu0
        %4580 = vmatpush.bf16.msra.mxu0 %v4280
        %4581 = vmatpush.bf16.msra.mxu0 %v4264
        %4582 = vmatpush.bf16.msra.mxu0 %v4248
        %4583 = vmatpush.bf16.msra.mxu0 %v4232
        %4584 = vmatpush.bf16.msra.mxu0 %v4216
        %4585 = vmatpush.bf16.msra.mxu0 %v4200
        %4586 = vmatpush.bf16.msra.mxu0 %v4184
        %4587 = vmatpush.bf16.msra.mxu0 %v4168
        %4588 = vmatmul.bf16.gmra.mxu0 %v3606
        %v4589 = vpop.f32.mrf.mxu0
        %v4590 = vadd.f32 %v3752, %v4589
        %v4591 = vpop.f32.mrf.mxu0
        %4592 = vdwg.mxu0
        %4593 = vmatpush.bf16.msra.mxu0 %v4281
        %4594 = vmatpush.bf16.msra.mxu0 %v4265
        %4595 = vmatpush.bf16.msra.mxu0 %v4249
        %4596 = vmatpush.bf16.msra.mxu0 %v4233
        %4597 = vmatpush.bf16.msra.mxu0 %v4217
        %4598 = vmatpush.bf16.msra.mxu0 %v4201
        %4599 = vmatpush.bf16.msra.mxu0 %v4185
        %4600 = vmatpush.bf16.msra.mxu0 %v4169
        %4601 = vmatmul.bf16.gmra.mxu0 %v3606
        %v4602 = vpop.f32.mrf.mxu0
        %v4603 = vadd.f32 %v3753, %v4602
        %v4604 = vpop.f32.mrf.mxu0
        %4605 = vdwg.mxu0
        %4606 = vmatpush.bf16.msra.mxu0 %v4282
        %4607 = vmatpush.bf16.msra.mxu0 %v4266
        %4608 = vmatpush.bf16.msra.mxu0 %v4250
        %4609 = vmatpush.bf16.msra.mxu0 %v4234
        %4610 = vmatpush.bf16.msra.mxu0 %v4218
        %4611 = vmatpush.bf16.msra.mxu0 %v4202
        %4612 = vmatpush.bf16.msra.mxu0 %v4186
        %4613 = vmatpush.bf16.msra.mxu0 %v4170
        %4614 = vmatmul.bf16.gmra.mxu0 %v3606
        %v4615 = vpop.f32.mrf.mxu0
        %v4616 = vadd.f32 %v3754, %v4615
        %v4617 = vpop.f32.mrf.mxu0
        %4618 = vdwg.mxu0
        %4619 = vst [vmem:[%s558] sm:$0xff] %v4421
        %4620 = vst [vmem:[%s558 + $0x8] sm:$0xff] %v4434
        %4621 = vst [vmem:[%s558 + $0x10] sm:$0xff] %v4447
        %4622 = vst [vmem:[%s558 + $0x18] sm:$0xff] %v4460
        %4623 = vst [vmem:[%s558 + $0x20] sm:$0xff] %v4473
        %4624 = vst [vmem:[%s558 + $0x28] sm:$0xff] %v4486
        %4625 = vst [vmem:[%s558 + $0x30] sm:$0xff] %v4499
        %4626 = vst [vmem:[%s558 + $0x38] sm:$0xff] %v4512
        %4627 = vst [vmem:[%s558 + $0x40] sm:$0xff] %v4525
        %4628 = vst [vmem:[%s558 + $0x48] sm:$0xff] %v4538
        %4629 = vst [vmem:[%s558 + $0x50] sm:$0xff] %v4551
        %4630 = vst [vmem:[%s558 + $0x58] sm:$0xff] %v4564
        %4631 = vst [vmem:[%s558 + $0x60] sm:$0xff] %v4577
        %4632 = vst [vmem:[%s558 + $0x68] sm:$0xff] %v4590
        %4633 = vst [vmem:[%s558 + $0x70] sm:$0xff] %v4603
        %vm4634 = vcmask 654336
        %4635 = vst.msk [vmem:[%s558 + $0x78] sm:$0xff] %vm4634, %v4616
        %p4636 = scmp.lt.s32.totalorder %s29, 1
        %s4637 = scalar_select %p4636, %s29, 1
        %s4638 = smul.addr %s4637, 16
        %s4639 = smul.addr %s4638, 8
        %s4640 = scalar_lea.vmem %s15, %s4639
        // Predicated region
        $region97: #{gd_transformer_forward.1} parent=79 // pred_check
          %p4641 = pneg %p367
        $region98: #{gd_transformer_forward.1} parent=79 // pred_check_branch
          %4643 = sbr.rel (%p4641) target = $region100
        $region99: #{gd_transformer_forward.1} parent=79 // pred_region
          _
        $region100: #{gd_transformer_forward.1} parent=79 // pred_fallthru
          _
      $region80: #{gd_transformer_forward.1} parent=5 // pred_fallthru
        _
      %p4644 = scmp.le.s32.totalorder 2, %s24
      // Predicated region
      $region101: #{gd_transformer_forward.1} parent=5 // pred_check
        %p4645 = pneg %p4644
      $region102: #{gd_transformer_forward.1} parent=5 // pred_check_branch
        %4647 = sbr.rel (%p4645) target = $region104
      $region103: #{gd_transformer_forward.1} parent=5 // pred_region
        %s4648 = ssub.s32 %s24, 2
        // Predicated region
        $region105: #{gd_transformer_forward.1} parent=103 // pred_check
          %p4649 = pneg %p373
        $region106: #{gd_transformer_forward.1} parent=103 // pred_check_branch
          %4651 = sbr.rel (%p4649) target = $region108
        $region107: #{gd_transformer_forward.1} parent=103 // pred_region
          %p4652 = scmp.lt.s32.totalorder %s30, 1
          %s4653 = scalar_select %p4652, %s30, 1
          %s4654 = smul.addr %s4653, 16
          %s4655 = smul.addr %s4654, 8
          %s4656 = scalar_lea.vmem %s15, %s4655
        $region108: #{gd_transformer_forward.1} parent=103 // pred_fallthru
          _
      $region104: #{gd_transformer_forward.1} parent=5 // pred_fallthru
        _
    $region6: #{gd_transformer_forward.1} parent=1 // loop_footer
      %s28 = sadd.s32 1, %s24
    $region7: #{gd_transformer_forward.1} parent=1 // loop_footer_branch
      %23 = sbr.rel target = $region3
    $region8: #{gd_transformer_forward.1} parent=1 // loop_exit
      _
    %4657 = vsyncpa [#allocation3], 1
    %s4658 = scalar_lea.sflag [#allocation3], 1
    %4659 = vsyncpa %s4658, 1
    %4660 = vsyncpa [#allocation5], 1
    %4661 = vsyncpa [#allocation8], 1

</llo_original>
